<compile_context>
chip_gen: v6e
topology: v6e:2x2x1
jax: 0.10.0
libtpu: 0.0.40
codegen_flags: <defaults>
</compile_context>

<pallas_src>
import functools

import jax
import jax.numpy as jnp
from jax.experimental import pallas as pl
from jax.experimental.pallas import tpu as pltpu


def _attn_tail_kernel(*refs, drop_p, use_dropout):
    if use_dropout:
        scores_ref, mask_ref, v_ref, bits_ref, out_ref = refs
    else:
        scores_ref, mask_ref, v_ref, out_ref = refs
        bits_ref = None

    # scores_ref: (BH, Tq, S) f32   mask_ref: (1, S) f32   v_ref: (BH, S, D)
    s = scores_ref[...] + mask_ref[...]          # bias broadcast over heads/rows

    # numerically-stable softmax along the last axis (f32 math on every chip)
    m = jnp.max(s, axis=-1, keepdims=True)
    e = jnp.exp(s - m)
    denom = jnp.sum(e, axis=-1, keepdims=True)
    inv = pl.reciprocal(denom, approx=True)      # EUP slot, effectively free

    if use_dropout:
        # fold the 1/(1-p) dropout rescale into the (BH, Tq, 1) reciprocal
        inv = inv * jnp.float32(1.0 / (1.0 - drop_p))
        threshold = jnp.uint32(round(drop_p * (2.0 ** 32)))
        keep = bits_ref[...] >= threshold        # keep with prob (1 - p)
        probs = jnp.where(keep, e * inv, jnp.float32(0.0))
    else:
        probs = e * inv

    # MXU: (BH, Tq, S) @ (BH, S, D) -> (BH, Tq, D); bf16 operands, f32 accum.
    out_ref[...] = jnp.einsum(
        "hqk,hkd->hqd",
        probs.astype(jnp.bfloat16),
        v_ref[...].astype(jnp.bfloat16),
        preferred_element_type=jnp.float32,
    )


def add_softmax_dropout_matmul(scores, mask, v, *, key, drop_p=0.1,
                               training=True, tq=128):
    """scores: [B,H,S,S], mask: [1,1,1,S], v: [B,H,S,D] -> [B,H,S,D] (f32)."""
    B, H, S, S2 = scores.shape
    assert S == S2
    D = v.shape[-1]
    BH = B * H

    scores2 = scores.reshape(BH, S, S)
    v2 = v.reshape(BH, S, D)
    mask2 = mask.reshape(1, S)
    # softmax math must be f32 in-kernel; inputs of this module are already f32
    if scores2.dtype != jnp.float32:
        scores2 = scores2.astype(jnp.float32)
    if mask2.dtype != jnp.float32:
        mask2 = mask2.astype(jnp.float32)

    if S % tq != 0:
        tq = S                                   # fall back to a single row tile
    grid = (S // tq,)

    use_dropout = bool(training) and drop_p > 0.0

    in_specs = [
        pl.BlockSpec((BH, tq, S), lambda q: (0, q, 0)),   # score tile
        pl.BlockSpec((1, S), lambda q: (0, 0)),           # bias row (constant)
        pl.BlockSpec((BH, S, D), lambda q: (0, 0, 0)),    # values (constant)
    ]
    inputs = [scores2, mask2, v2]
    if use_dropout:
        # TODO(synk): use in-kernel pltpu.prng_random_bits once the interpret/CPU
        # path supports it; for now stream pre-generated uint32 bits instead.
        bits = jax.random.bits(key, (BH, S, S), dtype=jnp.uint32)
        in_specs.append(pl.BlockSpec((BH, tq, S), lambda q: (0, q, 0)))
        inputs.append(bits)

    kernel = functools.partial(_attn_tail_kernel, drop_p=drop_p,
                               use_dropout=use_dropout)

    out = pl.pallas_call(
        kernel,
        out_shape=jax.ShapeDtypeStruct((BH, S, D), jnp.float32),
        grid=grid,
        in_specs=in_specs,
        out_specs=pl.BlockSpec((BH, tq, D), lambda q: (0, q, 0)),
        compiler_params=pltpu.CompilerParams(
            dimension_semantics=("parallel",)),
    )(*inputs)

    return out.reshape(B, H, S, D)


def _reference(scores, mask, v, key, drop_p):
    """Pure-JAX reference using the identical dropout bits."""
    B, H, S, _ = scores.shape
    probs = jax.nn.softmax(scores + mask, axis=-1)
    bits = jax.random.bits(key, (B * H, S, S), dtype=jnp.uint32).reshape(B, H, S, S)
    keep = bits >= jnp.uint32(round(drop_p * (2.0 ** 32)))
    probs = jnp.where(keep, probs / (1.0 - drop_p), 0.0)
    return jnp.einsum("bhqk,bhkd->bhqd", probs, v)


if __name__ == "__main__":
    # Shapes implied by the module's forward:
    #   x134 (scores): [1, 4, 384, 384], x126 (values): [1, 4, 384, 64]
    #   mask constant: [1, 1, 1, 384]
    B, H, S, D = 1, 4, 384, 64

    root = jax.random.PRNGKey(0)
    k_scores, k_v, k_mask, k_drop = jax.random.split(root, 4)

    x134 = jax.random.normal(k_scores, (B, H, S, S), dtype=jnp.float32)
    x126 = jax.random.normal(k_v, (B, H, S, D), dtype=jnp.float32)
    mask_const = jax.random.uniform(k_mask, (1, 1, 1, S), dtype=jnp.float32)

    out = add_softmax_dropout_matmul(x134, mask_const, x126, key=k_drop,
                                     drop_p=0.1, training=True)
    jax.block_until_ready(out)

    assert out.shape == (B, H, S, D)
    assert out.dtype == jnp.float32

    # sanity check against a pure-JAX reference with the same dropout bits
    # (loose tolerance: bf16 MXU operands + approx reciprocal in the kernel)
    ref = _reference(x134, mask_const, x126, k_drop, 0.1)
    max_err = float(jnp.max(jnp.abs(out - ref)))
    assert max_err < 5e-2, f"max abs error too large: {max_err}"

    print("KERNEL_OK")
</pallas_src>

<mosaic_0001>
module attributes {stable_mosaic.version = 11 : i64} {
  func.func @_attn_tail_kernel(%arg0: i32, %arg1: memref<4x128x384xf32, #tpu.memory_space<vmem>>, %arg2: memref<1x384xf32, #tpu.memory_space<vmem>>, %arg3: memref<4x384x64xf32, #tpu.memory_space<vmem>>, %arg4: memref<4x128x384xi32, #tpu.memory_space<vmem>>, %arg5: memref<4x128x64xf32, #tpu.memory_space<vmem>>) attributes {dimension_semantics = [#tpu.dimension_semantics<parallel>], iteration_bounds = array<i64: 3>, scalar_prefetch = 0 : i64, scratch_operands = 0 : i64, tpu.core_type = #tpu.core_type<tc>, window_params = [{transform_indices = @transform_0, window_bounds = array<i64: 4, 128, 384>}, {pipeline_mode = #tpu.pipeline_mode<synchronous>, transform_indices = @transform_1, window_bounds = array<i64: 1, 384>}, {pipeline_mode = #tpu.pipeline_mode<synchronous>, transform_indices = @transform_2, window_bounds = array<i64: 4, 384, 64>}, {transform_indices = @transform_3, window_bounds = array<i64: 4, 128, 384>}, {transform_indices = @transform_4, window_bounds = array<i64: 4, 128, 64>}]} {
    %c0 = arith.constant 0 : index
    %c0_0 = arith.constant 0 : index
    %c0_1 = arith.constant 0 : index
    %0 = vector.load %arg1[%c0, %c0_0, %c0_1] : memref<4x128x384xf32, #tpu.memory_space<vmem>>, vector<4x128x384xf32>
    %c0_2 = arith.constant 0 : index
    %c0_3 = arith.constant 0 : index
    %1 = vector.load %arg2[%c0_2, %c0_3] : memref<1x384xf32, #tpu.memory_space<vmem>>, vector<1x384xf32>
    %2 = vector.shape_cast %1 : vector<1x384xf32> to vector<1x1x384xf32>
    %3 = vector.broadcast %2 : vector<1x1x384xf32> to vector<4x128x384xf32>
    %4 = arith.addf %0, %3 : vector<4x128x384xf32>
    %cst = arith.constant dense<0xFF800000> : vector<4x128xf32>
    %5 = vector.multi_reduction <maximumf>, %4, %cst [2] : vector<4x128x384xf32> to vector<4x128xf32>
    %6 = vector.shape_cast %5 : vector<4x128xf32> to vector<4x128x1xf32>
    %7 = vector.broadcast %6 : vector<4x128x1xf32> to vector<4x128x384xf32>
    %8 = arith.subf %4, %7 : vector<4x128x384xf32>
    %9 = math.exp %8 : vector<4x128x384xf32>
    %cst_4 = arith.constant dense<0.000000e+00> : vector<4x128xf32>
    %10 = vector.multi_reduction <add>, %9, %cst_4 [2] : vector<4x128x384xf32> to vector<4x128xf32>
    %11 = vector.shape_cast %10 : vector<4x128xf32> to vector<4x128x1xf32>
    %12 = tpu.reciprocal %11 {approx = true} : vector<4x128x1xf32> -> vector<4x128x1xf32>
    %cst_5 = arith.constant 1.11111116 : f32
    %13 = vector.broadcast %cst_5 : f32 to vector<4x128x1xf32>
    %14 = arith.mulf %12, %13 : vector<4x128x1xf32>
    %c0_6 = arith.constant 0 : index
    %c0_7 = arith.constant 0 : index
    %c0_8 = arith.constant 0 : index
    %15 = vector.load %arg4[%c0_6, %c0_7, %c0_8] : memref<4x128x384xi32, #tpu.memory_space<vmem>>, vector<4x128x384xi32>
    %c429496730_i32 = arith.constant 429496730 : i32
    %16 = vector.broadcast %c429496730_i32 : i32 to vector<4x128x384xi32>
    %17 = arith.cmpi uge, %15, %16 : vector<4x128x384xi32>
    %18 = vector.broadcast %14 : vector<4x128x1xf32> to vector<4x128x384xf32>
    %19 = arith.mulf %9, %18 : vector<4x128x384xf32>
    %cst_9 = arith.constant 0.000000e+00 : f32
    %20 = vector.broadcast %cst_9 : f32 to vector<4x128x384xf32>
    %21 = arith.select %17, %19, %20 : vector<4x128x384xi1>, vector<4x128x384xf32>
    %22 = arith.truncf %21 : vector<4x128x384xf32> to vector<4x128x384xbf16>
    %c0_10 = arith.constant 0 : index
    %c0_11 = arith.constant 0 : index
    %c0_12 = arith.constant 0 : index
    %23 = vector.load %arg3[%c0_10, %c0_11, %c0_12] : memref<4x384x64xf32, #tpu.memory_space<vmem>>, vector<4x384x64xf32>
    %24 = arith.truncf %23 : vector<4x384x64xf32> to vector<4x384x64xbf16>
    "tpu.trace_start"() <{level = 10 : i32, message = "hqk,hkd->hqd"}> : () -> ()
    %cst_13 = arith.constant dense<0.000000e+00> : vector<4x128x64xf32>
    %25 = tpu.matmul %22, %24, %cst_13 {dimension_numbers = #tpu.dot_dimension_numbers<[2], [1], [1], [2], [0, 0, 0, 1, 1, 2], [0], [0]>} : vector<4x128x384xbf16>, vector<4x384x64xbf16>, vector<4x128x64xf32> -> vector<4x128x64xf32>
    "tpu.trace_stop"() : () -> ()
    %c0_14 = arith.constant 0 : index
    %c0_15 = arith.constant 0 : index
    %c0_16 = arith.constant 0 : index
    %26 = vector.load %arg5[%c0_14, %c0_15, %c0_16] : memref<4x128x64xf32, #tpu.memory_space<vmem>>, vector<4x128x64xf32>
    tpu.vector_store %arg5[%c0_14, %c0_15, %c0_16], %25 {strides = array<i32>} : memref<4x128x64xf32, #tpu.memory_space<vmem>>, vector<4x128x64xf32>,
    return
  }
  func.func @transform_0(%arg0: i32) -> (i32, i32, i32) {
    %c0_i32 = arith.constant 0 : i32
    %c0_i32_0 = arith.constant 0 : i32
    %c0_i32_1 = arith.constant 0 : i32
    return %c0_i32, %arg0, %c0_i32_0 : i32, i32, i32
  }
  func.func @transform_1(%arg0: i32) -> (i32, i32) {
    %c0_i32 = arith.constant 0 : i32
    %c0_i32_0 = arith.constant 0 : i32
    %c0_i32_1 = arith.constant 0 : i32
    return %c0_i32, %c0_i32_0 : i32, i32
  }
  func.func @transform_2(%arg0: i32) -> (i32, i32, i32) {
    %c0_i32 = arith.constant 0 : i32
    %c0_i32_0 = arith.constant 0 : i32
    %c0_i32_1 = arith.constant 0 : i32
    %c0_i32_2 = arith.constant 0 : i32
    return %c0_i32, %c0_i32_0, %c0_i32_1 : i32, i32, i32
  }
  func.func @transform_3(%arg0: i32) -> (i32, i32, i32) {
    %c0_i32 = arith.constant 0 : i32
    %c0_i32_0 = arith.constant 0 : i32
    %c0_i32_1 = arith.constant 0 : i32
    return %c0_i32, %arg0, %c0_i32_0 : i32, i32, i32
  }
  func.func @transform_4(%arg0: i32) -> (i32, i32, i32) {
    %c0_i32 = arith.constant 0 : i32
    %c0_i32_0 = arith.constant 0 : i32
    %c0_i32_1 = arith.constant 0 : i32
    return %c0_i32, %arg0, %c0_i32_0 : i32, i32, i32
  }
}

</mosaic_0001>

<llo_original>
// kernel: tpu_custom_call.1
$region0: #{tpu_custom_call.1}
  #allocation0 [shape = 'u32[]', space=smem, size = 0x4, offset = 0x4, fixed_abs, tag = 'smem constant byte address 0x4 - core index']
  #allocation1 [shape = 'u32[144,128]{1,0:T(1,128)}', space=vmem, size = 0x12000, scoped, tag = 'internal scratch']
  #allocation8 [shape = 's32[]', space=sflag, size = 0x4, offset = 0, fixed_abs, tag = 'sflag constant byte address 0x0 - dummy sync flag']
  #allocation10 [shape = 's32[]', space=sflag, size = 0x4, offset = 0, fixed_abs, tag = 'sflag constant byte address 0x0 - dummy sync flag']
  %s0 = inlined_call_operand.hbm [shape: f32[4,384,384], index: 0, kind: input, shape index: {}]
  %s1 = inlined_call_operand.hbm [shape: f32[1,384], index: 1, kind: input, shape index: {}]
  %s2 = inlined_call_operand.vmem [shape: f32[4,384,64], index: 2, kind: input, shape index: {}]
  %s3 = inlined_call_operand.hbm [shape: u32[4,384,384], index: 3, kind: input, shape index: {}]
  %s4 = inlined_call_operand.vmem [shape: f32[4,384,64], index: 4, kind: output, shape index: {}]
  %s5 = sld [smem:[#allocation0]]
  $region95: #{tpu_custom_call.1} parent=0
    _
  %s7 = ssub.s32 1, %s5
  %s8 = scalar_select 0, %s7, %s5
  $region1: #{tpu_custom_call.1} parent=0
    #allocation2 [shape = 'u8[1572864]{0}', space=vmem, size = 0x180000, scoped, tag = 'input window, operand 0']
    #allocation3 [shape = 's32[2]{0}', space=sflag, size = 0x8, scoped, tag = 'scoped memory for tpu_custom_call.1']
    #allocation4 [shape = 'u8[1536]{0}', space=vmem, size = 0x800, scoped, tag = 'input window, operand 1, single buffered']
    #allocation5 [shape = 's32[1]{0}', space=sflag, size = 0x4, scoped, tag = 'scoped memory for tpu_custom_call.1']
    #allocation6 [shape = 'u8[1572864]{0}', space=vmem, size = 0x180000, scoped, tag = 'input window, operand 3']
    #allocation7 [shape = 'u8[524288]{0}', space=vmem, size = 0x80000, scoped, tag = 'output window, operand 0']
    %9 = vsyncpa [#allocation3], 0
    %s10 = scalar_lea.sflag [#allocation3], 1
    %11 = vsyncpa %s10, 0
    %12 = vsyncpa [#allocation5], 0
    loop: start=0, step=1, limit=5
    $region2: #{tpu_custom_call.1} parent=1 // loop_pre_header
      _
    $region3: #{tpu_custom_call.1} parent=1 // loop_header
      %s14 = sphi 0, %s18
      %p15 = scmp.ge.s32.totalorder %s14, 5
      %s24 = sphi 0, %s26
      %s27 = sphi 0, %s24
      %s28 = sphi 0, %s27
      %s44 = sphi 0, %s28
      %s48 = sphi 0, %s48
      %s50 = sphi 0, %s48
      %s51 = sphi 0, %s50
      %s65 = sphi 0, %s51
      %s69 = sphi 0, %s69
      %s71 = sphi 0, %s69
      %s72 = sphi 0, %s71
      %s86 = sphi 0, %s72
      %s92 = sphi 0, %s94
      %s95 = sphi 0, %s92
      %s96 = sphi 0, %s95
      %s112 = sphi 0, %s96
      %s118 = sphi 0, %s120
      %s121 = sphi 0, %s118
      %s122 = sphi 0, %s121
      %s138 = sphi 0, %s122
    $region4: #{tpu_custom_call.1} parent=1 // loop_header_branch
      %17 = sbr.rel (%p15) target = $region8
    $region5: #{tpu_custom_call.1} parent=1 // loop_body
      %s19 = ssub.s32 %s14, 1
      %s20 = ssub.s32 %s14, 2
      %s21 = sadd.s32 %s14, 1
      %s22 = ssub.s32 %s14, %s21
      %p23 = scmp.eq.s32.totalorder %s22, 0
      %s25 = sadd.s32 %s24, 1
      %s26 = scalar_select %p23, %s24, %s25
      %p29 = pneg %p23
      %p30 = scmp.eq.s32.totalorder %s14, 2
      %p31 = por %p29, %p30
      %p32 = scmp.ne.s32.totalorder %s24, %s27
      %p33 = scmp.eq.s32.totalorder %s14, 0
      %p34 = por %p32, %p33
      %p35 = scmp.ne.s32.totalorder %s24, %s27
      %p36 = scmp.eq.s32.totalorder %s19, 2
      %p37 = por %p35, %p36
      %p38 = scmp.ne.s32.totalorder %s27, %s28
      %p39 = scmp.eq.s32.totalorder %s19, 0
      %p40 = por %p38, %p39
      %p41 = scmp.ne.s32.totalorder %s27, %s28
      %p42 = scmp.eq.s32.totalorder %s20, 2
      %p43 = por %p41, %p42
      %p45 = scmp.ne.s32.totalorder %s28, %s44
      %p46 = scmp.eq.s32.totalorder %s20, 0
      %p47 = por %p45, %p46
      %s49 = sadd.s32 %s48, 1
      %p52 = scmp.eq.s32.totalorder %s14, 2
      %p53 = scmp.ne.s32.totalorder %s48, %s50
      %p54 = scmp.eq.s32.totalorder %s14, 0
      %p55 = por %p53, %p54
      %p56 = scmp.ne.s32.totalorder %s48, %s50
      %p57 = scmp.eq.s32.totalorder %s19, 2
      %p58 = por %p56, %p57
      %p59 = scmp.ne.s32.totalorder %s50, %s51
      %p60 = scmp.eq.s32.totalorder %s19, 0
      %p61 = por %p59, %p60
      %p62 = scmp.ne.s32.totalorder %s50, %s51
      %p63 = scmp.eq.s32.totalorder %s20, 2
      %p64 = por %p62, %p63
      %p66 = scmp.ne.s32.totalorder %s51, %s65
      %p67 = scmp.eq.s32.totalorder %s20, 0
      %p68 = por %p66, %p67
      %s70 = sadd.s32 %s69, 1
      %p73 = scmp.eq.s32.totalorder %s14, 2
      %p74 = scmp.ne.s32.totalorder %s69, %s71
      %p75 = scmp.eq.s32.totalorder %s14, 0
      %p76 = por %p74, %p75
      %p77 = scmp.ne.s32.totalorder %s69, %s71
      %p78 = scmp.eq.s32.totalorder %s19, 2
      %p79 = por %p77, %p78
      %p80 = scmp.ne.s32.totalorder %s71, %s72
      %p81 = scmp.eq.s32.totalorder %s19, 0
      %p82 = por %p80, %p81
      %p83 = scmp.ne.s32.totalorder %s71, %s72
      %p84 = scmp.eq.s32.totalorder %s20, 2
      %p85 = por %p83, %p84
      %p87 = scmp.ne.s32.totalorder %s72, %s86
      %p88 = scmp.eq.s32.totalorder %s20, 0
      %p89 = por %p87, %p88
      %s90 = ssub.s32 %s14, %s21
      %p91 = scmp.eq.s32.totalorder %s90, 0
      %s93 = sadd.s32 %s92, 1
      %s94 = scalar_select %p91, %s92, %s93
      %p97 = pneg %p91
      %p98 = scmp.eq.s32.totalorder %s14, 2
      %p99 = por %p97, %p98
      %p100 = scmp.ne.s32.totalorder %s92, %s95
      %p101 = scmp.eq.s32.totalorder %s14, 0
      %p102 = por %p100, %p101
      %p103 = scmp.ne.s32.totalorder %s92, %s95
      %p104 = scmp.eq.s32.totalorder %s19, 2
      %p105 = por %p103, %p104
      %p106 = scmp.ne.s32.totalorder %s95, %s96
      %p107 = scmp.eq.s32.totalorder %s19, 0
      %p108 = por %p106, %p107
      %p109 = scmp.ne.s32.totalorder %s95, %s96
      %p110 = scmp.eq.s32.totalorder %s20, 2
      %p111 = por %p109, %p110
      %p113 = scmp.ne.s32.totalorder %s96, %s112
      %p114 = scmp.eq.s32.totalorder %s20, 0
      %p115 = por %p113, %p114
      %s116 = ssub.s32 %s14, %s21
      %p117 = scmp.eq.s32.totalorder %s116, 0
      %s119 = sadd.s32 %s118, 1
      %s120 = scalar_select %p117, %s118, %s119
      %p123 = pneg %p117
      %p124 = scmp.eq.s32.totalorder %s14, 2
      %p125 = por %p123, %p124
      %p126 = scmp.ne.s32.totalorder %s118, %s121
      %p127 = scmp.eq.s32.totalorder %s14, 0
      %p128 = por %p126, %p127
      %p129 = scmp.ne.s32.totalorder %s118, %s121
      %p130 = scmp.eq.s32.totalorder %s19, 2
      %p131 = por %p129, %p130
      %p132 = scmp.ne.s32.totalorder %s121, %s122
      %p133 = scmp.eq.s32.totalorder %s19, 0
      %p134 = por %p132, %p133
      %p135 = scmp.ne.s32.totalorder %s121, %s122
      %p136 = scmp.eq.s32.totalorder %s20, 2
      %p137 = por %p135, %p136
      %p139 = scmp.ne.s32.totalorder %s122, %s138
      %p140 = scmp.eq.s32.totalorder %s20, 0
      %p141 = por %p139, %p140
      %p142 = scmp.le.s32.totalorder 1, %s14
      %p143 = scmp.lt.s32.totalorder %s14, 4
      %p144 = pnand %p142, %p143
      %p145 = pneg %p144
      // Predicated region
      $region9: #{tpu_custom_call.1} parent=5 // pred_check
        _
      $region10: #{tpu_custom_call.1} parent=5 // pred_check_branch
        %147 = sbr.rel (%p144) target = $region12
      $region11: #{tpu_custom_call.1} parent=5 // pred_region
        %s148 = ssub.s32 %s14, 1
        // Predicated region
        $region13: #{tpu_custom_call.1} parent=11 // pred_check
          %p149 = pneg %p61
        $region14: #{tpu_custom_call.1} parent=11 // pred_check_branch
          %151 = sbr.rel (%p149) target = $region16
        $region15: #{tpu_custom_call.1} parent=11 // pred_region
          %s153 = ssub.s32 48, 48
          %154 = vsyncadd [#allocation5], %s153
          %s156 = sshll.u32 [#allocation4], 4
          %s157 = int_to_ptr.vmem [resolvable:$true] %s156
          %159 = dma.hbm_to_vmem [thread:$0]  %s1, 48, %s157, [#allocation5]
        $region16: #{tpu_custom_call.1} parent=11 // pred_fallthru
          _
        // Predicated region
        $region17: #{tpu_custom_call.1} parent=11 // pred_check
          %p160 = pneg %p82
        $region18: #{tpu_custom_call.1} parent=11 // pred_check_branch
          %162 = sbr.rel (%p160) target = $region20
        $region19: #{tpu_custom_call.1} parent=11 // pred_region
          _
        $region20: #{tpu_custom_call.1} parent=11 // pred_fallthru
          _
      $region12: #{tpu_custom_call.1} parent=5 // pred_fallthru
        _
      %p163 = scmp.lt.s32.totalorder %s14, 3
      // Predicated region
      $region21: #{tpu_custom_call.1} parent=5 // pred_check
        %p164 = pneg %p163
      $region22: #{tpu_custom_call.1} parent=5 // pred_check_branch
        %166 = sbr.rel (%p164) target = $region24
      $region23: #{tpu_custom_call.1} parent=5 // pred_region
        // Predicated region
        $region25: #{tpu_custom_call.1} parent=23 // pred_check
          %p167 = pneg %p34
        $region26: #{tpu_custom_call.1} parent=23 // pred_check_branch
          %169 = sbr.rel (%p167) target = $region28
        $region27: #{tpu_custom_call.1} parent=23 // pred_region
          #allocation9 [shape = 'u32[6]{0}', space=smem, size = 0x18, scoped, tag = 'DMA stride descriptor']
          %s170 = sand.u32 %s14, 1
          %s171 = scalar_lea.sflag [#allocation3], %s170
          %s172 = sand.u32 %s24, 1
          %s173 = smul.addr %s172, 1536
          %s174 = scalar_lea.vmem [#allocation2], %s173
          %s175 = smul.u32 16, %s14
          %s177 = ssub.s32 24576, 24576
          %178 = vsyncadd %s171, %s177
          %s179 = smul.addr %s175, 3
          %s180 = smul.addr %s179, 128
          %s181 = scalar_lea.hbm %s0, %s180
          %s183 = sshll.u32 1, 14
          %s184 = sxor.u32 4294967295, %s183
          %s186 = sld [smem:[#allocation0]]
          %s187 = sadd.s32 2, %s186
          %s189 = sshll.u32 7, 26
          %s190 = sxor.u32 4294967295, %s189
          %s191 = sand.u32 0, %s190
          %s192 = sshll.u32 %s187, 26
          %s193 = sor.u32 %s191, %s192
          %s194 = sshll.u32 %s174, 4
          %s195 = int_to_ptr.vmem [resolvable:$true] %s194
          %201 = sst [smem:[#allocation9]] 18432
          %s202 = scalar_lea.smem [#allocation9], 1
          %203 = sst [smem:[%s202]] 6144
          %s204 = scalar_lea.smem [#allocation9], 2
          %205 = sst [smem:[%s204]] 16
          %s206 = scalar_lea.smem [#allocation9], 3
          %207 = sst [smem:[%s206]] 384
          %s208 = scalar_lea.smem [#allocation9], 4
          %209 = sst [smem:[%s208]] 384
          %s210 = scalar_lea.smem [#allocation9], 5
          %211 = sst [smem:[%s210]] 24
          %213 = dma.general %s181, 24576, %s195, %s171, 131072, [#allocation9], %s193, 0
        $region28: #{tpu_custom_call.1} parent=23 // pred_fallthru
          _
        // Predicated region
        $region29: #{tpu_custom_call.1} parent=23 // pred_check
          %p214 = pneg %p102
        $region30: #{tpu_custom_call.1} parent=23 // pred_check_branch
          %216 = sbr.rel (%p214) target = $region32
        $region31: #{tpu_custom_call.1} parent=23 // pred_region
          #allocation11 [shape = 'u32[6]{0}', space=smem, size = 0x18, scoped, tag = 'DMA stride descriptor']
          %s217 = sand.u32 %s14, 1
          %s218 = scalar_lea.sflag [#allocation3], %s217
          %s219 = sand.u32 %s92, 1
          %s220 = smul.addr %s219, 1536
          %s221 = scalar_lea.vmem [#allocation6], %s220
          %s222 = smul.u32 16, %s14
          %s224 = ssub.s32 24576, 24576
          %225 = vsyncadd %s218, %s224
          %s226 = smul.addr %s222, 3
          %s227 = smul.addr %s226, 128
          %s228 = scalar_lea.hbm %s3, %s227
          %s230 = sshll.u32 1, 14
          %s231 = sxor.u32 4294967295, %s230
          %s233 = sld [smem:[#allocation0]]
          %s234 = sadd.s32 2, %s233
          %s236 = sshll.u32 7, 26
          %s237 = sxor.u32 4294967295, %s236
          %s238 = sand.u32 0, %s237
          %s239 = sshll.u32 %s234, 26
          %s240 = sor.u32 %s238, %s239
          %s241 = sshll.u32 %s221, 4
          %s242 = int_to_ptr.vmem [resolvable:$true] %s241
          %248 = sst [smem:[#allocation11]] 18432
          %s249 = scalar_lea.smem [#allocation11], 1
          %250 = sst [smem:[%s249]] 6144
          %s251 = scalar_lea.smem [#allocation11], 2
          %252 = sst [smem:[%s251]] 16
          %s253 = scalar_lea.smem [#allocation11], 3
          %254 = sst [smem:[%s253]] 384
          %s255 = scalar_lea.smem [#allocation11], 4
          %256 = sst [smem:[%s255]] 384
          %s257 = scalar_lea.smem [#allocation11], 5
          %258 = sst [smem:[%s257]] 24
          %260 = dma.general %s228, 24576, %s242, %s218, 131072, [#allocation11], %s240, 0
        $region32: #{tpu_custom_call.1} parent=23 // pred_fallthru
          _
      $region24: #{tpu_custom_call.1} parent=5 // pred_fallthru
        _
      %p261 = scmp.le.s32.totalorder 1, %s14
      %p262 = scmp.lt.s32.totalorder %s14, 4
      %p263 = pnand %p261, %p262
      %p264 = pneg %p263
      // Predicated region
      $region33: #{tpu_custom_call.1} parent=5 // pred_check
        _
      $region34: #{tpu_custom_call.1} parent=5 // pred_check_branch
        %266 = sbr.rel (%p263) target = $region36
      $region35: #{tpu_custom_call.1} parent=5 // pred_region
        %s267 = ssub.s32 %s14, 1
        %s268 = sand.u32 %s19, 1
        %s269 = scalar_lea.sflag [#allocation3], %s268
        %s270 = sand.u32 %s27, 1
        %s271 = smul.addr %s270, 1536
        %s272 = scalar_lea.vmem [#allocation2], %s271
        // Predicated region
        $region37: #{tpu_custom_call.1} parent=35 // pred_check
          %p273 = pneg %p40
        $region38: #{tpu_custom_call.1} parent=35 // pred_check_branch
          %275 = sbr.rel (%p273) target = $region40
        $region39: #{tpu_custom_call.1} parent=35 // pred_region
          %276 = dma.done %s269, 24576
        $region40: #{tpu_custom_call.1} parent=35 // pred_fallthru
          _
        // Predicated region
        $region41: #{tpu_custom_call.1} parent=35 // pred_check
          %p277 = pneg %p61
        $region42: #{tpu_custom_call.1} parent=35 // pred_check_branch
          %279 = sbr.rel (%p277) target = $region44
        $region43: #{tpu_custom_call.1} parent=35 // pred_region
          %280 = dma.done [#allocation5], 48
        $region44: #{tpu_custom_call.1} parent=35 // pred_fallthru
          _
        %s281 = sand.u32 %s19, 1
        %s282 = scalar_lea.sflag [#allocation3], %s281
        %s283 = sand.u32 %s95, 1
        %s284 = smul.addr %s283, 1536
        %s285 = scalar_lea.vmem [#allocation6], %s284
        // Predicated region
        $region45: #{tpu_custom_call.1} parent=35 // pred_check
          %p286 = pneg %p108
        $region46: #{tpu_custom_call.1} parent=35 // pred_check_branch
          %288 = sbr.rel (%p286) target = $region48
        $region47: #{tpu_custom_call.1} parent=35 // pred_region
          %289 = dma.done %s282, 24576
        $region48: #{tpu_custom_call.1} parent=35 // pred_fallthru
          _
        %s290 = sand.u32 %s19, 1
        %s291 = scalar_lea.sflag [#allocation3], %s290
        %s292 = sand.u32 %s27, 1
        %s293 = smul.addr %s292, 1536
        %s294 = scalar_lea.vmem [#allocation2], %s293
        %p295 = pneg %p40
        %p296 = pneg %p37
        %p297 = pneg %p61
        %p298 = pneg %p58
        %p299 = pneg %p82
        %p300 = pneg %p79
        %s301 = sand.u32 %s19, 1
        %s302 = scalar_lea.sflag [#allocation3], %s301
        %s303 = sand.u32 %s95, 1
        %s304 = smul.addr %s303, 1536
        %s305 = scalar_lea.vmem [#allocation6], %s304
        %p306 = pneg %p108
        %p307 = pneg %p105
        %p308 = pneg %p134
        %p309 = pneg %p131
        %s310 = sand.u32 %s121, 1
        %s311 = sand.u32 %s121, 1
        %s312 = smul.addr %s311, 512
        %s313 = scalar_lea.vmem [#allocation7], %s312
        %s314 = smul.u32 16, %s19
        %s315 = smul.u32 16, %s19
        %s316 = smul.u32 16, %s19
        %v318 = vld [vmem:[%s272] sm:$0xff]
        %v319 = vld [vmem:[%s272 + $0x8] sm:$0xff]
        %v320 = vld [vmem:[%s272 + $0x10] sm:$0xff]
        %v321 = vld [vmem:[%s272 + $0x18] sm:$0xff]
        %v322 = vld [vmem:[%s272 + $0x20] sm:$0xff]
        %v323 = vld [vmem:[%s272 + $0x28] sm:$0xff]
        %v324 = vld [vmem:[%s272 + $0x30] sm:$0xff]
        %v325 = vld [vmem:[%s272 + $0x38] sm:$0xff]
        %v326 = vld [vmem:[%s272 + $0x40] sm:$0xff]
        %v327 = vld [vmem:[%s272 + $0x48] sm:$0xff]
        %v328 = vld [vmem:[%s272 + $0x50] sm:$0xff]
        %v329 = vld [vmem:[%s272 + $0x58] sm:$0xff]
        %v330 = vld [vmem:[%s272 + $0x60] sm:$0xff]
        %v331 = vld [vmem:[%s272 + $0x68] sm:$0xff]
        %v332 = vld [vmem:[%s272 + $0x70] sm:$0xff]
        %v333 = vld [vmem:[%s272 + $0x78] sm:$0xff]
        %v334 = vld [vmem:[%s272 + $0x80] sm:$0xff]
        %v335 = vld [vmem:[%s272 + $0x88] sm:$0xff]
        %v336 = vld [vmem:[%s272 + $0x90] sm:$0xff]
        %v337 = vld [vmem:[%s272 + $0x98] sm:$0xff]
        %v338 = vld [vmem:[%s272 + $0xa0] sm:$0xff]
        %v339 = vld [vmem:[%s272 + $0xa8] sm:$0xff]
        %v340 = vld [vmem:[%s272 + $0xb0] sm:$0xff]
        %v341 = vld [vmem:[%s272 + $0xb8] sm:$0xff]
        %v342 = vld [vmem:[%s272 + $0xc0] sm:$0xff]
        %v343 = vld [vmem:[%s272 + $0xc8] sm:$0xff]
        %v344 = vld [vmem:[%s272 + $0xd0] sm:$0xff]
        %v345 = vld [vmem:[%s272 + $0xd8] sm:$0xff]
        %v346 = vld [vmem:[%s272 + $0xe0] sm:$0xff]
        %v347 = vld [vmem:[%s272 + $0xe8] sm:$0xff]
        %v348 = vld [vmem:[%s272 + $0xf0] sm:$0xff]
        %v349 = vld [vmem:[%s272 + $0xf8] sm:$0xff]
        %v350 = vld [vmem:[%s272 + $0x100] sm:$0xff]
        %v351 = vld [vmem:[%s272 + $0x108] sm:$0xff]
        %v352 = vld [vmem:[%s272 + $0x110] sm:$0xff]
        %v353 = vld [vmem:[%s272 + $0x118] sm:$0xff]
        %v354 = vld [vmem:[%s272 + $0x120] sm:$0xff]
        %v355 = vld [vmem:[%s272 + $0x128] sm:$0xff]
        %v356 = vld [vmem:[%s272 + $0x130] sm:$0xff]
        %v357 = vld [vmem:[%s272 + $0x138] sm:$0xff]
        %v358 = vld [vmem:[%s272 + $0x140] sm:$0xff]
        %v359 = vld [vmem:[%s272 + $0x148] sm:$0xff]
        %v360 = vld [vmem:[%s272 + $0x150] sm:$0xff]
        %v361 = vld [vmem:[%s272 + $0x158] sm:$0xff]
        %v362 = vld [vmem:[%s272 + $0x160] sm:$0xff]
        %v363 = vld [vmem:[%s272 + $0x168] sm:$0xff]
        %v364 = vld [vmem:[%s272 + $0x170] sm:$0xff]
        %v365 = vld [vmem:[%s272 + $0x178] sm:$0xff]
        %v366 = vld [vmem:[%s272 + $0x180] sm:$0xff]
        %v367 = vld [vmem:[%s272 + $0x188] sm:$0xff]
        %v368 = vld [vmem:[%s272 + $0x190] sm:$0xff]
        %v369 = vld [vmem:[%s272 + $0x198] sm:$0xff]
        %v370 = vld [vmem:[%s272 + $0x1a0] sm:$0xff]
        %v371 = vld [vmem:[%s272 + $0x1a8] sm:$0xff]
        %v372 = vld [vmem:[%s272 + $0x1b0] sm:$0xff]
        %v373 = vld [vmem:[%s272 + $0x1b8] sm:$0xff]
        %v374 = vld [vmem:[%s272 + $0x1c0] sm:$0xff]
        %v375 = vld [vmem:[%s272 + $0x1c8] sm:$0xff]
        %v376 = vld [vmem:[%s272 + $0x1d0] sm:$0xff]
        %v377 = vld [vmem:[%s272 + $0x1d8] sm:$0xff]
        %v378 = vld [vmem:[%s272 + $0x1e0] sm:$0xff]
        %v379 = vld [vmem:[%s272 + $0x1e8] sm:$0xff]
        %v380 = vld [vmem:[%s272 + $0x1f0] sm:$0xff]
        %v381 = vld [vmem:[%s272 + $0x1f8] sm:$0xff]
        %v382 = vld [vmem:[%s272 + $0x200] sm:$0xff]
        %v383 = vld [vmem:[%s272 + $0x208] sm:$0xff]
        %v384 = vld [vmem:[%s272 + $0x210] sm:$0xff]
        %v385 = vld [vmem:[%s272 + $0x218] sm:$0xff]
        %v386 = vld [vmem:[%s272 + $0x220] sm:$0xff]
        %v387 = vld [vmem:[%s272 + $0x228] sm:$0xff]
        %v388 = vld [vmem:[%s272 + $0x230] sm:$0xff]
        %v389 = vld [vmem:[%s272 + $0x238] sm:$0xff]
        %v390 = vld [vmem:[%s272 + $0x240] sm:$0xff]
        %v391 = vld [vmem:[%s272 + $0x248] sm:$0xff]
        %v392 = vld [vmem:[%s272 + $0x250] sm:$0xff]
        %v393 = vld [vmem:[%s272 + $0x258] sm:$0xff]
        %v394 = vld [vmem:[%s272 + $0x260] sm:$0xff]
        %v395 = vld [vmem:[%s272 + $0x268] sm:$0xff]
        %v396 = vld [vmem:[%s272 + $0x270] sm:$0xff]
        %v397 = vld [vmem:[%s272 + $0x278] sm:$0xff]
        %v398 = vld [vmem:[%s272 + $0x280] sm:$0xff]
        %v399 = vld [vmem:[%s272 + $0x288] sm:$0xff]
        %v400 = vld [vmem:[%s272 + $0x290] sm:$0xff]
        %v401 = vld [vmem:[%s272 + $0x298] sm:$0xff]
        %v402 = vld [vmem:[%s272 + $0x2a0] sm:$0xff]
        %v403 = vld [vmem:[%s272 + $0x2a8] sm:$0xff]
        %v404 = vld [vmem:[%s272 + $0x2b0] sm:$0xff]
        %v405 = vld [vmem:[%s272 + $0x2b8] sm:$0xff]
        %v406 = vld [vmem:[%s272 + $0x2c0] sm:$0xff]
        %v407 = vld [vmem:[%s272 + $0x2c8] sm:$0xff]
        %v408 = vld [vmem:[%s272 + $0x2d0] sm:$0xff]
        %v409 = vld [vmem:[%s272 + $0x2d8] sm:$0xff]
        %v410 = vld [vmem:[%s272 + $0x2e0] sm:$0xff]
        %v411 = vld [vmem:[%s272 + $0x2e8] sm:$0xff]
        %v412 = vld [vmem:[%s272 + $0x2f0] sm:$0xff]
        %v413 = vld [vmem:[%s272 + $0x2f8] sm:$0xff]
        %v414 = vld [vmem:[%s272 + $0x300] sm:$0xff]
        %v415 = vld [vmem:[%s272 + $0x308] sm:$0xff]
        %v416 = vld [vmem:[%s272 + $0x310] sm:$0xff]
        %v417 = vld [vmem:[%s272 + $0x318] sm:$0xff]
        %v418 = vld [vmem:[%s272 + $0x320] sm:$0xff]
        %v419 = vld [vmem:[%s272 + $0x328] sm:$0xff]
        %v420 = vld [vmem:[%s272 + $0x330] sm:$0xff]
        %v421 = vld [vmem:[%s272 + $0x338] sm:$0xff]
        %v422 = vld [vmem:[%s272 + $0x340] sm:$0xff]
        %v423 = vld [vmem:[%s272 + $0x348] sm:$0xff]
        %v424 = vld [vmem:[%s272 + $0x350] sm:$0xff]
        %v425 = vld [vmem:[%s272 + $0x358] sm:$0xff]
        %v426 = vld [vmem:[%s272 + $0x360] sm:$0xff]
        %v427 = vld [vmem:[%s272 + $0x368] sm:$0xff]
        %v428 = vld [vmem:[%s272 + $0x370] sm:$0xff]
        %v429 = vld [vmem:[%s272 + $0x378] sm:$0xff]
        %v430 = vld [vmem:[%s272 + $0x380] sm:$0xff]
        %v431 = vld [vmem:[%s272 + $0x388] sm:$0xff]
        %v432 = vld [vmem:[%s272 + $0x390] sm:$0xff]
        %v433 = vld [vmem:[%s272 + $0x398] sm:$0xff]
        %v434 = vld [vmem:[%s272 + $0x3a0] sm:$0xff]
        %v435 = vld [vmem:[%s272 + $0x3a8] sm:$0xff]
        %v436 = vld [vmem:[%s272 + $0x3b0] sm:$0xff]
        %v437 = vld [vmem:[%s272 + $0x3b8] sm:$0xff]
        %v438 = vld [vmem:[%s272 + $0x3c0] sm:$0xff]
        %v439 = vld [vmem:[%s272 + $0x3c8] sm:$0xff]
        %v440 = vld [vmem:[%s272 + $0x3d0] sm:$0xff]
        %v441 = vld [vmem:[%s272 + $0x3d8] sm:$0xff]
        %v442 = vld [vmem:[%s272 + $0x3e0] sm:$0xff]
        %v443 = vld [vmem:[%s272 + $0x3e8] sm:$0xff]
        %v444 = vld [vmem:[%s272 + $0x3f0] sm:$0xff]
        %v445 = vld [vmem:[%s272 + $0x3f8] sm:$0xff]
        %v446 = vld [vmem:[%s272 + $0x400] sm:$0xff]
        %v447 = vld [vmem:[%s272 + $0x408] sm:$0xff]
        %v448 = vld [vmem:[%s272 + $0x410] sm:$0xff]
        %v449 = vld [vmem:[%s272 + $0x418] sm:$0xff]
        %v450 = vld [vmem:[%s272 + $0x420] sm:$0xff]
        %v451 = vld [vmem:[%s272 + $0x428] sm:$0xff]
        %v452 = vld [vmem:[%s272 + $0x430] sm:$0xff]
        %v453 = vld [vmem:[%s272 + $0x438] sm:$0xff]
        %v454 = vld [vmem:[%s272 + $0x440] sm:$0xff]
        %v455 = vld [vmem:[%s272 + $0x448] sm:$0xff]
        %v456 = vld [vmem:[%s272 + $0x450] sm:$0xff]
        %v457 = vld [vmem:[%s272 + $0x458] sm:$0xff]
        %v458 = vld [vmem:[%s272 + $0x460] sm:$0xff]
        %v459 = vld [vmem:[%s272 + $0x468] sm:$0xff]
        %v460 = vld [vmem:[%s272 + $0x470] sm:$0xff]
        %v461 = vld [vmem:[%s272 + $0x478] sm:$0xff]
        %v462 = vld [vmem:[%s272 + $0x480] sm:$0xff]
        %v463 = vld [vmem:[%s272 + $0x488] sm:$0xff]
        %v464 = vld [vmem:[%s272 + $0x490] sm:$0xff]
        %v465 = vld [vmem:[%s272 + $0x498] sm:$0xff]
        %v466 = vld [vmem:[%s272 + $0x4a0] sm:$0xff]
        %v467 = vld [vmem:[%s272 + $0x4a8] sm:$0xff]
        %v468 = vld [vmem:[%s272 + $0x4b0] sm:$0xff]
        %v469 = vld [vmem:[%s272 + $0x4b8] sm:$0xff]
        %v470 = vld [vmem:[%s272 + $0x4c0] sm:$0xff]
        %v471 = vld [vmem:[%s272 + $0x4c8] sm:$0xff]
        %v472 = vld [vmem:[%s272 + $0x4d0] sm:$0xff]
        %v473 = vld [vmem:[%s272 + $0x4d8] sm:$0xff]
        %v474 = vld [vmem:[%s272 + $0x4e0] sm:$0xff]
        %v475 = vld [vmem:[%s272 + $0x4e8] sm:$0xff]
        %v476 = vld [vmem:[%s272 + $0x4f0] sm:$0xff]
        %v477 = vld [vmem:[%s272 + $0x4f8] sm:$0xff]
        %v478 = vld [vmem:[%s272 + $0x500] sm:$0xff]
        %v479 = vld [vmem:[%s272 + $0x508] sm:$0xff]
        %v480 = vld [vmem:[%s272 + $0x510] sm:$0xff]
        %v481 = vld [vmem:[%s272 + $0x518] sm:$0xff]
        %v482 = vld [vmem:[%s272 + $0x520] sm:$0xff]
        %v483 = vld [vmem:[%s272 + $0x528] sm:$0xff]
        %v484 = vld [vmem:[%s272 + $0x530] sm:$0xff]
        %v485 = vld [vmem:[%s272 + $0x538] sm:$0xff]
        %v486 = vld [vmem:[%s272 + $0x540] sm:$0xff]
        %v487 = vld [vmem:[%s272 + $0x548] sm:$0xff]
        %v488 = vld [vmem:[%s272 + $0x550] sm:$0xff]
        %v489 = vld [vmem:[%s272 + $0x558] sm:$0xff]
        %v490 = vld [vmem:[%s272 + $0x560] sm:$0xff]
        %v491 = vld [vmem:[%s272 + $0x568] sm:$0xff]
        %v492 = vld [vmem:[%s272 + $0x570] sm:$0xff]
        %v493 = vld [vmem:[%s272 + $0x578] sm:$0xff]
        %v494 = vld [vmem:[%s272 + $0x580] sm:$0xff]
        %v495 = vld [vmem:[%s272 + $0x588] sm:$0xff]
        %v496 = vld [vmem:[%s272 + $0x590] sm:$0xff]
        %v497 = vld [vmem:[%s272 + $0x598] sm:$0xff]
        %v498 = vld [vmem:[%s272 + $0x5a0] sm:$0xff]
        %v499 = vld [vmem:[%s272 + $0x5a8] sm:$0xff]
        %v500 = vld [vmem:[%s272 + $0x5b0] sm:$0xff]
        %v501 = vld [vmem:[%s272 + $0x5b8] sm:$0xff]
        %v502 = vld [vmem:[%s272 + $0x5c0] sm:$0xff]
        %v503 = vld [vmem:[%s272 + $0x5c8] sm:$0xff]
        %v504 = vld [vmem:[%s272 + $0x5d0] sm:$0xff]
        %v505 = vld [vmem:[%s272 + $0x5d8] sm:$0xff]
        %v506 = vld [vmem:[%s272 + $0x5e0] sm:$0xff]
        %v507 = vld [vmem:[%s272 + $0x5e8] sm:$0xff]
        %v508 = vld [vmem:[%s272 + $0x5f0] sm:$0xff]
        %v509 = vld [vmem:[%s272 + $0x5f8] sm:$0xff]
        %v510 = vld [vmem:[#allocation4] sm:$0x7]
        %v512 = vlaneseq
        %v513 = vshrl.u32 %v512, 7
        %v514 = vsub.s32 0, %v513
        %v515 = vrot.slane %v510, %v514
        %v516 = vlaneseq
        %v517 = vshrl.u32 %v516, 7
        %v518 = vsub.s32 1, %v517
        %v519 = vrot.slane %v510, %v518
        %v520 = vlaneseq
        %v521 = vshrl.u32 %v520, 7
        %v522 = vsub.s32 2, %v521
        %v523 = vrot.slane %v510, %v522
        %v527 = vadd.f32 %v318, %v515
        %v528 = vadd.f32 %v319, %v519
        %v529 = vadd.f32 %v320, %v523
        %v530 = vadd.f32 %v321, %v515
        %v531 = vadd.f32 %v322, %v519
        %v532 = vadd.f32 %v323, %v523
        %v533 = vadd.f32 %v324, %v515
        %v534 = vadd.f32 %v325, %v519
        %v535 = vadd.f32 %v326, %v523
        %v536 = vadd.f32 %v327, %v515
        %v537 = vadd.f32 %v328, %v519
        %v538 = vadd.f32 %v329, %v523
        %v539 = vadd.f32 %v330, %v515
        %v540 = vadd.f32 %v331, %v519
        %v541 = vadd.f32 %v332, %v523
        %v542 = vadd.f32 %v333, %v515
        %v543 = vadd.f32 %v334, %v519
        %v544 = vadd.f32 %v335, %v523
        %v545 = vadd.f32 %v336, %v515
        %v546 = vadd.f32 %v337, %v519
        %v547 = vadd.f32 %v338, %v523
        %v548 = vadd.f32 %v339, %v515
        %v549 = vadd.f32 %v340, %v519
        %v550 = vadd.f32 %v341, %v523
        %v551 = vadd.f32 %v342, %v515
        %v552 = vadd.f32 %v343, %v519
        %v553 = vadd.f32 %v344, %v523
        %v554 = vadd.f32 %v345, %v515
        %v555 = vadd.f32 %v346, %v519
        %v556 = vadd.f32 %v347, %v523
        %v557 = vadd.f32 %v348, %v515
        %v558 = vadd.f32 %v349, %v519
        %v559 = vadd.f32 %v350, %v523
        %v560 = vadd.f32 %v351, %v515
        %v561 = vadd.f32 %v352, %v519
        %v562 = vadd.f32 %v353, %v523
        %v563 = vadd.f32 %v354, %v515
        %v564 = vadd.f32 %v355, %v519
        %v565 = vadd.f32 %v356, %v523
        %v566 = vadd.f32 %v357, %v515
        %v567 = vadd.f32 %v358, %v519
        %v568 = vadd.f32 %v359, %v523
        %v569 = vadd.f32 %v360, %v515
        %v570 = vadd.f32 %v361, %v519
        %v571 = vadd.f32 %v362, %v523
        %v572 = vadd.f32 %v363, %v515
        %v573 = vadd.f32 %v364, %v519
        %v574 = vadd.f32 %v365, %v523
        %v575 = vadd.f32 %v366, %v515
        %v576 = vadd.f32 %v367, %v519
        %v577 = vadd.f32 %v368, %v523
        %v578 = vadd.f32 %v369, %v515
        %v579 = vadd.f32 %v370, %v519
        %v580 = vadd.f32 %v371, %v523
        %v581 = vadd.f32 %v372, %v515
        %v582 = vadd.f32 %v373, %v519
        %v583 = vadd.f32 %v374, %v523
        %v584 = vadd.f32 %v375, %v515
        %v585 = vadd.f32 %v376, %v519
        %v586 = vadd.f32 %v377, %v523
        %v587 = vadd.f32 %v378, %v515
        %v588 = vadd.f32 %v379, %v519
        %v589 = vadd.f32 %v380, %v523
        %v590 = vadd.f32 %v381, %v515
        %v591 = vadd.f32 %v382, %v519
        %v592 = vadd.f32 %v383, %v523
        %v593 = vadd.f32 %v384, %v515
        %v594 = vadd.f32 %v385, %v519
        %v595 = vadd.f32 %v386, %v523
        %v596 = vadd.f32 %v387, %v515
        %v597 = vadd.f32 %v388, %v519
        %v598 = vadd.f32 %v389, %v523
        %v599 = vadd.f32 %v390, %v515
        %v600 = vadd.f32 %v391, %v519
        %v601 = vadd.f32 %v392, %v523
        %v602 = vadd.f32 %v393, %v515
        %v603 = vadd.f32 %v394, %v519
        %v604 = vadd.f32 %v395, %v523
        %v605 = vadd.f32 %v396, %v515
        %v606 = vadd.f32 %v397, %v519
        %v607 = vadd.f32 %v398, %v523
        %v608 = vadd.f32 %v399, %v515
        %v609 = vadd.f32 %v400, %v519
        %v610 = vadd.f32 %v401, %v523
        %v611 = vadd.f32 %v402, %v515
        %v612 = vadd.f32 %v403, %v519
        %v613 = vadd.f32 %v404, %v523
        %v614 = vadd.f32 %v405, %v515
        %v615 = vadd.f32 %v406, %v519
        %v616 = vadd.f32 %v407, %v523
        %v617 = vadd.f32 %v408, %v515
        %v618 = vadd.f32 %v409, %v519
        %v619 = vadd.f32 %v410, %v523
        %v620 = vadd.f32 %v411, %v515
        %v621 = vadd.f32 %v412, %v519
        %v622 = vadd.f32 %v413, %v523
        %v623 = vadd.f32 %v414, %v515
        %v624 = vadd.f32 %v415, %v519
        %v625 = vadd.f32 %v416, %v523
        %v626 = vadd.f32 %v417, %v515
        %v627 = vadd.f32 %v418, %v519
        %v628 = vadd.f32 %v419, %v523
        %v629 = vadd.f32 %v420, %v515
        %v630 = vadd.f32 %v421, %v519
        %v631 = vadd.f32 %v422, %v523
        %v632 = vadd.f32 %v423, %v515
        %v633 = vadd.f32 %v424, %v519
        %v634 = vadd.f32 %v425, %v523
        %v635 = vadd.f32 %v426, %v515
        %v636 = vadd.f32 %v427, %v519
        %v637 = vadd.f32 %v428, %v523
        %v638 = vadd.f32 %v429, %v515
        %v639 = vadd.f32 %v430, %v519
        %v640 = vadd.f32 %v431, %v523
        %v641 = vadd.f32 %v432, %v515
        %v642 = vadd.f32 %v433, %v519
        %v643 = vadd.f32 %v434, %v523
        %v644 = vadd.f32 %v435, %v515
        %v645 = vadd.f32 %v436, %v519
        %v646 = vadd.f32 %v437, %v523
        %v647 = vadd.f32 %v438, %v515
        %v648 = vadd.f32 %v439, %v519
        %v649 = vadd.f32 %v440, %v523
        %v650 = vadd.f32 %v441, %v515
        %v651 = vadd.f32 %v442, %v519
        %v652 = vadd.f32 %v443, %v523
        %v653 = vadd.f32 %v444, %v515
        %v654 = vadd.f32 %v445, %v519
        %v655 = vadd.f32 %v446, %v523
        %v656 = vadd.f32 %v447, %v515
        %v657 = vadd.f32 %v448, %v519
        %v658 = vadd.f32 %v449, %v523
        %v659 = vadd.f32 %v450, %v515
        %v660 = vadd.f32 %v451, %v519
        %v661 = vadd.f32 %v452, %v523
        %v662 = vadd.f32 %v453, %v515
        %v663 = vadd.f32 %v454, %v519
        %v664 = vadd.f32 %v455, %v523
        %v665 = vadd.f32 %v456, %v515
        %v666 = vadd.f32 %v457, %v519
        %v667 = vadd.f32 %v458, %v523
        %v668 = vadd.f32 %v459, %v515
        %v669 = vadd.f32 %v460, %v519
        %v670 = vadd.f32 %v461, %v523
        %v671 = vadd.f32 %v462, %v515
        %v672 = vadd.f32 %v463, %v519
        %v673 = vadd.f32 %v464, %v523
        %v674 = vadd.f32 %v465, %v515
        %v675 = vadd.f32 %v466, %v519
        %v676 = vadd.f32 %v467, %v523
        %v677 = vadd.f32 %v468, %v515
        %v678 = vadd.f32 %v469, %v519
        %v679 = vadd.f32 %v470, %v523
        %v680 = vadd.f32 %v471, %v515
        %v681 = vadd.f32 %v472, %v519
        %v682 = vadd.f32 %v473, %v523
        %v683 = vadd.f32 %v474, %v515
        %v684 = vadd.f32 %v475, %v519
        %v685 = vadd.f32 %v476, %v523
        %v686 = vadd.f32 %v477, %v515
        %v687 = vadd.f32 %v478, %v519
        %v688 = vadd.f32 %v479, %v523
        %v689 = vadd.f32 %v480, %v515
        %v690 = vadd.f32 %v481, %v519
        %v691 = vadd.f32 %v482, %v523
        %v692 = vadd.f32 %v483, %v515
        %v693 = vadd.f32 %v484, %v519
        %v694 = vadd.f32 %v485, %v523
        %v695 = vadd.f32 %v486, %v515
        %v696 = vadd.f32 %v487, %v519
        %v697 = vadd.f32 %v488, %v523
        %v698 = vadd.f32 %v489, %v515
        %v699 = vadd.f32 %v490, %v519
        %v700 = vadd.f32 %v491, %v523
        %v701 = vadd.f32 %v492, %v515
        %v702 = vadd.f32 %v493, %v519
        %v703 = vadd.f32 %v494, %v523
        %v704 = vadd.f32 %v495, %v515
        %v705 = vadd.f32 %v496, %v519
        %v706 = vadd.f32 %v497, %v523
        %v707 = vadd.f32 %v498, %v515
        %v708 = vadd.f32 %v499, %v519
        %v709 = vadd.f32 %v500, %v523
        %v710 = vadd.f32 %v501, %v515
        %v711 = vadd.f32 %v502, %v519
        %v712 = vadd.f32 %v503, %v523
        %v713 = vadd.f32 %v504, %v515
        %v714 = vadd.f32 %v505, %v519
        %v715 = vadd.f32 %v506, %v523
        %v716 = vadd.f32 %v507, %v515
        %v717 = vadd.f32 %v508, %v519
        %v718 = vadd.f32 %v509, %v523
        %v719 = vmax.f32 %v527, %v528
        %v720 = vmax.f32 %v719, %v529
        %721 = vmax.xlane.f32.xlu0 %v720
        %v722 = vpop.xlane.xlu0 %721
        %v723 = vmax.f32 %v530, %v531
        %v724 = vmax.f32 %v723, %v532
        %725 = vmax.xlane.f32.xlu0 %v724
        %v726 = vpop.xlane.xlu0 %725
        %v727 = vmax.f32 %v533, %v534
        %v728 = vmax.f32 %v727, %v535
        %729 = vmax.xlane.f32.xlu0 %v728
        %v730 = vpop.xlane.xlu0 %729
        %v731 = vmax.f32 %v536, %v537
        %v732 = vmax.f32 %v731, %v538
        %733 = vmax.xlane.f32.xlu0 %v732
        %v734 = vpop.xlane.xlu0 %733
        %v735 = vmax.f32 %v539, %v540
        %v736 = vmax.f32 %v735, %v541
        %737 = vmax.xlane.f32.xlu0 %v736
        %v738 = vpop.xlane.xlu0 %737
        %v739 = vmax.f32 %v542, %v543
        %v740 = vmax.f32 %v739, %v544
        %741 = vmax.xlane.f32.xlu0 %v740
        %v742 = vpop.xlane.xlu0 %741
        %v743 = vmax.f32 %v545, %v546
        %v744 = vmax.f32 %v743, %v547
        %745 = vmax.xlane.f32.xlu0 %v744
        %v746 = vpop.xlane.xlu0 %745
        %v747 = vmax.f32 %v548, %v549
        %v748 = vmax.f32 %v747, %v550
        %749 = vmax.xlane.f32.xlu0 %v748
        %v750 = vpop.xlane.xlu0 %749
        %v751 = vmax.f32 %v551, %v552
        %v752 = vmax.f32 %v751, %v553
        %753 = vmax.xlane.f32.xlu0 %v752
        %v754 = vpop.xlane.xlu0 %753
        %v755 = vmax.f32 %v554, %v555
        %v756 = vmax.f32 %v755, %v556
        %757 = vmax.xlane.f32.xlu0 %v756
        %v758 = vpop.xlane.xlu0 %757
        %v759 = vmax.f32 %v557, %v558
        %v760 = vmax.f32 %v759, %v559
        %761 = vmax.xlane.f32.xlu0 %v760
        %v762 = vpop.xlane.xlu0 %761
        %v763 = vmax.f32 %v560, %v561
        %v764 = vmax.f32 %v763, %v562
        %765 = vmax.xlane.f32.xlu0 %v764
        %v766 = vpop.xlane.xlu0 %765
        %v767 = vmax.f32 %v563, %v564
        %v768 = vmax.f32 %v767, %v565
        %769 = vmax.xlane.f32.xlu0 %v768
        %v770 = vpop.xlane.xlu0 %769
        %v771 = vmax.f32 %v566, %v567
        %v772 = vmax.f32 %v771, %v568
        %773 = vmax.xlane.f32.xlu0 %v772
        %v774 = vpop.xlane.xlu0 %773
        %v775 = vmax.f32 %v569, %v570
        %v776 = vmax.f32 %v775, %v571
        %777 = vmax.xlane.f32.xlu0 %v776
        %v778 = vpop.xlane.xlu0 %777
        %v779 = vmax.f32 %v572, %v573
        %v780 = vmax.f32 %v779, %v574
        %781 = vmax.xlane.f32.xlu0 %v780
        %v782 = vpop.xlane.xlu0 %781
        %v783 = vmax.f32 %v575, %v576
        %v784 = vmax.f32 %v783, %v577
        %785 = vmax.xlane.f32.xlu0 %v784
        %v786 = vpop.xlane.xlu0 %785
        %v787 = vmax.f32 %v578, %v579
        %v788 = vmax.f32 %v787, %v580
        %789 = vmax.xlane.f32.xlu0 %v788
        %v790 = vpop.xlane.xlu0 %789
        %v791 = vmax.f32 %v581, %v582
        %v792 = vmax.f32 %v791, %v583
        %793 = vmax.xlane.f32.xlu0 %v792
        %v794 = vpop.xlane.xlu0 %793
        %v795 = vmax.f32 %v584, %v585
        %v796 = vmax.f32 %v795, %v586
        %797 = vmax.xlane.f32.xlu0 %v796
        %v798 = vpop.xlane.xlu0 %797
        %v799 = vmax.f32 %v587, %v588
        %v800 = vmax.f32 %v799, %v589
        %801 = vmax.xlane.f32.xlu0 %v800
        %v802 = vpop.xlane.xlu0 %801
        %v803 = vmax.f32 %v590, %v591
        %v804 = vmax.f32 %v803, %v592
        %805 = vmax.xlane.f32.xlu0 %v804
        %v806 = vpop.xlane.xlu0 %805
        %v807 = vmax.f32 %v593, %v594
        %v808 = vmax.f32 %v807, %v595
        %809 = vmax.xlane.f32.xlu0 %v808
        %v810 = vpop.xlane.xlu0 %809
        %v811 = vmax.f32 %v596, %v597
        %v812 = vmax.f32 %v811, %v598
        %813 = vmax.xlane.f32.xlu0 %v812
        %v814 = vpop.xlane.xlu0 %813
        %v815 = vmax.f32 %v599, %v600
        %v816 = vmax.f32 %v815, %v601
        %817 = vmax.xlane.f32.xlu0 %v816
        %v818 = vpop.xlane.xlu0 %817
        %v819 = vmax.f32 %v602, %v603
        %v820 = vmax.f32 %v819, %v604
        %821 = vmax.xlane.f32.xlu0 %v820
        %v822 = vpop.xlane.xlu0 %821
        %v823 = vmax.f32 %v605, %v606
        %v824 = vmax.f32 %v823, %v607
        %825 = vmax.xlane.f32.xlu0 %v824
        %v826 = vpop.xlane.xlu0 %825
        %v827 = vmax.f32 %v608, %v609
        %v828 = vmax.f32 %v827, %v610
        %829 = vmax.xlane.f32.xlu0 %v828
        %v830 = vpop.xlane.xlu0 %829
        %v831 = vmax.f32 %v611, %v612
        %v832 = vmax.f32 %v831, %v613
        %833 = vmax.xlane.f32.xlu0 %v832
        %v834 = vpop.xlane.xlu0 %833
        %v835 = vmax.f32 %v614, %v615
        %v836 = vmax.f32 %v835, %v616
        %837 = vmax.xlane.f32.xlu0 %v836
        %v838 = vpop.xlane.xlu0 %837
        %v839 = vmax.f32 %v617, %v618
        %v840 = vmax.f32 %v839, %v619
        %841 = vmax.xlane.f32.xlu0 %v840
        %v842 = vpop.xlane.xlu0 %841
        %v843 = vmax.f32 %v620, %v621
        %v844 = vmax.f32 %v843, %v622
        %845 = vmax.xlane.f32.xlu0 %v844
        %v846 = vpop.xlane.xlu0 %845
        %v847 = vmax.f32 %v623, %v624
        %v848 = vmax.f32 %v847, %v625
        %849 = vmax.xlane.f32.xlu0 %v848
        %v850 = vpop.xlane.xlu0 %849
        %v851 = vmax.f32 %v626, %v627
        %v852 = vmax.f32 %v851, %v628
        %853 = vmax.xlane.f32.xlu0 %v852
        %v854 = vpop.xlane.xlu0 %853
        %v855 = vmax.f32 %v629, %v630
        %v856 = vmax.f32 %v855, %v631
        %857 = vmax.xlane.f32.xlu0 %v856
        %v858 = vpop.xlane.xlu0 %857
        %v859 = vmax.f32 %v632, %v633
        %v860 = vmax.f32 %v859, %v634
        %861 = vmax.xlane.f32.xlu0 %v860
        %v862 = vpop.xlane.xlu0 %861
        %v863 = vmax.f32 %v635, %v636
        %v864 = vmax.f32 %v863, %v637
        %865 = vmax.xlane.f32.xlu0 %v864
        %v866 = vpop.xlane.xlu0 %865
        %v867 = vmax.f32 %v638, %v639
        %v868 = vmax.f32 %v867, %v640
        %869 = vmax.xlane.f32.xlu0 %v868
        %v870 = vpop.xlane.xlu0 %869
        %v871 = vmax.f32 %v641, %v642
        %v872 = vmax.f32 %v871, %v643
        %873 = vmax.xlane.f32.xlu0 %v872
        %v874 = vpop.xlane.xlu0 %873
        %v875 = vmax.f32 %v644, %v645
        %v876 = vmax.f32 %v875, %v646
        %877 = vmax.xlane.f32.xlu0 %v876
        %v878 = vpop.xlane.xlu0 %877
        %v879 = vmax.f32 %v647, %v648
        %v880 = vmax.f32 %v879, %v649
        %881 = vmax.xlane.f32.xlu0 %v880
        %v882 = vpop.xlane.xlu0 %881
        %v883 = vmax.f32 %v650, %v651
        %v884 = vmax.f32 %v883, %v652
        %885 = vmax.xlane.f32.xlu0 %v884
        %v886 = vpop.xlane.xlu0 %885
        %v887 = vmax.f32 %v653, %v654
        %v888 = vmax.f32 %v887, %v655
        %889 = vmax.xlane.f32.xlu0 %v888
        %v890 = vpop.xlane.xlu0 %889
        %v891 = vmax.f32 %v656, %v657
        %v892 = vmax.f32 %v891, %v658
        %893 = vmax.xlane.f32.xlu0 %v892
        %v894 = vpop.xlane.xlu0 %893
        %v895 = vmax.f32 %v659, %v660
        %v896 = vmax.f32 %v895, %v661
        %897 = vmax.xlane.f32.xlu0 %v896
        %v898 = vpop.xlane.xlu0 %897
        %v899 = vmax.f32 %v662, %v663
        %v900 = vmax.f32 %v899, %v664
        %901 = vmax.xlane.f32.xlu0 %v900
        %v902 = vpop.xlane.xlu0 %901
        %v903 = vmax.f32 %v665, %v666
        %v904 = vmax.f32 %v903, %v667
        %905 = vmax.xlane.f32.xlu0 %v904
        %v906 = vpop.xlane.xlu0 %905
        %v907 = vmax.f32 %v668, %v669
        %v908 = vmax.f32 %v907, %v670
        %909 = vmax.xlane.f32.xlu0 %v908
        %v910 = vpop.xlane.xlu0 %909
        %v911 = vmax.f32 %v671, %v672
        %v912 = vmax.f32 %v911, %v673
        %913 = vmax.xlane.f32.xlu0 %v912
        %v914 = vpop.xlane.xlu0 %913
        %v915 = vmax.f32 %v674, %v675
        %v916 = vmax.f32 %v915, %v676
        %917 = vmax.xlane.f32.xlu0 %v916
        %v918 = vpop.xlane.xlu0 %917
        %v919 = vmax.f32 %v677, %v678
        %v920 = vmax.f32 %v919, %v679
        %921 = vmax.xlane.f32.xlu0 %v920
        %v922 = vpop.xlane.xlu0 %921
        %v923 = vmax.f32 %v680, %v681
        %v924 = vmax.f32 %v923, %v682
        %925 = vmax.xlane.f32.xlu0 %v924
        %v926 = vpop.xlane.xlu0 %925
        %v927 = vmax.f32 %v683, %v684
        %v928 = vmax.f32 %v927, %v685
        %929 = vmax.xlane.f32.xlu0 %v928
        %v930 = vpop.xlane.xlu0 %929
        %v931 = vmax.f32 %v686, %v687
        %v932 = vmax.f32 %v931, %v688
        %933 = vmax.xlane.f32.xlu0 %v932
        %v934 = vpop.xlane.xlu0 %933
        %v935 = vmax.f32 %v689, %v690
        %v936 = vmax.f32 %v935, %v691
        %937 = vmax.xlane.f32.xlu0 %v936
        %v938 = vpop.xlane.xlu0 %937
        %v939 = vmax.f32 %v692, %v693
        %v940 = vmax.f32 %v939, %v694
        %941 = vmax.xlane.f32.xlu0 %v940
        %v942 = vpop.xlane.xlu0 %941
        %v943 = vmax.f32 %v695, %v696
        %v944 = vmax.f32 %v943, %v697
        %945 = vmax.xlane.f32.xlu0 %v944
        %v946 = vpop.xlane.xlu0 %945
        %v947 = vmax.f32 %v698, %v699
        %v948 = vmax.f32 %v947, %v700
        %949 = vmax.xlane.f32.xlu0 %v948
        %v950 = vpop.xlane.xlu0 %949
        %v951 = vmax.f32 %v701, %v702
        %v952 = vmax.f32 %v951, %v703
        %953 = vmax.xlane.f32.xlu0 %v952
        %v954 = vpop.xlane.xlu0 %953
        %v955 = vmax.f32 %v704, %v705
        %v956 = vmax.f32 %v955, %v706
        %957 = vmax.xlane.f32.xlu0 %v956
        %v958 = vpop.xlane.xlu0 %957
        %v959 = vmax.f32 %v707, %v708
        %v960 = vmax.f32 %v959, %v709
        %961 = vmax.xlane.f32.xlu0 %v960
        %v962 = vpop.xlane.xlu0 %961
        %v963 = vmax.f32 %v710, %v711
        %v964 = vmax.f32 %v963, %v712
        %965 = vmax.xlane.f32.xlu0 %v964
        %v966 = vpop.xlane.xlu0 %965
        %v967 = vmax.f32 %v713, %v714
        %v968 = vmax.f32 %v967, %v715
        %969 = vmax.xlane.f32.xlu0 %v968
        %v970 = vpop.xlane.xlu0 %969
        %v971 = vmax.f32 %v716, %v717
        %v972 = vmax.f32 %v971, %v718
        %973 = vmax.xlane.f32.xlu0 %v972
        %v974 = vpop.xlane.xlu0 %973
        %v975 = vsub.f32 %v527, %v722
        %v976 = vsub.f32 %v528, %v722
        %v977 = vsub.f32 %v529, %v722
        %v978 = vsub.f32 %v530, %v726
        %v979 = vsub.f32 %v531, %v726
        %v980 = vsub.f32 %v532, %v726
        %v981 = vsub.f32 %v533, %v730
        %v982 = vsub.f32 %v534, %v730
        %v983 = vsub.f32 %v535, %v730
        %v984 = vsub.f32 %v536, %v734
        %v985 = vsub.f32 %v537, %v734
        %v986 = vsub.f32 %v538, %v734
        %v987 = vsub.f32 %v539, %v738
        %v988 = vsub.f32 %v540, %v738
        %v989 = vsub.f32 %v541, %v738
        %v990 = vsub.f32 %v542, %v742
        %v991 = vsub.f32 %v543, %v742
        %v992 = vsub.f32 %v544, %v742
        %v993 = vsub.f32 %v545, %v746
        %v994 = vsub.f32 %v546, %v746
        %v995 = vsub.f32 %v547, %v746
        %v996 = vsub.f32 %v548, %v750
        %v997 = vsub.f32 %v549, %v750
        %v998 = vsub.f32 %v550, %v750
        %v999 = vsub.f32 %v551, %v754
        %v1000 = vsub.f32 %v552, %v754
        %v1001 = vsub.f32 %v553, %v754
        %v1002 = vsub.f32 %v554, %v758
        %v1003 = vsub.f32 %v555, %v758
        %v1004 = vsub.f32 %v556, %v758
        %v1005 = vsub.f32 %v557, %v762
        %v1006 = vsub.f32 %v558, %v762
        %v1007 = vsub.f32 %v559, %v762
        %v1008 = vsub.f32 %v560, %v766
        %v1009 = vsub.f32 %v561, %v766
        %v1010 = vsub.f32 %v562, %v766
        %v1011 = vsub.f32 %v563, %v770
        %v1012 = vsub.f32 %v564, %v770
        %v1013 = vsub.f32 %v565, %v770
        %v1014 = vsub.f32 %v566, %v774
        %v1015 = vsub.f32 %v567, %v774
        %v1016 = vsub.f32 %v568, %v774
        %v1017 = vsub.f32 %v569, %v778
        %v1018 = vsub.f32 %v570, %v778
        %v1019 = vsub.f32 %v571, %v778
        %v1020 = vsub.f32 %v572, %v782
        %v1021 = vsub.f32 %v573, %v782
        %v1022 = vsub.f32 %v574, %v782
        %v1023 = vsub.f32 %v575, %v786
        %v1024 = vsub.f32 %v576, %v786
        %v1025 = vsub.f32 %v577, %v786
        %v1026 = vsub.f32 %v578, %v790
        %v1027 = vsub.f32 %v579, %v790
        %v1028 = vsub.f32 %v580, %v790
        %v1029 = vsub.f32 %v581, %v794
        %v1030 = vsub.f32 %v582, %v794
        %v1031 = vsub.f32 %v583, %v794
        %v1032 = vsub.f32 %v584, %v798
        %v1033 = vsub.f32 %v585, %v798
        %v1034 = vsub.f32 %v586, %v798
        %v1035 = vsub.f32 %v587, %v802
        %v1036 = vsub.f32 %v588, %v802
        %v1037 = vsub.f32 %v589, %v802
        %v1038 = vsub.f32 %v590, %v806
        %v1039 = vsub.f32 %v591, %v806
        %v1040 = vsub.f32 %v592, %v806
        %v1041 = vsub.f32 %v593, %v810
        %v1042 = vsub.f32 %v594, %v810
        %v1043 = vsub.f32 %v595, %v810
        %v1044 = vsub.f32 %v596, %v814
        %v1045 = vsub.f32 %v597, %v814
        %v1046 = vsub.f32 %v598, %v814
        %v1047 = vsub.f32 %v599, %v818
        %v1048 = vsub.f32 %v600, %v818
        %v1049 = vsub.f32 %v601, %v818
        %v1050 = vsub.f32 %v602, %v822
        %v1051 = vsub.f32 %v603, %v822
        %v1052 = vsub.f32 %v604, %v822
        %v1053 = vsub.f32 %v605, %v826
        %v1054 = vsub.f32 %v606, %v826
        %v1055 = vsub.f32 %v607, %v826
        %v1056 = vsub.f32 %v608, %v830
        %v1057 = vsub.f32 %v609, %v830
        %v1058 = vsub.f32 %v610, %v830
        %v1059 = vsub.f32 %v611, %v834
        %v1060 = vsub.f32 %v612, %v834
        %v1061 = vsub.f32 %v613, %v834
        %v1062 = vsub.f32 %v614, %v838
        %v1063 = vsub.f32 %v615, %v838
        %v1064 = vsub.f32 %v616, %v838
        %v1065 = vsub.f32 %v617, %v842
        %v1066 = vsub.f32 %v618, %v842
        %v1067 = vsub.f32 %v619, %v842
        %v1068 = vsub.f32 %v620, %v846
        %v1069 = vsub.f32 %v621, %v846
        %v1070 = vsub.f32 %v622, %v846
        %v1071 = vsub.f32 %v623, %v850
        %v1072 = vsub.f32 %v624, %v850
        %v1073 = vsub.f32 %v625, %v850
        %v1074 = vsub.f32 %v626, %v854
        %v1075 = vsub.f32 %v627, %v854
        %v1076 = vsub.f32 %v628, %v854
        %v1077 = vsub.f32 %v629, %v858
        %v1078 = vsub.f32 %v630, %v858
        %v1079 = vsub.f32 %v631, %v858
        %v1080 = vsub.f32 %v632, %v862
        %v1081 = vsub.f32 %v633, %v862
        %v1082 = vsub.f32 %v634, %v862
        %v1083 = vsub.f32 %v635, %v866
        %v1084 = vsub.f32 %v636, %v866
        %v1085 = vsub.f32 %v637, %v866
        %v1086 = vsub.f32 %v638, %v870
        %v1087 = vsub.f32 %v639, %v870
        %v1088 = vsub.f32 %v640, %v870
        %v1089 = vsub.f32 %v641, %v874
        %v1090 = vsub.f32 %v642, %v874
        %v1091 = vsub.f32 %v643, %v874
        %v1092 = vsub.f32 %v644, %v878
        %v1093 = vsub.f32 %v645, %v878
        %v1094 = vsub.f32 %v646, %v878
        %v1095 = vsub.f32 %v647, %v882
        %v1096 = vsub.f32 %v648, %v882
        %v1097 = vsub.f32 %v649, %v882
        %v1098 = vsub.f32 %v650, %v886
        %v1099 = vsub.f32 %v651, %v886
        %v1100 = vsub.f32 %v652, %v886
        %v1101 = vsub.f32 %v653, %v890
        %v1102 = vsub.f32 %v654, %v890
        %v1103 = vsub.f32 %v655, %v890
        %v1104 = vsub.f32 %v656, %v894
        %v1105 = vsub.f32 %v657, %v894
        %v1106 = vsub.f32 %v658, %v894
        %v1107 = vsub.f32 %v659, %v898
        %v1108 = vsub.f32 %v660, %v898
        %v1109 = vsub.f32 %v661, %v898
        %v1110 = vsub.f32 %v662, %v902
        %v1111 = vsub.f32 %v663, %v902
        %v1112 = vsub.f32 %v664, %v902
        %v1113 = vsub.f32 %v665, %v906
        %v1114 = vsub.f32 %v666, %v906
        %v1115 = vsub.f32 %v667, %v906
        %v1116 = vsub.f32 %v668, %v910
        %v1117 = vsub.f32 %v669, %v910
        %v1118 = vsub.f32 %v670, %v910
        %v1119 = vsub.f32 %v671, %v914
        %v1120 = vsub.f32 %v672, %v914
        %v1121 = vsub.f32 %v673, %v914
        %v1122 = vsub.f32 %v674, %v918
        %v1123 = vsub.f32 %v675, %v918
        %v1124 = vsub.f32 %v676, %v918
        %v1125 = vsub.f32 %v677, %v922
        %v1126 = vsub.f32 %v678, %v922
        %v1127 = vsub.f32 %v679, %v922
        %v1128 = vsub.f32 %v680, %v926
        %v1129 = vsub.f32 %v681, %v926
        %v1130 = vsub.f32 %v682, %v926
        %v1131 = vsub.f32 %v683, %v930
        %v1132 = vsub.f32 %v684, %v930
        %v1133 = vsub.f32 %v685, %v930
        %v1134 = vsub.f32 %v686, %v934
        %v1135 = vsub.f32 %v687, %v934
        %v1136 = vsub.f32 %v688, %v934
        %v1137 = vsub.f32 %v689, %v938
        %v1138 = vsub.f32 %v690, %v938
        %v1139 = vsub.f32 %v691, %v938
        %v1140 = vsub.f32 %v692, %v942
        %v1141 = vsub.f32 %v693, %v942
        %v1142 = vsub.f32 %v694, %v942
        %v1143 = vsub.f32 %v695, %v946
        %v1144 = vsub.f32 %v696, %v946
        %v1145 = vsub.f32 %v697, %v946
        %v1146 = vsub.f32 %v698, %v950
        %v1147 = vsub.f32 %v699, %v950
        %v1148 = vsub.f32 %v700, %v950
        %v1149 = vsub.f32 %v701, %v954
        %v1150 = vsub.f32 %v702, %v954
        %v1151 = vsub.f32 %v703, %v954
        %v1152 = vsub.f32 %v704, %v958
        %v1153 = vsub.f32 %v705, %v958
        %v1154 = vsub.f32 %v706, %v958
        %v1155 = vsub.f32 %v707, %v962
        %v1156 = vsub.f32 %v708, %v962
        %v1157 = vsub.f32 %v709, %v962
        %v1158 = vsub.f32 %v710, %v966
        %v1159 = vsub.f32 %v711, %v966
        %v1160 = vsub.f32 %v712, %v966
        %v1161 = vsub.f32 %v713, %v970
        %v1162 = vsub.f32 %v714, %v970
        %v1163 = vsub.f32 %v715, %v970
        %v1164 = vsub.f32 %v716, %v974
        %v1165 = vsub.f32 %v717, %v974
        %v1166 = vsub.f32 %v718, %v974
        %v1167 = vmul.f32 %v975, 1.442695
        %v1168 = vpow.pop %v1167
        %v1169 = vmul.f32 %v976, 1.442695
        %v1170 = vpow.pop %v1169
        %v1171 = vmul.f32 %v977, 1.442695
        %v1172 = vpow.pop %v1171
        %v1173 = vmul.f32 %v978, 1.442695
        %v1174 = vpow.pop %v1173
        %v1175 = vmul.f32 %v979, 1.442695
        %v1176 = vpow.pop %v1175
        %v1177 = vmul.f32 %v980, 1.442695
        %v1178 = vpow.pop %v1177
        %v1179 = vmul.f32 %v981, 1.442695
        %v1180 = vpow.pop %v1179
        %v1181 = vmul.f32 %v982, 1.442695
        %v1182 = vpow.pop %v1181
        %v1183 = vmul.f32 %v983, 1.442695
        %v1184 = vpow.pop %v1183
        %v1185 = vmul.f32 %v984, 1.442695
        %v1186 = vpow.pop %v1185
        %v1187 = vmul.f32 %v985, 1.442695
        %v1188 = vpow.pop %v1187
        %v1189 = vmul.f32 %v986, 1.442695
        %v1190 = vpow.pop %v1189
        %v1191 = vmul.f32 %v987, 1.442695
        %v1192 = vpow.pop %v1191
        %v1193 = vmul.f32 %v988, 1.442695
        %v1194 = vpow.pop %v1193
        %v1195 = vmul.f32 %v989, 1.442695
        %v1196 = vpow.pop %v1195
        %v1197 = vmul.f32 %v990, 1.442695
        %v1198 = vpow.pop %v1197
        %v1199 = vmul.f32 %v991, 1.442695
        %v1200 = vpow.pop %v1199
        %v1201 = vmul.f32 %v992, 1.442695
        %v1202 = vpow.pop %v1201
        %v1203 = vmul.f32 %v993, 1.442695
        %v1204 = vpow.pop %v1203
        %v1205 = vmul.f32 %v994, 1.442695
        %v1206 = vpow.pop %v1205
        %v1207 = vmul.f32 %v995, 1.442695
        %v1208 = vpow.pop %v1207
        %v1209 = vmul.f32 %v996, 1.442695
        %v1210 = vpow.pop %v1209
        %v1211 = vmul.f32 %v997, 1.442695
        %v1212 = vpow.pop %v1211
        %v1213 = vmul.f32 %v998, 1.442695
        %v1214 = vpow.pop %v1213
        %v1215 = vmul.f32 %v999, 1.442695
        %v1216 = vpow.pop %v1215
        %v1217 = vmul.f32 %v1000, 1.442695
        %v1218 = vpow.pop %v1217
        %v1219 = vmul.f32 %v1001, 1.442695
        %v1220 = vpow.pop %v1219
        %v1221 = vmul.f32 %v1002, 1.442695
        %v1222 = vpow.pop %v1221
        %v1223 = vmul.f32 %v1003, 1.442695
        %v1224 = vpow.pop %v1223
        %v1225 = vmul.f32 %v1004, 1.442695
        %v1226 = vpow.pop %v1225
        %v1227 = vmul.f32 %v1005, 1.442695
        %v1228 = vpow.pop %v1227
        %v1229 = vmul.f32 %v1006, 1.442695
        %v1230 = vpow.pop %v1229
        %v1231 = vmul.f32 %v1007, 1.442695
        %v1232 = vpow.pop %v1231
        %v1233 = vmul.f32 %v1008, 1.442695
        %v1234 = vpow.pop %v1233
        %v1235 = vmul.f32 %v1009, 1.442695
        %v1236 = vpow.pop %v1235
        %v1237 = vmul.f32 %v1010, 1.442695
        %v1238 = vpow.pop %v1237
        %v1239 = vmul.f32 %v1011, 1.442695
        %v1240 = vpow.pop %v1239
        %v1241 = vmul.f32 %v1012, 1.442695
        %v1242 = vpow.pop %v1241
        %v1243 = vmul.f32 %v1013, 1.442695
        %v1244 = vpow.pop %v1243
        %v1245 = vmul.f32 %v1014, 1.442695
        %v1246 = vpow.pop %v1245
        %v1247 = vmul.f32 %v1015, 1.442695
        %v1248 = vpow.pop %v1247
        %v1249 = vmul.f32 %v1016, 1.442695
        %v1250 = vpow.pop %v1249
        %v1251 = vmul.f32 %v1017, 1.442695
        %v1252 = vpow.pop %v1251
        %v1253 = vmul.f32 %v1018, 1.442695
        %v1254 = vpow.pop %v1253
        %v1255 = vmul.f32 %v1019, 1.442695
        %v1256 = vpow.pop %v1255
        %v1257 = vmul.f32 %v1020, 1.442695
        %v1258 = vpow.pop %v1257
        %v1259 = vmul.f32 %v1021, 1.442695
        %v1260 = vpow.pop %v1259
        %v1261 = vmul.f32 %v1022, 1.442695
        %v1262 = vpow.pop %v1261
        %v1263 = vmul.f32 %v1023, 1.442695
        %v1264 = vpow.pop %v1263
        %v1265 = vmul.f32 %v1024, 1.442695
        %v1266 = vpow.pop %v1265
        %v1267 = vmul.f32 %v1025, 1.442695
        %v1268 = vpow.pop %v1267
        %v1269 = vmul.f32 %v1026, 1.442695
        %v1270 = vpow.pop %v1269
        %v1271 = vmul.f32 %v1027, 1.442695
        %v1272 = vpow.pop %v1271
        %v1273 = vmul.f32 %v1028, 1.442695
        %v1274 = vpow.pop %v1273
        %v1275 = vmul.f32 %v1029, 1.442695
        %v1276 = vpow.pop %v1275
        %v1277 = vmul.f32 %v1030, 1.442695
        %v1278 = vpow.pop %v1277
        %v1279 = vmul.f32 %v1031, 1.442695
        %v1280 = vpow.pop %v1279
        %v1281 = vmul.f32 %v1032, 1.442695
        %v1282 = vpow.pop %v1281
        %v1283 = vmul.f32 %v1033, 1.442695
        %v1284 = vpow.pop %v1283
        %v1285 = vmul.f32 %v1034, 1.442695
        %v1286 = vpow.pop %v1285
        %v1287 = vmul.f32 %v1035, 1.442695
        %v1288 = vpow.pop %v1287
        %v1289 = vmul.f32 %v1036, 1.442695
        %v1290 = vpow.pop %v1289
        %v1291 = vmul.f32 %v1037, 1.442695
        %v1292 = vpow.pop %v1291
        %v1293 = vmul.f32 %v1038, 1.442695
        %v1294 = vpow.pop %v1293
        %v1295 = vmul.f32 %v1039, 1.442695
        %v1296 = vpow.pop %v1295
        %v1297 = vmul.f32 %v1040, 1.442695
        %v1298 = vpow.pop %v1297
        %v1299 = vmul.f32 %v1041, 1.442695
        %v1300 = vpow.pop %v1299
        %v1301 = vmul.f32 %v1042, 1.442695
        %v1302 = vpow.pop %v1301
        %v1303 = vmul.f32 %v1043, 1.442695
        %v1304 = vpow.pop %v1303
        %v1305 = vmul.f32 %v1044, 1.442695
        %v1306 = vpow.pop %v1305
        %v1307 = vmul.f32 %v1045, 1.442695
        %v1308 = vpow.pop %v1307
        %v1309 = vmul.f32 %v1046, 1.442695
        %v1310 = vpow.pop %v1309
        %v1311 = vmul.f32 %v1047, 1.442695
        %v1312 = vpow.pop %v1311
        %v1313 = vmul.f32 %v1048, 1.442695
        %v1314 = vpow.pop %v1313
        %v1315 = vmul.f32 %v1049, 1.442695
        %v1316 = vpow.pop %v1315
        %v1317 = vmul.f32 %v1050, 1.442695
        %v1318 = vpow.pop %v1317
        %v1319 = vmul.f32 %v1051, 1.442695
        %v1320 = vpow.pop %v1319
        %v1321 = vmul.f32 %v1052, 1.442695
        %v1322 = vpow.pop %v1321
        %v1323 = vmul.f32 %v1053, 1.442695
        %v1324 = vpow.pop %v1323
        %v1325 = vmul.f32 %v1054, 1.442695
        %v1326 = vpow.pop %v1325
        %v1327 = vmul.f32 %v1055, 1.442695
        %v1328 = vpow.pop %v1327
        %v1329 = vmul.f32 %v1056, 1.442695
        %v1330 = vpow.pop %v1329
        %v1331 = vmul.f32 %v1057, 1.442695
        %v1332 = vpow.pop %v1331
        %v1333 = vmul.f32 %v1058, 1.442695
        %v1334 = vpow.pop %v1333
        %v1335 = vmul.f32 %v1059, 1.442695
        %v1336 = vpow.pop %v1335
        %v1337 = vmul.f32 %v1060, 1.442695
        %v1338 = vpow.pop %v1337
        %v1339 = vmul.f32 %v1061, 1.442695
        %v1340 = vpow.pop %v1339
        %v1341 = vmul.f32 %v1062, 1.442695
        %v1342 = vpow.pop %v1341
        %v1343 = vmul.f32 %v1063, 1.442695
        %v1344 = vpow.pop %v1343
        %v1345 = vmul.f32 %v1064, 1.442695
        %v1346 = vpow.pop %v1345
        %v1347 = vmul.f32 %v1065, 1.442695
        %v1348 = vpow.pop %v1347
        %v1349 = vmul.f32 %v1066, 1.442695
        %v1350 = vpow.pop %v1349
        %v1351 = vmul.f32 %v1067, 1.442695
        %v1352 = vpow.pop %v1351
        %v1353 = vmul.f32 %v1068, 1.442695
        %v1354 = vpow.pop %v1353
        %v1355 = vmul.f32 %v1069, 1.442695
        %v1356 = vpow.pop %v1355
        %v1357 = vmul.f32 %v1070, 1.442695
        %v1358 = vpow.pop %v1357
        %v1359 = vmul.f32 %v1071, 1.442695
        %v1360 = vpow.pop %v1359
        %v1361 = vmul.f32 %v1072, 1.442695
        %v1362 = vpow.pop %v1361
        %v1363 = vmul.f32 %v1073, 1.442695
        %v1364 = vpow.pop %v1363
        %v1365 = vmul.f32 %v1074, 1.442695
        %v1366 = vpow.pop %v1365
        %v1367 = vmul.f32 %v1075, 1.442695
        %v1368 = vpow.pop %v1367
        %v1369 = vmul.f32 %v1076, 1.442695
        %v1370 = vpow.pop %v1369
        %v1371 = vmul.f32 %v1077, 1.442695
        %v1372 = vpow.pop %v1371
        %v1373 = vmul.f32 %v1078, 1.442695
        %v1374 = vpow.pop %v1373
        %v1375 = vmul.f32 %v1079, 1.442695
        %v1376 = vpow.pop %v1375
        %v1377 = vmul.f32 %v1080, 1.442695
        %v1378 = vpow.pop %v1377
        %v1379 = vmul.f32 %v1081, 1.442695
        %v1380 = vpow.pop %v1379
        %v1381 = vmul.f32 %v1082, 1.442695
        %v1382 = vpow.pop %v1381
        %v1383 = vmul.f32 %v1083, 1.442695
        %v1384 = vpow.pop %v1383
        %v1385 = vmul.f32 %v1084, 1.442695
        %v1386 = vpow.pop %v1385
        %v1387 = vmul.f32 %v1085, 1.442695
        %v1388 = vpow.pop %v1387
        %v1389 = vmul.f32 %v1086, 1.442695
        %v1390 = vpow.pop %v1389
        %v1391 = vmul.f32 %v1087, 1.442695
        %v1392 = vpow.pop %v1391
        %v1393 = vmul.f32 %v1088, 1.442695
        %v1394 = vpow.pop %v1393
        %v1395 = vmul.f32 %v1089, 1.442695
        %v1396 = vpow.pop %v1395
        %v1397 = vmul.f32 %v1090, 1.442695
        %v1398 = vpow.pop %v1397
        %v1399 = vmul.f32 %v1091, 1.442695
        %v1400 = vpow.pop %v1399
        %v1401 = vmul.f32 %v1092, 1.442695
        %v1402 = vpow.pop %v1401
        %v1403 = vmul.f32 %v1093, 1.442695
        %v1404 = vpow.pop %v1403
        %v1405 = vmul.f32 %v1094, 1.442695
        %v1406 = vpow.pop %v1405
        %v1407 = vmul.f32 %v1095, 1.442695
        %v1408 = vpow.pop %v1407
        %v1409 = vmul.f32 %v1096, 1.442695
        %v1410 = vpow.pop %v1409
        %v1411 = vmul.f32 %v1097, 1.442695
        %v1412 = vpow.pop %v1411
        %v1413 = vmul.f32 %v1098, 1.442695
        %v1414 = vpow.pop %v1413
        %v1415 = vmul.f32 %v1099, 1.442695
        %v1416 = vpow.pop %v1415
        %v1417 = vmul.f32 %v1100, 1.442695
        %v1418 = vpow.pop %v1417
        %v1419 = vmul.f32 %v1101, 1.442695
        %v1420 = vpow.pop %v1419
        %v1421 = vmul.f32 %v1102, 1.442695
        %v1422 = vpow.pop %v1421
        %v1423 = vmul.f32 %v1103, 1.442695
        %v1424 = vpow.pop %v1423
        %v1425 = vmul.f32 %v1104, 1.442695
        %v1426 = vpow.pop %v1425
        %v1427 = vmul.f32 %v1105, 1.442695
        %v1428 = vpow.pop %v1427
        %v1429 = vmul.f32 %v1106, 1.442695
        %v1430 = vpow.pop %v1429
        %v1431 = vmul.f32 %v1107, 1.442695
        %v1432 = vpow.pop %v1431
        %v1433 = vmul.f32 %v1108, 1.442695
        %v1434 = vpow.pop %v1433
        %v1435 = vmul.f32 %v1109, 1.442695
        %v1436 = vpow.pop %v1435
        %v1437 = vmul.f32 %v1110, 1.442695
        %v1438 = vpow.pop %v1437
        %v1439 = vmul.f32 %v1111, 1.442695
        %v1440 = vpow.pop %v1439
        %v1441 = vmul.f32 %v1112, 1.442695
        %v1442 = vpow.pop %v1441
        %v1443 = vmul.f32 %v1113, 1.442695
        %v1444 = vpow.pop %v1443
        %v1445 = vmul.f32 %v1114, 1.442695
        %v1446 = vpow.pop %v1445
        %v1447 = vmul.f32 %v1115, 1.442695
        %v1448 = vpow.pop %v1447
        %v1449 = vmul.f32 %v1116, 1.442695
        %v1450 = vpow.pop %v1449
        %v1451 = vmul.f32 %v1117, 1.442695
        %v1452 = vpow.pop %v1451
        %v1453 = vmul.f32 %v1118, 1.442695
        %v1454 = vpow.pop %v1453
        %v1455 = vmul.f32 %v1119, 1.442695
        %v1456 = vpow.pop %v1455
        %v1457 = vmul.f32 %v1120, 1.442695
        %v1458 = vpow.pop %v1457
        %v1459 = vmul.f32 %v1121, 1.442695
        %v1460 = vpow.pop %v1459
        %v1461 = vmul.f32 %v1122, 1.442695
        %v1462 = vpow.pop %v1461
        %v1463 = vmul.f32 %v1123, 1.442695
        %v1464 = vpow.pop %v1463
        %v1465 = vmul.f32 %v1124, 1.442695
        %v1466 = vpow.pop %v1465
        %v1467 = vmul.f32 %v1125, 1.442695
        %v1468 = vpow.pop %v1467
        %v1469 = vmul.f32 %v1126, 1.442695
        %v1470 = vpow.pop %v1469
        %v1471 = vmul.f32 %v1127, 1.442695
        %v1472 = vpow.pop %v1471
        %v1473 = vmul.f32 %v1128, 1.442695
        %v1474 = vpow.pop %v1473
        %v1475 = vmul.f32 %v1129, 1.442695
        %v1476 = vpow.pop %v1475
        %v1477 = vmul.f32 %v1130, 1.442695
        %v1478 = vpow.pop %v1477
        %v1479 = vmul.f32 %v1131, 1.442695
        %v1480 = vpow.pop %v1479
        %v1481 = vmul.f32 %v1132, 1.442695
        %v1482 = vpow.pop %v1481
        %v1483 = vmul.f32 %v1133, 1.442695
        %v1484 = vpow.pop %v1483
        %v1485 = vmul.f32 %v1134, 1.442695
        %v1486 = vpow.pop %v1485
        %v1487 = vmul.f32 %v1135, 1.442695
        %v1488 = vpow.pop %v1487
        %v1489 = vmul.f32 %v1136, 1.442695
        %v1490 = vpow.pop %v1489
        %v1491 = vmul.f32 %v1137, 1.442695
        %v1492 = vpow.pop %v1491
        %v1493 = vmul.f32 %v1138, 1.442695
        %v1494 = vpow.pop %v1493
        %v1495 = vmul.f32 %v1139, 1.442695
        %v1496 = vpow.pop %v1495
        %v1497 = vmul.f32 %v1140, 1.442695
        %v1498 = vpow.pop %v1497
        %v1499 = vmul.f32 %v1141, 1.442695
        %v1500 = vpow.pop %v1499
        %v1501 = vmul.f32 %v1142, 1.442695
        %v1502 = vpow.pop %v1501
        %v1503 = vmul.f32 %v1143, 1.442695
        %v1504 = vpow.pop %v1503
        %v1505 = vmul.f32 %v1144, 1.442695
        %v1506 = vpow.pop %v1505
        %v1507 = vmul.f32 %v1145, 1.442695
        %v1508 = vpow.pop %v1507
        %v1509 = vmul.f32 %v1146, 1.442695
        %v1510 = vpow.pop %v1509
        %v1511 = vmul.f32 %v1147, 1.442695
        %v1512 = vpow.pop %v1511
        %v1513 = vmul.f32 %v1148, 1.442695
        %v1514 = vpow.pop %v1513
        %v1515 = vmul.f32 %v1149, 1.442695
        %v1516 = vpow.pop %v1515
        %v1517 = vmul.f32 %v1150, 1.442695
        %v1518 = vpow.pop %v1517
        %v1519 = vmul.f32 %v1151, 1.442695
        %v1520 = vpow.pop %v1519
        %v1521 = vmul.f32 %v1152, 1.442695
        %v1522 = vpow.pop %v1521
        %v1523 = vmul.f32 %v1153, 1.442695
        %v1524 = vpow.pop %v1523
        %v1525 = vmul.f32 %v1154, 1.442695
        %v1526 = vpow.pop %v1525
        %v1527 = vmul.f32 %v1155, 1.442695
        %v1528 = vpow.pop %v1527
        %v1529 = vmul.f32 %v1156, 1.442695
        %v1530 = vpow.pop %v1529
        %v1531 = vmul.f32 %v1157, 1.442695
        %v1532 = vpow.pop %v1531
        %v1533 = vmul.f32 %v1158, 1.442695
        %v1534 = vpow.pop %v1533
        %v1535 = vmul.f32 %v1159, 1.442695
        %v1536 = vpow.pop %v1535
        %v1537 = vmul.f32 %v1160, 1.442695
        %v1538 = vpow.pop %v1537
        %v1539 = vmul.f32 %v1161, 1.442695
        %v1540 = vpow.pop %v1539
        %v1541 = vmul.f32 %v1162, 1.442695
        %v1542 = vpow.pop %v1541
        %v1543 = vmul.f32 %v1163, 1.442695
        %v1544 = vpow.pop %v1543
        %v1545 = vmul.f32 %v1164, 1.442695
        %v1546 = vpow.pop %v1545
        %v1547 = vmul.f32 %v1165, 1.442695
        %v1548 = vpow.pop %v1547
        %v1549 = vmul.f32 %v1166, 1.442695
        %v1550 = vpow.pop %v1549
        %v1551 = vadd.f32 %v1168, %v1170
        %v1552 = vadd.f32 %v1551, %v1172
        %1553 = vadd.xlane.f32.xlu0 %v1552
        %v1554 = vpop.xlane.xlu0 %1553
        %v1555 = vadd.f32 %v1174, %v1176
        %v1556 = vadd.f32 %v1555, %v1178
        %1557 = vadd.xlane.f32.xlu0 %v1556
        %v1558 = vpop.xlane.xlu0 %1557
        %v1559 = vadd.f32 %v1180, %v1182
        %v1560 = vadd.f32 %v1559, %v1184
        %1561 = vadd.xlane.f32.xlu0 %v1560
        %v1562 = vpop.xlane.xlu0 %1561
        %v1563 = vadd.f32 %v1186, %v1188
        %v1564 = vadd.f32 %v1563, %v1190
        %1565 = vadd.xlane.f32.xlu0 %v1564
        %v1566 = vpop.xlane.xlu0 %1565
        %v1567 = vadd.f32 %v1192, %v1194
        %v1568 = vadd.f32 %v1567, %v1196
        %1569 = vadd.xlane.f32.xlu0 %v1568
        %v1570 = vpop.xlane.xlu0 %1569
        %v1571 = vadd.f32 %v1198, %v1200
        %v1572 = vadd.f32 %v1571, %v1202
        %1573 = vadd.xlane.f32.xlu0 %v1572
        %v1574 = vpop.xlane.xlu0 %1573
        %v1575 = vadd.f32 %v1204, %v1206
        %v1576 = vadd.f32 %v1575, %v1208
        %1577 = vadd.xlane.f32.xlu0 %v1576
        %v1578 = vpop.xlane.xlu0 %1577
        %v1579 = vadd.f32 %v1210, %v1212
        %v1580 = vadd.f32 %v1579, %v1214
        %1581 = vadd.xlane.f32.xlu0 %v1580
        %v1582 = vpop.xlane.xlu0 %1581
        %v1583 = vadd.f32 %v1216, %v1218
        %v1584 = vadd.f32 %v1583, %v1220
        %1585 = vadd.xlane.f32.xlu0 %v1584
        %v1586 = vpop.xlane.xlu0 %1585
        %v1587 = vadd.f32 %v1222, %v1224
        %v1588 = vadd.f32 %v1587, %v1226
        %1589 = vadd.xlane.f32.xlu0 %v1588
        %v1590 = vpop.xlane.xlu0 %1589
        %v1591 = vadd.f32 %v1228, %v1230
        %v1592 = vadd.f32 %v1591, %v1232
        %1593 = vadd.xlane.f32.xlu0 %v1592
        %v1594 = vpop.xlane.xlu0 %1593
        %v1595 = vadd.f32 %v1234, %v1236
        %v1596 = vadd.f32 %v1595, %v1238
        %1597 = vadd.xlane.f32.xlu0 %v1596
        %v1598 = vpop.xlane.xlu0 %1597
        %v1599 = vadd.f32 %v1240, %v1242
        %v1600 = vadd.f32 %v1599, %v1244
        %1601 = vadd.xlane.f32.xlu0 %v1600
        %v1602 = vpop.xlane.xlu0 %1601
        %v1603 = vadd.f32 %v1246, %v1248
        %v1604 = vadd.f32 %v1603, %v1250
        %1605 = vadd.xlane.f32.xlu0 %v1604
        %v1606 = vpop.xlane.xlu0 %1605
        %v1607 = vadd.f32 %v1252, %v1254
        %v1608 = vadd.f32 %v1607, %v1256
        %1609 = vadd.xlane.f32.xlu0 %v1608
        %v1610 = vpop.xlane.xlu0 %1609
        %v1611 = vadd.f32 %v1258, %v1260
        %v1612 = vadd.f32 %v1611, %v1262
        %1613 = vadd.xlane.f32.xlu0 %v1612
        %v1614 = vpop.xlane.xlu0 %1613
        %v1615 = vadd.f32 %v1264, %v1266
        %v1616 = vadd.f32 %v1615, %v1268
        %1617 = vadd.xlane.f32.xlu0 %v1616
        %v1618 = vpop.xlane.xlu0 %1617
        %v1619 = vadd.f32 %v1270, %v1272
        %v1620 = vadd.f32 %v1619, %v1274
        %1621 = vadd.xlane.f32.xlu0 %v1620
        %v1622 = vpop.xlane.xlu0 %1621
        %v1623 = vadd.f32 %v1276, %v1278
        %v1624 = vadd.f32 %v1623, %v1280
        %1625 = vadd.xlane.f32.xlu0 %v1624
        %v1626 = vpop.xlane.xlu0 %1625
        %v1627 = vadd.f32 %v1282, %v1284
        %v1628 = vadd.f32 %v1627, %v1286
        %1629 = vadd.xlane.f32.xlu0 %v1628
        %v1630 = vpop.xlane.xlu0 %1629
        %v1631 = vadd.f32 %v1288, %v1290
        %v1632 = vadd.f32 %v1631, %v1292
        %1633 = vadd.xlane.f32.xlu0 %v1632
        %v1634 = vpop.xlane.xlu0 %1633
        %v1635 = vadd.f32 %v1294, %v1296
        %v1636 = vadd.f32 %v1635, %v1298
        %1637 = vadd.xlane.f32.xlu0 %v1636
        %v1638 = vpop.xlane.xlu0 %1637
        %v1639 = vadd.f32 %v1300, %v1302
        %v1640 = vadd.f32 %v1639, %v1304
        %1641 = vadd.xlane.f32.xlu0 %v1640
        %v1642 = vpop.xlane.xlu0 %1641
        %v1643 = vadd.f32 %v1306, %v1308
        %v1644 = vadd.f32 %v1643, %v1310
        %1645 = vadd.xlane.f32.xlu0 %v1644
        %v1646 = vpop.xlane.xlu0 %1645
        %v1647 = vadd.f32 %v1312, %v1314
        %v1648 = vadd.f32 %v1647, %v1316
        %1649 = vadd.xlane.f32.xlu0 %v1648
        %v1650 = vpop.xlane.xlu0 %1649
        %v1651 = vadd.f32 %v1318, %v1320
        %v1652 = vadd.f32 %v1651, %v1322
        %1653 = vadd.xlane.f32.xlu0 %v1652
        %v1654 = vpop.xlane.xlu0 %1653
        %v1655 = vadd.f32 %v1324, %v1326
        %v1656 = vadd.f32 %v1655, %v1328
        %1657 = vadd.xlane.f32.xlu0 %v1656
        %v1658 = vpop.xlane.xlu0 %1657
        %v1659 = vadd.f32 %v1330, %v1332
        %v1660 = vadd.f32 %v1659, %v1334
        %1661 = vadd.xlane.f32.xlu0 %v1660
        %v1662 = vpop.xlane.xlu0 %1661
        %v1663 = vadd.f32 %v1336, %v1338
        %v1664 = vadd.f32 %v1663, %v1340
        %1665 = vadd.xlane.f32.xlu0 %v1664
        %v1666 = vpop.xlane.xlu0 %1665
        %v1667 = vadd.f32 %v1342, %v1344
        %v1668 = vadd.f32 %v1667, %v1346
        %1669 = vadd.xlane.f32.xlu0 %v1668
        %v1670 = vpop.xlane.xlu0 %1669
        %v1671 = vadd.f32 %v1348, %v1350
        %v1672 = vadd.f32 %v1671, %v1352
        %1673 = vadd.xlane.f32.xlu0 %v1672
        %v1674 = vpop.xlane.xlu0 %1673
        %v1675 = vadd.f32 %v1354, %v1356
        %v1676 = vadd.f32 %v1675, %v1358
        %1677 = vadd.xlane.f32.xlu0 %v1676
        %v1678 = vpop.xlane.xlu0 %1677
        %v1679 = vadd.f32 %v1360, %v1362
        %v1680 = vadd.f32 %v1679, %v1364
        %1681 = vadd.xlane.f32.xlu0 %v1680
        %v1682 = vpop.xlane.xlu0 %1681
        %v1683 = vadd.f32 %v1366, %v1368
        %v1684 = vadd.f32 %v1683, %v1370
        %1685 = vadd.xlane.f32.xlu0 %v1684
        %v1686 = vpop.xlane.xlu0 %1685
        %v1687 = vadd.f32 %v1372, %v1374
        %v1688 = vadd.f32 %v1687, %v1376
        %1689 = vadd.xlane.f32.xlu0 %v1688
        %v1690 = vpop.xlane.xlu0 %1689
        %v1691 = vadd.f32 %v1378, %v1380
        %v1692 = vadd.f32 %v1691, %v1382
        %1693 = vadd.xlane.f32.xlu0 %v1692
        %v1694 = vpop.xlane.xlu0 %1693
        %v1695 = vadd.f32 %v1384, %v1386
        %v1696 = vadd.f32 %v1695, %v1388
        %1697 = vadd.xlane.f32.xlu0 %v1696
        %v1698 = vpop.xlane.xlu0 %1697
        %v1699 = vadd.f32 %v1390, %v1392
        %v1700 = vadd.f32 %v1699, %v1394
        %1701 = vadd.xlane.f32.xlu0 %v1700
        %v1702 = vpop.xlane.xlu0 %1701
        %v1703 = vadd.f32 %v1396, %v1398
        %v1704 = vadd.f32 %v1703, %v1400
        %1705 = vadd.xlane.f32.xlu0 %v1704
        %v1706 = vpop.xlane.xlu0 %1705
        %v1707 = vadd.f32 %v1402, %v1404
        %v1708 = vadd.f32 %v1707, %v1406
        %1709 = vadd.xlane.f32.xlu0 %v1708
        %v1710 = vpop.xlane.xlu0 %1709
        %v1711 = vadd.f32 %v1408, %v1410
        %v1712 = vadd.f32 %v1711, %v1412
        %1713 = vadd.xlane.f32.xlu0 %v1712
        %v1714 = vpop.xlane.xlu0 %1713
        %v1715 = vadd.f32 %v1414, %v1416
        %v1716 = vadd.f32 %v1715, %v1418
        %1717 = vadd.xlane.f32.xlu0 %v1716
        %v1718 = vpop.xlane.xlu0 %1717
        %v1719 = vadd.f32 %v1420, %v1422
        %v1720 = vadd.f32 %v1719, %v1424
        %1721 = vadd.xlane.f32.xlu0 %v1720
        %v1722 = vpop.xlane.xlu0 %1721
        %v1723 = vadd.f32 %v1426, %v1428
        %v1724 = vadd.f32 %v1723, %v1430
        %1725 = vadd.xlane.f32.xlu0 %v1724
        %v1726 = vpop.xlane.xlu0 %1725
        %v1727 = vadd.f32 %v1432, %v1434
        %v1728 = vadd.f32 %v1727, %v1436
        %1729 = vadd.xlane.f32.xlu0 %v1728
        %v1730 = vpop.xlane.xlu0 %1729
        %v1731 = vadd.f32 %v1438, %v1440
        %v1732 = vadd.f32 %v1731, %v1442
        %1733 = vadd.xlane.f32.xlu0 %v1732
        %v1734 = vpop.xlane.xlu0 %1733
        %v1735 = vadd.f32 %v1444, %v1446
        %v1736 = vadd.f32 %v1735, %v1448
        %1737 = vadd.xlane.f32.xlu0 %v1736
        %v1738 = vpop.xlane.xlu0 %1737
        %v1739 = vadd.f32 %v1450, %v1452
        %v1740 = vadd.f32 %v1739, %v1454
        %1741 = vadd.xlane.f32.xlu0 %v1740
        %v1742 = vpop.xlane.xlu0 %1741
        %v1743 = vadd.f32 %v1456, %v1458
        %v1744 = vadd.f32 %v1743, %v1460
        %1745 = vadd.xlane.f32.xlu0 %v1744
        %v1746 = vpop.xlane.xlu0 %1745
        %v1747 = vadd.f32 %v1462, %v1464
        %v1748 = vadd.f32 %v1747, %v1466
        %1749 = vadd.xlane.f32.xlu0 %v1748
        %v1750 = vpop.xlane.xlu0 %1749
        %v1751 = vadd.f32 %v1468, %v1470
        %v1752 = vadd.f32 %v1751, %v1472
        %1753 = vadd.xlane.f32.xlu0 %v1752
        %v1754 = vpop.xlane.xlu0 %1753
        %v1755 = vadd.f32 %v1474, %v1476
        %v1756 = vadd.f32 %v1755, %v1478
        %1757 = vadd.xlane.f32.xlu0 %v1756
        %v1758 = vpop.xlane.xlu0 %1757
        %v1759 = vadd.f32 %v1480, %v1482
        %v1760 = vadd.f32 %v1759, %v1484
        %1761 = vadd.xlane.f32.xlu0 %v1760
        %v1762 = vpop.xlane.xlu0 %1761
        %v1763 = vadd.f32 %v1486, %v1488
        %v1764 = vadd.f32 %v1763, %v1490
        %1765 = vadd.xlane.f32.xlu0 %v1764
        %v1766 = vpop.xlane.xlu0 %1765
        %v1767 = vadd.f32 %v1492, %v1494
        %v1768 = vadd.f32 %v1767, %v1496
        %1769 = vadd.xlane.f32.xlu0 %v1768
        %v1770 = vpop.xlane.xlu0 %1769
        %v1771 = vadd.f32 %v1498, %v1500
        %v1772 = vadd.f32 %v1771, %v1502
        %1773 = vadd.xlane.f32.xlu0 %v1772
        %v1774 = vpop.xlane.xlu0 %1773
        %v1775 = vadd.f32 %v1504, %v1506
        %v1776 = vadd.f32 %v1775, %v1508
        %1777 = vadd.xlane.f32.xlu0 %v1776
        %v1778 = vpop.xlane.xlu0 %1777
        %v1779 = vadd.f32 %v1510, %v1512
        %v1780 = vadd.f32 %v1779, %v1514
        %1781 = vadd.xlane.f32.xlu0 %v1780
        %v1782 = vpop.xlane.xlu0 %1781
        %v1783 = vadd.f32 %v1516, %v1518
        %v1784 = vadd.f32 %v1783, %v1520
        %1785 = vadd.xlane.f32.xlu0 %v1784
        %v1786 = vpop.xlane.xlu0 %1785
        %v1787 = vadd.f32 %v1522, %v1524
        %v1788 = vadd.f32 %v1787, %v1526
        %1789 = vadd.xlane.f32.xlu0 %v1788
        %v1790 = vpop.xlane.xlu0 %1789
        %v1791 = vadd.f32 %v1528, %v1530
        %v1792 = vadd.f32 %v1791, %v1532
        %1793 = vadd.xlane.f32.xlu0 %v1792
        %v1794 = vpop.xlane.xlu0 %1793
        %v1795 = vadd.f32 %v1534, %v1536
        %v1796 = vadd.f32 %v1795, %v1538
        %1797 = vadd.xlane.f32.xlu0 %v1796
        %v1798 = vpop.xlane.xlu0 %1797
        %v1799 = vadd.f32 %v1540, %v1542
        %v1800 = vadd.f32 %v1799, %v1544
        %1801 = vadd.xlane.f32.xlu0 %v1800
        %v1802 = vpop.xlane.xlu0 %1801
        %v1803 = vadd.f32 %v1546, %v1548
        %v1804 = vadd.f32 %v1803, %v1550
        %1805 = vadd.xlane.f32.xlu0 %v1804
        %v1806 = vpop.xlane.xlu0 %1805
        %v1807 = vrcp.pop %v1554
        %v1808 = vrcp.pop %v1558
        %v1809 = vrcp.pop %v1562
        %v1810 = vrcp.pop %v1566
        %v1811 = vrcp.pop %v1570
        %v1812 = vrcp.pop %v1574
        %v1813 = vrcp.pop %v1578
        %v1814 = vrcp.pop %v1582
        %v1815 = vrcp.pop %v1586
        %v1816 = vrcp.pop %v1590
        %v1817 = vrcp.pop %v1594
        %v1818 = vrcp.pop %v1598
        %v1819 = vrcp.pop %v1602
        %v1820 = vrcp.pop %v1606
        %v1821 = vrcp.pop %v1610
        %v1822 = vrcp.pop %v1614
        %v1823 = vrcp.pop %v1618
        %v1824 = vrcp.pop %v1622
        %v1825 = vrcp.pop %v1626
        %v1826 = vrcp.pop %v1630
        %v1827 = vrcp.pop %v1634
        %v1828 = vrcp.pop %v1638
        %v1829 = vrcp.pop %v1642
        %v1830 = vrcp.pop %v1646
        %v1831 = vrcp.pop %v1650
        %v1832 = vrcp.pop %v1654
        %v1833 = vrcp.pop %v1658
        %v1834 = vrcp.pop %v1662
        %v1835 = vrcp.pop %v1666
        %v1836 = vrcp.pop %v1670
        %v1837 = vrcp.pop %v1674
        %v1838 = vrcp.pop %v1678
        %v1839 = vrcp.pop %v1682
        %v1840 = vrcp.pop %v1686
        %v1841 = vrcp.pop %v1690
        %v1842 = vrcp.pop %v1694
        %v1843 = vrcp.pop %v1698
        %v1844 = vrcp.pop %v1702
        %v1845 = vrcp.pop %v1706
        %v1846 = vrcp.pop %v1710
        %v1847 = vrcp.pop %v1714
        %v1848 = vrcp.pop %v1718
        %v1849 = vrcp.pop %v1722
        %v1850 = vrcp.pop %v1726
        %v1851 = vrcp.pop %v1730
        %v1852 = vrcp.pop %v1734
        %v1853 = vrcp.pop %v1738
        %v1854 = vrcp.pop %v1742
        %v1855 = vrcp.pop %v1746
        %v1856 = vrcp.pop %v1750
        %v1857 = vrcp.pop %v1754
        %v1858 = vrcp.pop %v1758
        %v1859 = vrcp.pop %v1762
        %v1860 = vrcp.pop %v1766
        %v1861 = vrcp.pop %v1770
        %v1862 = vrcp.pop %v1774
        %v1863 = vrcp.pop %v1778
        %v1864 = vrcp.pop %v1782
        %v1865 = vrcp.pop %v1786
        %v1866 = vrcp.pop %v1790
        %v1867 = vrcp.pop %v1794
        %v1868 = vrcp.pop %v1798
        %v1869 = vrcp.pop %v1802
        %v1870 = vrcp.pop %v1806
        %v1871 = vmul.f32 %v1807, 1.1111112
        %v1872 = vmul.f32 %v1808, 1.1111112
        %v1873 = vmul.f32 %v1809, 1.1111112
        %v1874 = vmul.f32 %v1810, 1.1111112
        %v1875 = vmul.f32 %v1811, 1.1111112
        %v1876 = vmul.f32 %v1812, 1.1111112
        %v1877 = vmul.f32 %v1813, 1.1111112
        %v1878 = vmul.f32 %v1814, 1.1111112
        %v1879 = vmul.f32 %v1815, 1.1111112
        %v1880 = vmul.f32 %v1816, 1.1111112
        %v1881 = vmul.f32 %v1817, 1.1111112
        %v1882 = vmul.f32 %v1818, 1.1111112
        %v1883 = vmul.f32 %v1819, 1.1111112
        %v1884 = vmul.f32 %v1820, 1.1111112
        %v1885 = vmul.f32 %v1821, 1.1111112
        %v1886 = vmul.f32 %v1822, 1.1111112
        %v1887 = vmul.f32 %v1823, 1.1111112
        %v1888 = vmul.f32 %v1824, 1.1111112
        %v1889 = vmul.f32 %v1825, 1.1111112
        %v1890 = vmul.f32 %v1826, 1.1111112
        %v1891 = vmul.f32 %v1827, 1.1111112
        %v1892 = vmul.f32 %v1828, 1.1111112
        %v1893 = vmul.f32 %v1829, 1.1111112
        %v1894 = vmul.f32 %v1830, 1.1111112
        %v1895 = vmul.f32 %v1831, 1.1111112
        %v1896 = vmul.f32 %v1832, 1.1111112
        %v1897 = vmul.f32 %v1833, 1.1111112
        %v1898 = vmul.f32 %v1834, 1.1111112
        %v1899 = vmul.f32 %v1835, 1.1111112
        %v1900 = vmul.f32 %v1836, 1.1111112
        %v1901 = vmul.f32 %v1837, 1.1111112
        %v1902 = vmul.f32 %v1838, 1.1111112
        %v1903 = vmul.f32 %v1839, 1.1111112
        %v1904 = vmul.f32 %v1840, 1.1111112
        %v1905 = vmul.f32 %v1841, 1.1111112
        %v1906 = vmul.f32 %v1842, 1.1111112
        %v1907 = vmul.f32 %v1843, 1.1111112
        %v1908 = vmul.f32 %v1844, 1.1111112
        %v1909 = vmul.f32 %v1845, 1.1111112
        %v1910 = vmul.f32 %v1846, 1.1111112
        %v1911 = vmul.f32 %v1847, 1.1111112
        %v1912 = vmul.f32 %v1848, 1.1111112
        %v1913 = vmul.f32 %v1849, 1.1111112
        %v1914 = vmul.f32 %v1850, 1.1111112
        %v1915 = vmul.f32 %v1851, 1.1111112
        %v1916 = vmul.f32 %v1852, 1.1111112
        %v1917 = vmul.f32 %v1853, 1.1111112
        %v1918 = vmul.f32 %v1854, 1.1111112
        %v1919 = vmul.f32 %v1855, 1.1111112
        %v1920 = vmul.f32 %v1856, 1.1111112
        %v1921 = vmul.f32 %v1857, 1.1111112
        %v1922 = vmul.f32 %v1858, 1.1111112
        %v1923 = vmul.f32 %v1859, 1.1111112
        %v1924 = vmul.f32 %v1860, 1.1111112
        %v1925 = vmul.f32 %v1861, 1.1111112
        %v1926 = vmul.f32 %v1862, 1.1111112
        %v1927 = vmul.f32 %v1863, 1.1111112
        %v1928 = vmul.f32 %v1864, 1.1111112
        %v1929 = vmul.f32 %v1865, 1.1111112
        %v1930 = vmul.f32 %v1866, 1.1111112
        %v1931 = vmul.f32 %v1867, 1.1111112
        %v1932 = vmul.f32 %v1868, 1.1111112
        %v1933 = vmul.f32 %v1869, 1.1111112
        %v1934 = vmul.f32 %v1870, 1.1111112
        %v1935 = vld [vmem:[%s285] sm:$0xff]
        %v1936 = vld [vmem:[%s285 + $0x8] sm:$0xff]
        %v1937 = vld [vmem:[%s285 + $0x10] sm:$0xff]
        %v1938 = vld [vmem:[%s285 + $0x18] sm:$0xff]
        %v1939 = vld [vmem:[%s285 + $0x20] sm:$0xff]
        %v1940 = vld [vmem:[%s285 + $0x28] sm:$0xff]
        %v1941 = vld [vmem:[%s285 + $0x30] sm:$0xff]
        %v1942 = vld [vmem:[%s285 + $0x38] sm:$0xff]
        %v1943 = vld [vmem:[%s285 + $0x40] sm:$0xff]
        %v1944 = vld [vmem:[%s285 + $0x48] sm:$0xff]
        %v1945 = vld [vmem:[%s285 + $0x50] sm:$0xff]
        %v1946 = vld [vmem:[%s285 + $0x58] sm:$0xff]
        %v1947 = vld [vmem:[%s285 + $0x60] sm:$0xff]
        %v1948 = vld [vmem:[%s285 + $0x68] sm:$0xff]
        %v1949 = vld [vmem:[%s285 + $0x70] sm:$0xff]
        %v1950 = vld [vmem:[%s285 + $0x78] sm:$0xff]
        %v1951 = vld [vmem:[%s285 + $0x80] sm:$0xff]
        %v1952 = vld [vmem:[%s285 + $0x88] sm:$0xff]
        %v1953 = vld [vmem:[%s285 + $0x90] sm:$0xff]
        %v1954 = vld [vmem:[%s285 + $0x98] sm:$0xff]
        %v1955 = vld [vmem:[%s285 + $0xa0] sm:$0xff]
        %v1956 = vld [vmem:[%s285 + $0xa8] sm:$0xff]
        %v1957 = vld [vmem:[%s285 + $0xb0] sm:$0xff]
        %v1958 = vld [vmem:[%s285 + $0xb8] sm:$0xff]
        %v1959 = vld [vmem:[%s285 + $0xc0] sm:$0xff]
        %v1960 = vld [vmem:[%s285 + $0xc8] sm:$0xff]
        %v1961 = vld [vmem:[%s285 + $0xd0] sm:$0xff]
        %v1962 = vld [vmem:[%s285 + $0xd8] sm:$0xff]
        %v1963 = vld [vmem:[%s285 + $0xe0] sm:$0xff]
        %v1964 = vld [vmem:[%s285 + $0xe8] sm:$0xff]
        %v1965 = vld [vmem:[%s285 + $0xf0] sm:$0xff]
        %v1966 = vld [vmem:[%s285 + $0xf8] sm:$0xff]
        %v1967 = vld [vmem:[%s285 + $0x100] sm:$0xff]
        %v1968 = vld [vmem:[%s285 + $0x108] sm:$0xff]
        %v1969 = vld [vmem:[%s285 + $0x110] sm:$0xff]
        %v1970 = vld [vmem:[%s285 + $0x118] sm:$0xff]
        %v1971 = vld [vmem:[%s285 + $0x120] sm:$0xff]
        %v1972 = vld [vmem:[%s285 + $0x128] sm:$0xff]
        %v1973 = vld [vmem:[%s285 + $0x130] sm:$0xff]
        %v1974 = vld [vmem:[%s285 + $0x138] sm:$0xff]
        %v1975 = vld [vmem:[%s285 + $0x140] sm:$0xff]
        %v1976 = vld [vmem:[%s285 + $0x148] sm:$0xff]
        %v1977 = vld [vmem:[%s285 + $0x150] sm:$0xff]
        %v1978 = vld [vmem:[%s285 + $0x158] sm:$0xff]
        %v1979 = vld [vmem:[%s285 + $0x160] sm:$0xff]
        %v1980 = vld [vmem:[%s285 + $0x168] sm:$0xff]
        %v1981 = vld [vmem:[%s285 + $0x170] sm:$0xff]
        %v1982 = vld [vmem:[%s285 + $0x178] sm:$0xff]
        %v1983 = vld [vmem:[%s285 + $0x180] sm:$0xff]
        %v1984 = vld [vmem:[%s285 + $0x188] sm:$0xff]
        %v1985 = vld [vmem:[%s285 + $0x190] sm:$0xff]
        %v1986 = vld [vmem:[%s285 + $0x198] sm:$0xff]
        %v1987 = vld [vmem:[%s285 + $0x1a0] sm:$0xff]
        %v1988 = vld [vmem:[%s285 + $0x1a8] sm:$0xff]
        %v1989 = vld [vmem:[%s285 + $0x1b0] sm:$0xff]
        %v1990 = vld [vmem:[%s285 + $0x1b8] sm:$0xff]
        %v1991 = vld [vmem:[%s285 + $0x1c0] sm:$0xff]
        %v1992 = vld [vmem:[%s285 + $0x1c8] sm:$0xff]
        %v1993 = vld [vmem:[%s285 + $0x1d0] sm:$0xff]
        %v1994 = vld [vmem:[%s285 + $0x1d8] sm:$0xff]
        %v1995 = vld [vmem:[%s285 + $0x1e0] sm:$0xff]
        %v1996 = vld [vmem:[%s285 + $0x1e8] sm:$0xff]
        %v1997 = vld [vmem:[%s285 + $0x1f0] sm:$0xff]
        %v1998 = vld [vmem:[%s285 + $0x1f8] sm:$0xff]
        %v1999 = vld [vmem:[%s285 + $0x200] sm:$0xff]
        %v2000 = vld [vmem:[%s285 + $0x208] sm:$0xff]
        %v2001 = vld [vmem:[%s285 + $0x210] sm:$0xff]
        %v2002 = vld [vmem:[%s285 + $0x218] sm:$0xff]
        %v2003 = vld [vmem:[%s285 + $0x220] sm:$0xff]
        %v2004 = vld [vmem:[%s285 + $0x228] sm:$0xff]
        %v2005 = vld [vmem:[%s285 + $0x230] sm:$0xff]
        %v2006 = vld [vmem:[%s285 + $0x238] sm:$0xff]
        %v2007 = vld [vmem:[%s285 + $0x240] sm:$0xff]
        %v2008 = vld [vmem:[%s285 + $0x248] sm:$0xff]
        %v2009 = vld [vmem:[%s285 + $0x250] sm:$0xff]
        %v2010 = vld [vmem:[%s285 + $0x258] sm:$0xff]
        %v2011 = vld [vmem:[%s285 + $0x260] sm:$0xff]
        %v2012 = vld [vmem:[%s285 + $0x268] sm:$0xff]
        %v2013 = vld [vmem:[%s285 + $0x270] sm:$0xff]
        %v2014 = vld [vmem:[%s285 + $0x278] sm:$0xff]
        %v2015 = vld [vmem:[%s285 + $0x280] sm:$0xff]
        %v2016 = vld [vmem:[%s285 + $0x288] sm:$0xff]
        %v2017 = vld [vmem:[%s285 + $0x290] sm:$0xff]
        %v2018 = vld [vmem:[%s285 + $0x298] sm:$0xff]
        %v2019 = vld [vmem:[%s285 + $0x2a0] sm:$0xff]
        %v2020 = vld [vmem:[%s285 + $0x2a8] sm:$0xff]
        %v2021 = vld [vmem:[%s285 + $0x2b0] sm:$0xff]
        %v2022 = vld [vmem:[%s285 + $0x2b8] sm:$0xff]
        %v2023 = vld [vmem:[%s285 + $0x2c0] sm:$0xff]
        %v2024 = vld [vmem:[%s285 + $0x2c8] sm:$0xff]
        %v2025 = vld [vmem:[%s285 + $0x2d0] sm:$0xff]
        %v2026 = vld [vmem:[%s285 + $0x2d8] sm:$0xff]
        %v2027 = vld [vmem:[%s285 + $0x2e0] sm:$0xff]
        %v2028 = vld [vmem:[%s285 + $0x2e8] sm:$0xff]
        %v2029 = vld [vmem:[%s285 + $0x2f0] sm:$0xff]
        %v2030 = vld [vmem:[%s285 + $0x2f8] sm:$0xff]
        %v2031 = vld [vmem:[%s285 + $0x300] sm:$0xff]
        %v2032 = vld [vmem:[%s285 + $0x308] sm:$0xff]
        %v2033 = vld [vmem:[%s285 + $0x310] sm:$0xff]
        %v2034 = vld [vmem:[%s285 + $0x318] sm:$0xff]
        %v2035 = vld [vmem:[%s285 + $0x320] sm:$0xff]
        %v2036 = vld [vmem:[%s285 + $0x328] sm:$0xff]
        %v2037 = vld [vmem:[%s285 + $0x330] sm:$0xff]
        %v2038 = vld [vmem:[%s285 + $0x338] sm:$0xff]
        %v2039 = vld [vmem:[%s285 + $0x340] sm:$0xff]
        %v2040 = vld [vmem:[%s285 + $0x348] sm:$0xff]
        %v2041 = vld [vmem:[%s285 + $0x350] sm:$0xff]
        %v2042 = vld [vmem:[%s285 + $0x358] sm:$0xff]
        %v2043 = vld [vmem:[%s285 + $0x360] sm:$0xff]
        %v2044 = vld [vmem:[%s285 + $0x368] sm:$0xff]
        %v2045 = vld [vmem:[%s285 + $0x370] sm:$0xff]
        %v2046 = vld [vmem:[%s285 + $0x378] sm:$0xff]
        %v2047 = vld [vmem:[%s285 + $0x380] sm:$0xff]
        %v2048 = vld [vmem:[%s285 + $0x388] sm:$0xff]
        %v2049 = vld [vmem:[%s285 + $0x390] sm:$0xff]
        %v2050 = vld [vmem:[%s285 + $0x398] sm:$0xff]
        %v2051 = vld [vmem:[%s285 + $0x3a0] sm:$0xff]
        %v2052 = vld [vmem:[%s285 + $0x3a8] sm:$0xff]
        %v2053 = vld [vmem:[%s285 + $0x3b0] sm:$0xff]
        %v2054 = vld [vmem:[%s285 + $0x3b8] sm:$0xff]
        %v2055 = vld [vmem:[%s285 + $0x3c0] sm:$0xff]
        %v2056 = vld [vmem:[%s285 + $0x3c8] sm:$0xff]
        %v2057 = vld [vmem:[%s285 + $0x3d0] sm:$0xff]
        %v2058 = vld [vmem:[%s285 + $0x3d8] sm:$0xff]
        %v2059 = vld [vmem:[%s285 + $0x3e0] sm:$0xff]
        %v2060 = vld [vmem:[%s285 + $0x3e8] sm:$0xff]
        %v2061 = vld [vmem:[%s285 + $0x3f0] sm:$0xff]
        %v2062 = vld [vmem:[%s285 + $0x3f8] sm:$0xff]
        %v2063 = vld [vmem:[%s285 + $0x400] sm:$0xff]
        %v2064 = vld [vmem:[%s285 + $0x408] sm:$0xff]
        %v2065 = vld [vmem:[%s285 + $0x410] sm:$0xff]
        %v2066 = vld [vmem:[%s285 + $0x418] sm:$0xff]
        %v2067 = vld [vmem:[%s285 + $0x420] sm:$0xff]
        %v2068 = vld [vmem:[%s285 + $0x428] sm:$0xff]
        %v2069 = vld [vmem:[%s285 + $0x430] sm:$0xff]
        %v2070 = vld [vmem:[%s285 + $0x438] sm:$0xff]
        %v2071 = vld [vmem:[%s285 + $0x440] sm:$0xff]
        %v2072 = vld [vmem:[%s285 + $0x448] sm:$0xff]
        %v2073 = vld [vmem:[%s285 + $0x450] sm:$0xff]
        %v2074 = vld [vmem:[%s285 + $0x458] sm:$0xff]
        %v2075 = vld [vmem:[%s285 + $0x460] sm:$0xff]
        %v2076 = vld [vmem:[%s285 + $0x468] sm:$0xff]
        %v2077 = vld [vmem:[%s285 + $0x470] sm:$0xff]
        %v2078 = vld [vmem:[%s285 + $0x478] sm:$0xff]
        %v2079 = vld [vmem:[%s285 + $0x480] sm:$0xff]
        %v2080 = vld [vmem:[%s285 + $0x488] sm:$0xff]
        %v2081 = vld [vmem:[%s285 + $0x490] sm:$0xff]
        %v2082 = vld [vmem:[%s285 + $0x498] sm:$0xff]
        %v2083 = vld [vmem:[%s285 + $0x4a0] sm:$0xff]
        %v2084 = vld [vmem:[%s285 + $0x4a8] sm:$0xff]
        %v2085 = vld [vmem:[%s285 + $0x4b0] sm:$0xff]
        %v2086 = vld [vmem:[%s285 + $0x4b8] sm:$0xff]
        %v2087 = vld [vmem:[%s285 + $0x4c0] sm:$0xff]
        %v2088 = vld [vmem:[%s285 + $0x4c8] sm:$0xff]
        %v2089 = vld [vmem:[%s285 + $0x4d0] sm:$0xff]
        %v2090 = vld [vmem:[%s285 + $0x4d8] sm:$0xff]
        %v2091 = vld [vmem:[%s285 + $0x4e0] sm:$0xff]
        %v2092 = vld [vmem:[%s285 + $0x4e8] sm:$0xff]
        %v2093 = vld [vmem:[%s285 + $0x4f0] sm:$0xff]
        %v2094 = vld [vmem:[%s285 + $0x4f8] sm:$0xff]
        %v2095 = vld [vmem:[%s285 + $0x500] sm:$0xff]
        %v2096 = vld [vmem:[%s285 + $0x508] sm:$0xff]
        %v2097 = vld [vmem:[%s285 + $0x510] sm:$0xff]
        %v2098 = vld [vmem:[%s285 + $0x518] sm:$0xff]
        %v2099 = vld [vmem:[%s285 + $0x520] sm:$0xff]
        %v2100 = vld [vmem:[%s285 + $0x528] sm:$0xff]
        %v2101 = vld [vmem:[%s285 + $0x530] sm:$0xff]
        %v2102 = vld [vmem:[%s285 + $0x538] sm:$0xff]
        %v2103 = vld [vmem:[%s285 + $0x540] sm:$0xff]
        %v2104 = vld [vmem:[%s285 + $0x548] sm:$0xff]
        %v2105 = vld [vmem:[%s285 + $0x550] sm:$0xff]
        %v2106 = vld [vmem:[%s285 + $0x558] sm:$0xff]
        %v2107 = vld [vmem:[%s285 + $0x560] sm:$0xff]
        %v2108 = vld [vmem:[%s285 + $0x568] sm:$0xff]
        %v2109 = vld [vmem:[%s285 + $0x570] sm:$0xff]
        %v2110 = vld [vmem:[%s285 + $0x578] sm:$0xff]
        %v2111 = vld [vmem:[%s285 + $0x580] sm:$0xff]
        %v2112 = vld [vmem:[%s285 + $0x588] sm:$0xff]
        %v2113 = vld [vmem:[%s285 + $0x590] sm:$0xff]
        %v2114 = vld [vmem:[%s285 + $0x598] sm:$0xff]
        %v2115 = vld [vmem:[%s285 + $0x5a0] sm:$0xff]
        %v2116 = vld [vmem:[%s285 + $0x5a8] sm:$0xff]
        %v2117 = vld [vmem:[%s285 + $0x5b0] sm:$0xff]
        %v2118 = vld [vmem:[%s285 + $0x5b8] sm:$0xff]
        %v2119 = vld [vmem:[%s285 + $0x5c0] sm:$0xff]
        %v2120 = vld [vmem:[%s285 + $0x5c8] sm:$0xff]
        %v2121 = vld [vmem:[%s285 + $0x5d0] sm:$0xff]
        %v2122 = vld [vmem:[%s285 + $0x5d8] sm:$0xff]
        %v2123 = vld [vmem:[%s285 + $0x5e0] sm:$0xff]
        %v2124 = vld [vmem:[%s285 + $0x5e8] sm:$0xff]
        %v2125 = vld [vmem:[%s285 + $0x5f0] sm:$0xff]
        %v2126 = vld [vmem:[%s285 + $0x5f8] sm:$0xff]
        %vm2127 = vcmp.ge.u32.totalorder %v1935, 429496730
        %vm2128 = vcmp.ge.u32.totalorder %v1936, 429496730
        %vm2129 = vcmp.ge.u32.totalorder %v1937, 429496730
        %vm2130 = vcmp.ge.u32.totalorder %v1938, 429496730
        %vm2131 = vcmp.ge.u32.totalorder %v1939, 429496730
        %vm2132 = vcmp.ge.u32.totalorder %v1940, 429496730
        %vm2133 = vcmp.ge.u32.totalorder %v1941, 429496730
        %vm2134 = vcmp.ge.u32.totalorder %v1942, 429496730
        %vm2135 = vcmp.ge.u32.totalorder %v1943, 429496730
        %vm2136 = vcmp.ge.u32.totalorder %v1944, 429496730
        %vm2137 = vcmp.ge.u32.totalorder %v1945, 429496730
        %vm2138 = vcmp.ge.u32.totalorder %v1946, 429496730
        %vm2139 = vcmp.ge.u32.totalorder %v1947, 429496730
        %vm2140 = vcmp.ge.u32.totalorder %v1948, 429496730
        %vm2141 = vcmp.ge.u32.totalorder %v1949, 429496730
        %vm2142 = vcmp.ge.u32.totalorder %v1950, 429496730
        %vm2143 = vcmp.ge.u32.totalorder %v1951, 429496730
        %vm2144 = vcmp.ge.u32.totalorder %v1952, 429496730
        %vm2145 = vcmp.ge.u32.totalorder %v1953, 429496730
        %vm2146 = vcmp.ge.u32.totalorder %v1954, 429496730
        %vm2147 = vcmp.ge.u32.totalorder %v1955, 429496730
        %vm2148 = vcmp.ge.u32.totalorder %v1956, 429496730
        %vm2149 = vcmp.ge.u32.totalorder %v1957, 429496730
        %vm2150 = vcmp.ge.u32.totalorder %v1958, 429496730
        %vm2151 = vcmp.ge.u32.totalorder %v1959, 429496730
        %vm2152 = vcmp.ge.u32.totalorder %v1960, 429496730
        %vm2153 = vcmp.ge.u32.totalorder %v1961, 429496730
        %vm2154 = vcmp.ge.u32.totalorder %v1962, 429496730
        %vm2155 = vcmp.ge.u32.totalorder %v1963, 429496730
        %vm2156 = vcmp.ge.u32.totalorder %v1964, 429496730
        %vm2157 = vcmp.ge.u32.totalorder %v1965, 429496730
        %vm2158 = vcmp.ge.u32.totalorder %v1966, 429496730
        %vm2159 = vcmp.ge.u32.totalorder %v1967, 429496730
        %vm2160 = vcmp.ge.u32.totalorder %v1968, 429496730
        %vm2161 = vcmp.ge.u32.totalorder %v1969, 429496730
        %vm2162 = vcmp.ge.u32.totalorder %v1970, 429496730
        %vm2163 = vcmp.ge.u32.totalorder %v1971, 429496730
        %vm2164 = vcmp.ge.u32.totalorder %v1972, 429496730
        %vm2165 = vcmp.ge.u32.totalorder %v1973, 429496730
        %vm2166 = vcmp.ge.u32.totalorder %v1974, 429496730
        %vm2167 = vcmp.ge.u32.totalorder %v1975, 429496730
        %vm2168 = vcmp.ge.u32.totalorder %v1976, 429496730
        %vm2169 = vcmp.ge.u32.totalorder %v1977, 429496730
        %vm2170 = vcmp.ge.u32.totalorder %v1978, 429496730
        %vm2171 = vcmp.ge.u32.totalorder %v1979, 429496730
        %vm2172 = vcmp.ge.u32.totalorder %v1980, 429496730
        %vm2173 = vcmp.ge.u32.totalorder %v1981, 429496730
        %vm2174 = vcmp.ge.u32.totalorder %v1982, 429496730
        %vm2175 = vcmp.ge.u32.totalorder %v1983, 429496730
        %vm2176 = vcmp.ge.u32.totalorder %v1984, 429496730
        %vm2177 = vcmp.ge.u32.totalorder %v1985, 429496730
        %vm2178 = vcmp.ge.u32.totalorder %v1986, 429496730
        %vm2179 = vcmp.ge.u32.totalorder %v1987, 429496730
        %vm2180 = vcmp.ge.u32.totalorder %v1988, 429496730
        %vm2181 = vcmp.ge.u32.totalorder %v1989, 429496730
        %vm2182 = vcmp.ge.u32.totalorder %v1990, 429496730
        %vm2183 = vcmp.ge.u32.totalorder %v1991, 429496730
        %vm2184 = vcmp.ge.u32.totalorder %v1992, 429496730
        %vm2185 = vcmp.ge.u32.totalorder %v1993, 429496730
        %vm2186 = vcmp.ge.u32.totalorder %v1994, 429496730
        %vm2187 = vcmp.ge.u32.totalorder %v1995, 429496730
        %vm2188 = vcmp.ge.u32.totalorder %v1996, 429496730
        %vm2189 = vcmp.ge.u32.totalorder %v1997, 429496730
        %vm2190 = vcmp.ge.u32.totalorder %v1998, 429496730
        %vm2191 = vcmp.ge.u32.totalorder %v1999, 429496730
        %vm2192 = vcmp.ge.u32.totalorder %v2000, 429496730
        %vm2193 = vcmp.ge.u32.totalorder %v2001, 429496730
        %vm2194 = vcmp.ge.u32.totalorder %v2002, 429496730
        %vm2195 = vcmp.ge.u32.totalorder %v2003, 429496730
        %vm2196 = vcmp.ge.u32.totalorder %v2004, 429496730
        %vm2197 = vcmp.ge.u32.totalorder %v2005, 429496730
        %vm2198 = vcmp.ge.u32.totalorder %v2006, 429496730
        %vm2199 = vcmp.ge.u32.totalorder %v2007, 429496730
        %vm2200 = vcmp.ge.u32.totalorder %v2008, 429496730
        %vm2201 = vcmp.ge.u32.totalorder %v2009, 429496730
        %vm2202 = vcmp.ge.u32.totalorder %v2010, 429496730
        %vm2203 = vcmp.ge.u32.totalorder %v2011, 429496730
        %vm2204 = vcmp.ge.u32.totalorder %v2012, 429496730
        %vm2205 = vcmp.ge.u32.totalorder %v2013, 429496730
        %vm2206 = vcmp.ge.u32.totalorder %v2014, 429496730
        %vm2207 = vcmp.ge.u32.totalorder %v2015, 429496730
        %vm2208 = vcmp.ge.u32.totalorder %v2016, 429496730
        %vm2209 = vcmp.ge.u32.totalorder %v2017, 429496730
        %vm2210 = vcmp.ge.u32.totalorder %v2018, 429496730
        %vm2211 = vcmp.ge.u32.totalorder %v2019, 429496730
        %vm2212 = vcmp.ge.u32.totalorder %v2020, 429496730
        %vm2213 = vcmp.ge.u32.totalorder %v2021, 429496730
        %vm2214 = vcmp.ge.u32.totalorder %v2022, 429496730
        %vm2215 = vcmp.ge.u32.totalorder %v2023, 429496730
        %vm2216 = vcmp.ge.u32.totalorder %v2024, 429496730
        %vm2217 = vcmp.ge.u32.totalorder %v2025, 429496730
        %vm2218 = vcmp.ge.u32.totalorder %v2026, 429496730
        %vm2219 = vcmp.ge.u32.totalorder %v2027, 429496730
        %vm2220 = vcmp.ge.u32.totalorder %v2028, 429496730
        %vm2221 = vcmp.ge.u32.totalorder %v2029, 429496730
        %vm2222 = vcmp.ge.u32.totalorder %v2030, 429496730
        %vm2223 = vcmp.ge.u32.totalorder %v2031, 429496730
        %vm2224 = vcmp.ge.u32.totalorder %v2032, 429496730
        %vm2225 = vcmp.ge.u32.totalorder %v2033, 429496730
        %vm2226 = vcmp.ge.u32.totalorder %v2034, 429496730
        %vm2227 = vcmp.ge.u32.totalorder %v2035, 429496730
        %vm2228 = vcmp.ge.u32.totalorder %v2036, 429496730
        %vm2229 = vcmp.ge.u32.totalorder %v2037, 429496730
        %vm2230 = vcmp.ge.u32.totalorder %v2038, 429496730
        %vm2231 = vcmp.ge.u32.totalorder %v2039, 429496730
        %vm2232 = vcmp.ge.u32.totalorder %v2040, 429496730
        %vm2233 = vcmp.ge.u32.totalorder %v2041, 429496730
        %vm2234 = vcmp.ge.u32.totalorder %v2042, 429496730
        %vm2235 = vcmp.ge.u32.totalorder %v2043, 429496730
        %vm2236 = vcmp.ge.u32.totalorder %v2044, 429496730
        %vm2237 = vcmp.ge.u32.totalorder %v2045, 429496730
        %vm2238 = vcmp.ge.u32.totalorder %v2046, 429496730
        %vm2239 = vcmp.ge.u32.totalorder %v2047, 429496730
        %vm2240 = vcmp.ge.u32.totalorder %v2048, 429496730
        %vm2241 = vcmp.ge.u32.totalorder %v2049, 429496730
        %vm2242 = vcmp.ge.u32.totalorder %v2050, 429496730
        %vm2243 = vcmp.ge.u32.totalorder %v2051, 429496730
        %vm2244 = vcmp.ge.u32.totalorder %v2052, 429496730
        %vm2245 = vcmp.ge.u32.totalorder %v2053, 429496730
        %vm2246 = vcmp.ge.u32.totalorder %v2054, 429496730
        %vm2247 = vcmp.ge.u32.totalorder %v2055, 429496730
        %vm2248 = vcmp.ge.u32.totalorder %v2056, 429496730
        %vm2249 = vcmp.ge.u32.totalorder %v2057, 429496730
        %vm2250 = vcmp.ge.u32.totalorder %v2058, 429496730
        %vm2251 = vcmp.ge.u32.totalorder %v2059, 429496730
        %vm2252 = vcmp.ge.u32.totalorder %v2060, 429496730
        %vm2253 = vcmp.ge.u32.totalorder %v2061, 429496730
        %vm2254 = vcmp.ge.u32.totalorder %v2062, 429496730
        %vm2255 = vcmp.ge.u32.totalorder %v2063, 429496730
        %vm2256 = vcmp.ge.u32.totalorder %v2064, 429496730
        %vm2257 = vcmp.ge.u32.totalorder %v2065, 429496730
        %vm2258 = vcmp.ge.u32.totalorder %v2066, 429496730
        %vm2259 = vcmp.ge.u32.totalorder %v2067, 429496730
        %vm2260 = vcmp.ge.u32.totalorder %v2068, 429496730
        %vm2261 = vcmp.ge.u32.totalorder %v2069, 429496730
        %vm2262 = vcmp.ge.u32.totalorder %v2070, 429496730
        %vm2263 = vcmp.ge.u32.totalorder %v2071, 429496730
        %vm2264 = vcmp.ge.u32.totalorder %v2072, 429496730
        %vm2265 = vcmp.ge.u32.totalorder %v2073, 429496730
        %vm2266 = vcmp.ge.u32.totalorder %v2074, 429496730
        %vm2267 = vcmp.ge.u32.totalorder %v2075, 429496730
        %vm2268 = vcmp.ge.u32.totalorder %v2076, 429496730
        %vm2269 = vcmp.ge.u32.totalorder %v2077, 429496730
        %vm2270 = vcmp.ge.u32.totalorder %v2078, 429496730
        %vm2271 = vcmp.ge.u32.totalorder %v2079, 429496730
        %vm2272 = vcmp.ge.u32.totalorder %v2080, 429496730
        %vm2273 = vcmp.ge.u32.totalorder %v2081, 429496730
        %vm2274 = vcmp.ge.u32.totalorder %v2082, 429496730
        %vm2275 = vcmp.ge.u32.totalorder %v2083, 429496730
        %vm2276 = vcmp.ge.u32.totalorder %v2084, 429496730
        %vm2277 = vcmp.ge.u32.totalorder %v2085, 429496730
        %vm2278 = vcmp.ge.u32.totalorder %v2086, 429496730
        %vm2279 = vcmp.ge.u32.totalorder %v2087, 429496730
        %vm2280 = vcmp.ge.u32.totalorder %v2088, 429496730
        %vm2281 = vcmp.ge.u32.totalorder %v2089, 429496730
        %vm2282 = vcmp.ge.u32.totalorder %v2090, 429496730
        %vm2283 = vcmp.ge.u32.totalorder %v2091, 429496730
        %vm2284 = vcmp.ge.u32.totalorder %v2092, 429496730
        %vm2285 = vcmp.ge.u32.totalorder %v2093, 429496730
        %vm2286 = vcmp.ge.u32.totalorder %v2094, 429496730
        %vm2287 = vcmp.ge.u32.totalorder %v2095, 429496730
        %vm2288 = vcmp.ge.u32.totalorder %v2096, 429496730
        %vm2289 = vcmp.ge.u32.totalorder %v2097, 429496730
        %vm2290 = vcmp.ge.u32.totalorder %v2098, 429496730
        %vm2291 = vcmp.ge.u32.totalorder %v2099, 429496730
        %vm2292 = vcmp.ge.u32.totalorder %v2100, 429496730
        %vm2293 = vcmp.ge.u32.totalorder %v2101, 429496730
        %vm2294 = vcmp.ge.u32.totalorder %v2102, 429496730
        %vm2295 = vcmp.ge.u32.totalorder %v2103, 429496730
        %vm2296 = vcmp.ge.u32.totalorder %v2104, 429496730
        %vm2297 = vcmp.ge.u32.totalorder %v2105, 429496730
        %vm2298 = vcmp.ge.u32.totalorder %v2106, 429496730
        %vm2299 = vcmp.ge.u32.totalorder %v2107, 429496730
        %vm2300 = vcmp.ge.u32.totalorder %v2108, 429496730
        %vm2301 = vcmp.ge.u32.totalorder %v2109, 429496730
        %vm2302 = vcmp.ge.u32.totalorder %v2110, 429496730
        %vm2303 = vcmp.ge.u32.totalorder %v2111, 429496730
        %vm2304 = vcmp.ge.u32.totalorder %v2112, 429496730
        %vm2305 = vcmp.ge.u32.totalorder %v2113, 429496730
        %vm2306 = vcmp.ge.u32.totalorder %v2114, 429496730
        %vm2307 = vcmp.ge.u32.totalorder %v2115, 429496730
        %vm2308 = vcmp.ge.u32.totalorder %v2116, 429496730
        %vm2309 = vcmp.ge.u32.totalorder %v2117, 429496730
        %vm2310 = vcmp.ge.u32.totalorder %v2118, 429496730
        %vm2311 = vcmp.ge.u32.totalorder %v2119, 429496730
        %vm2312 = vcmp.ge.u32.totalorder %v2120, 429496730
        %vm2313 = vcmp.ge.u32.totalorder %v2121, 429496730
        %vm2314 = vcmp.ge.u32.totalorder %v2122, 429496730
        %vm2315 = vcmp.ge.u32.totalorder %v2123, 429496730
        %vm2316 = vcmp.ge.u32.totalorder %v2124, 429496730
        %vm2317 = vcmp.ge.u32.totalorder %v2125, 429496730
        %vm2318 = vcmp.ge.u32.totalorder %v2126, 429496730
        %v2319 = vmul.f32 %v1168, %v1871
        %v2320 = vmul.f32 %v1170, %v1871
        %v2321 = vmul.f32 %v1172, %v1871
        %v2322 = vmul.f32 %v1174, %v1872
        %v2323 = vmul.f32 %v1176, %v1872
        %v2324 = vmul.f32 %v1178, %v1872
        %v2325 = vmul.f32 %v1180, %v1873
        %v2326 = vmul.f32 %v1182, %v1873
        %v2327 = vmul.f32 %v1184, %v1873
        %v2328 = vmul.f32 %v1186, %v1874
        %v2329 = vmul.f32 %v1188, %v1874
        %v2330 = vmul.f32 %v1190, %v1874
        %v2331 = vmul.f32 %v1192, %v1875
        %v2332 = vmul.f32 %v1194, %v1875
        %v2333 = vmul.f32 %v1196, %v1875
        %v2334 = vmul.f32 %v1198, %v1876
        %v2335 = vmul.f32 %v1200, %v1876
        %v2336 = vmul.f32 %v1202, %v1876
        %v2337 = vmul.f32 %v1204, %v1877
        %v2338 = vmul.f32 %v1206, %v1877
        %v2339 = vmul.f32 %v1208, %v1877
        %v2340 = vmul.f32 %v1210, %v1878
        %v2341 = vmul.f32 %v1212, %v1878
        %v2342 = vmul.f32 %v1214, %v1878
        %v2343 = vmul.f32 %v1216, %v1879
        %v2344 = vmul.f32 %v1218, %v1879
        %v2345 = vmul.f32 %v1220, %v1879
        %v2346 = vmul.f32 %v1222, %v1880
        %v2347 = vmul.f32 %v1224, %v1880
        %v2348 = vmul.f32 %v1226, %v1880
        %v2349 = vmul.f32 %v1228, %v1881
        %v2350 = vmul.f32 %v1230, %v1881
        %v2351 = vmul.f32 %v1232, %v1881
        %v2352 = vmul.f32 %v1234, %v1882
        %v2353 = vmul.f32 %v1236, %v1882
        %v2354 = vmul.f32 %v1238, %v1882
        %v2355 = vmul.f32 %v1240, %v1883
        %v2356 = vmul.f32 %v1242, %v1883
        %v2357 = vmul.f32 %v1244, %v1883
        %v2358 = vmul.f32 %v1246, %v1884
        %v2359 = vmul.f32 %v1248, %v1884
        %v2360 = vmul.f32 %v1250, %v1884
        %v2361 = vmul.f32 %v1252, %v1885
        %v2362 = vmul.f32 %v1254, %v1885
        %v2363 = vmul.f32 %v1256, %v1885
        %v2364 = vmul.f32 %v1258, %v1886
        %v2365 = vmul.f32 %v1260, %v1886
        %v2366 = vmul.f32 %v1262, %v1886
        %v2367 = vmul.f32 %v1264, %v1887
        %v2368 = vmul.f32 %v1266, %v1887
        %v2369 = vmul.f32 %v1268, %v1887
        %v2370 = vmul.f32 %v1270, %v1888
        %v2371 = vmul.f32 %v1272, %v1888
        %v2372 = vmul.f32 %v1274, %v1888
        %v2373 = vmul.f32 %v1276, %v1889
        %v2374 = vmul.f32 %v1278, %v1889
        %v2375 = vmul.f32 %v1280, %v1889
        %v2376 = vmul.f32 %v1282, %v1890
        %v2377 = vmul.f32 %v1284, %v1890
        %v2378 = vmul.f32 %v1286, %v1890
        %v2379 = vmul.f32 %v1288, %v1891
        %v2380 = vmul.f32 %v1290, %v1891
        %v2381 = vmul.f32 %v1292, %v1891
        %v2382 = vmul.f32 %v1294, %v1892
        %v2383 = vmul.f32 %v1296, %v1892
        %v2384 = vmul.f32 %v1298, %v1892
        %v2385 = vmul.f32 %v1300, %v1893
        %v2386 = vmul.f32 %v1302, %v1893
        %v2387 = vmul.f32 %v1304, %v1893
        %v2388 = vmul.f32 %v1306, %v1894
        %v2389 = vmul.f32 %v1308, %v1894
        %v2390 = vmul.f32 %v1310, %v1894
        %v2391 = vmul.f32 %v1312, %v1895
        %v2392 = vmul.f32 %v1314, %v1895
        %v2393 = vmul.f32 %v1316, %v1895
        %v2394 = vmul.f32 %v1318, %v1896
        %v2395 = vmul.f32 %v1320, %v1896
        %v2396 = vmul.f32 %v1322, %v1896
        %v2397 = vmul.f32 %v1324, %v1897
        %v2398 = vmul.f32 %v1326, %v1897
        %v2399 = vmul.f32 %v1328, %v1897
        %v2400 = vmul.f32 %v1330, %v1898
        %v2401 = vmul.f32 %v1332, %v1898
        %v2402 = vmul.f32 %v1334, %v1898
        %v2403 = vmul.f32 %v1336, %v1899
        %v2404 = vmul.f32 %v1338, %v1899
        %v2405 = vmul.f32 %v1340, %v1899
        %v2406 = vmul.f32 %v1342, %v1900
        %v2407 = vmul.f32 %v1344, %v1900
        %v2408 = vmul.f32 %v1346, %v1900
        %v2409 = vmul.f32 %v1348, %v1901
        %v2410 = vmul.f32 %v1350, %v1901
        %v2411 = vmul.f32 %v1352, %v1901
        %v2412 = vmul.f32 %v1354, %v1902
        %v2413 = vmul.f32 %v1356, %v1902
        %v2414 = vmul.f32 %v1358, %v1902
        %v2415 = vmul.f32 %v1360, %v1903
        %v2416 = vmul.f32 %v1362, %v1903
        %v2417 = vmul.f32 %v1364, %v1903
        %v2418 = vmul.f32 %v1366, %v1904
        %v2419 = vmul.f32 %v1368, %v1904
        %v2420 = vmul.f32 %v1370, %v1904
        %v2421 = vmul.f32 %v1372, %v1905
        %v2422 = vmul.f32 %v1374, %v1905
        %v2423 = vmul.f32 %v1376, %v1905
        %v2424 = vmul.f32 %v1378, %v1906
        %v2425 = vmul.f32 %v1380, %v1906
        %v2426 = vmul.f32 %v1382, %v1906
        %v2427 = vmul.f32 %v1384, %v1907
        %v2428 = vmul.f32 %v1386, %v1907
        %v2429 = vmul.f32 %v1388, %v1907
        %v2430 = vmul.f32 %v1390, %v1908
        %v2431 = vmul.f32 %v1392, %v1908
        %v2432 = vmul.f32 %v1394, %v1908
        %v2433 = vmul.f32 %v1396, %v1909
        %v2434 = vmul.f32 %v1398, %v1909
        %v2435 = vmul.f32 %v1400, %v1909
        %v2436 = vmul.f32 %v1402, %v1910
        %v2437 = vmul.f32 %v1404, %v1910
        %v2438 = vmul.f32 %v1406, %v1910
        %v2439 = vmul.f32 %v1408, %v1911
        %v2440 = vmul.f32 %v1410, %v1911
        %v2441 = vmul.f32 %v1412, %v1911
        %v2442 = vmul.f32 %v1414, %v1912
        %v2443 = vmul.f32 %v1416, %v1912
        %v2444 = vmul.f32 %v1418, %v1912
        %v2445 = vmul.f32 %v1420, %v1913
        %v2446 = vmul.f32 %v1422, %v1913
        %v2447 = vmul.f32 %v1424, %v1913
        %v2448 = vmul.f32 %v1426, %v1914
        %v2449 = vmul.f32 %v1428, %v1914
        %v2450 = vmul.f32 %v1430, %v1914
        %v2451 = vmul.f32 %v1432, %v1915
        %v2452 = vmul.f32 %v1434, %v1915
        %v2453 = vmul.f32 %v1436, %v1915
        %v2454 = vmul.f32 %v1438, %v1916
        %v2455 = vmul.f32 %v1440, %v1916
        %v2456 = vmul.f32 %v1442, %v1916
        %v2457 = vmul.f32 %v1444, %v1917
        %v2458 = vmul.f32 %v1446, %v1917
        %v2459 = vmul.f32 %v1448, %v1917
        %v2460 = vmul.f32 %v1450, %v1918
        %v2461 = vmul.f32 %v1452, %v1918
        %v2462 = vmul.f32 %v1454, %v1918
        %v2463 = vmul.f32 %v1456, %v1919
        %v2464 = vmul.f32 %v1458, %v1919
        %v2465 = vmul.f32 %v1460, %v1919
        %v2466 = vmul.f32 %v1462, %v1920
        %v2467 = vmul.f32 %v1464, %v1920
        %v2468 = vmul.f32 %v1466, %v1920
        %v2469 = vmul.f32 %v1468, %v1921
        %v2470 = vmul.f32 %v1470, %v1921
        %v2471 = vmul.f32 %v1472, %v1921
        %v2472 = vmul.f32 %v1474, %v1922
        %v2473 = vmul.f32 %v1476, %v1922
        %v2474 = vmul.f32 %v1478, %v1922
        %v2475 = vmul.f32 %v1480, %v1923
        %v2476 = vmul.f32 %v1482, %v1923
        %v2477 = vmul.f32 %v1484, %v1923
        %v2478 = vmul.f32 %v1486, %v1924
        %v2479 = vmul.f32 %v1488, %v1924
        %v2480 = vmul.f32 %v1490, %v1924
        %v2481 = vmul.f32 %v1492, %v1925
        %v2482 = vmul.f32 %v1494, %v1925
        %v2483 = vmul.f32 %v1496, %v1925
        %v2484 = vmul.f32 %v1498, %v1926
        %v2485 = vmul.f32 %v1500, %v1926
        %v2486 = vmul.f32 %v1502, %v1926
        %v2487 = vmul.f32 %v1504, %v1927
        %v2488 = vmul.f32 %v1506, %v1927
        %v2489 = vmul.f32 %v1508, %v1927
        %v2490 = vmul.f32 %v1510, %v1928
        %v2491 = vmul.f32 %v1512, %v1928
        %v2492 = vmul.f32 %v1514, %v1928
        %v2493 = vmul.f32 %v1516, %v1929
        %v2494 = vmul.f32 %v1518, %v1929
        %v2495 = vmul.f32 %v1520, %v1929
        %v2496 = vmul.f32 %v1522, %v1930
        %v2497 = vmul.f32 %v1524, %v1930
        %v2498 = vmul.f32 %v1526, %v1930
        %v2499 = vmul.f32 %v1528, %v1931
        %v2500 = vmul.f32 %v1530, %v1931
        %v2501 = vmul.f32 %v1532, %v1931
        %v2502 = vmul.f32 %v1534, %v1932
        %v2503 = vmul.f32 %v1536, %v1932
        %v2504 = vmul.f32 %v1538, %v1932
        %v2505 = vmul.f32 %v1540, %v1933
        %v2506 = vmul.f32 %v1542, %v1933
        %v2507 = vmul.f32 %v1544, %v1933
        %v2508 = vmul.f32 %v1546, %v1934
        %v2509 = vmul.f32 %v1548, %v1934
        %v2510 = vmul.f32 %v1550, %v1934
        %v2511 = vsel %vm2127, %v2319, 0.0
        %v2512 = vsel %vm2128, %v2320, 0.0
        %v2513 = vsel %vm2129, %v2321, 0.0
        %v2514 = vsel %vm2130, %v2322, 0.0
        %v2515 = vsel %vm2131, %v2323, 0.0
        %v2516 = vsel %vm2132, %v2324, 0.0
        %v2517 = vsel %vm2133, %v2325, 0.0
        %v2518 = vsel %vm2134, %v2326, 0.0
        %v2519 = vsel %vm2135, %v2327, 0.0
        %v2520 = vsel %vm2136, %v2328, 0.0
        %v2521 = vsel %vm2137, %v2329, 0.0
        %v2522 = vsel %vm2138, %v2330, 0.0
        %v2523 = vsel %vm2139, %v2331, 0.0
        %v2524 = vsel %vm2140, %v2332, 0.0
        %v2525 = vsel %vm2141, %v2333, 0.0
        %v2526 = vsel %vm2142, %v2334, 0.0
        %v2527 = vsel %vm2143, %v2335, 0.0
        %v2528 = vsel %vm2144, %v2336, 0.0
        %v2529 = vsel %vm2145, %v2337, 0.0
        %v2530 = vsel %vm2146, %v2338, 0.0
        %v2531 = vsel %vm2147, %v2339, 0.0
        %v2532 = vsel %vm2148, %v2340, 0.0
        %v2533 = vsel %vm2149, %v2341, 0.0
        %v2534 = vsel %vm2150, %v2342, 0.0
        %v2535 = vsel %vm2151, %v2343, 0.0
        %v2536 = vsel %vm2152, %v2344, 0.0
        %v2537 = vsel %vm2153, %v2345, 0.0
        %v2538 = vsel %vm2154, %v2346, 0.0
        %v2539 = vsel %vm2155, %v2347, 0.0
        %v2540 = vsel %vm2156, %v2348, 0.0
        %v2541 = vsel %vm2157, %v2349, 0.0
        %v2542 = vsel %vm2158, %v2350, 0.0
        %v2543 = vsel %vm2159, %v2351, 0.0
        %v2544 = vsel %vm2160, %v2352, 0.0
        %v2545 = vsel %vm2161, %v2353, 0.0
        %v2546 = vsel %vm2162, %v2354, 0.0
        %v2547 = vsel %vm2163, %v2355, 0.0
        %v2548 = vsel %vm2164, %v2356, 0.0
        %v2549 = vsel %vm2165, %v2357, 0.0
        %v2550 = vsel %vm2166, %v2358, 0.0
        %v2551 = vsel %vm2167, %v2359, 0.0
        %v2552 = vsel %vm2168, %v2360, 0.0
        %v2553 = vsel %vm2169, %v2361, 0.0
        %v2554 = vsel %vm2170, %v2362, 0.0
        %v2555 = vsel %vm2171, %v2363, 0.0
        %v2556 = vsel %vm2172, %v2364, 0.0
        %v2557 = vsel %vm2173, %v2365, 0.0
        %v2558 = vsel %vm2174, %v2366, 0.0
        %v2559 = vsel %vm2175, %v2367, 0.0
        %v2560 = vsel %vm2176, %v2368, 0.0
        %v2561 = vsel %vm2177, %v2369, 0.0
        %v2562 = vsel %vm2178, %v2370, 0.0
        %v2563 = vsel %vm2179, %v2371, 0.0
        %v2564 = vsel %vm2180, %v2372, 0.0
        %v2565 = vsel %vm2181, %v2373, 0.0
        %v2566 = vsel %vm2182, %v2374, 0.0
        %v2567 = vsel %vm2183, %v2375, 0.0
        %v2568 = vsel %vm2184, %v2376, 0.0
        %v2569 = vsel %vm2185, %v2377, 0.0
        %v2570 = vsel %vm2186, %v2378, 0.0
        %v2571 = vsel %vm2187, %v2379, 0.0
        %v2572 = vsel %vm2188, %v2380, 0.0
        %v2573 = vsel %vm2189, %v2381, 0.0
        %v2574 = vsel %vm2190, %v2382, 0.0
        %v2575 = vsel %vm2191, %v2383, 0.0
        %v2576 = vsel %vm2192, %v2384, 0.0
        %v2577 = vsel %vm2193, %v2385, 0.0
        %v2578 = vsel %vm2194, %v2386, 0.0
        %v2579 = vsel %vm2195, %v2387, 0.0
        %v2580 = vsel %vm2196, %v2388, 0.0
        %v2581 = vsel %vm2197, %v2389, 0.0
        %v2582 = vsel %vm2198, %v2390, 0.0
        %v2583 = vsel %vm2199, %v2391, 0.0
        %v2584 = vsel %vm2200, %v2392, 0.0
        %v2585 = vsel %vm2201, %v2393, 0.0
        %v2586 = vsel %vm2202, %v2394, 0.0
        %v2587 = vsel %vm2203, %v2395, 0.0
        %v2588 = vsel %vm2204, %v2396, 0.0
        %v2589 = vsel %vm2205, %v2397, 0.0
        %v2590 = vsel %vm2206, %v2398, 0.0
        %v2591 = vsel %vm2207, %v2399, 0.0
        %v2592 = vsel %vm2208, %v2400, 0.0
        %v2593 = vsel %vm2209, %v2401, 0.0
        %v2594 = vsel %vm2210, %v2402, 0.0
        %v2595 = vsel %vm2211, %v2403, 0.0
        %v2596 = vsel %vm2212, %v2404, 0.0
        %v2597 = vsel %vm2213, %v2405, 0.0
        %v2598 = vsel %vm2214, %v2406, 0.0
        %v2599 = vsel %vm2215, %v2407, 0.0
        %v2600 = vsel %vm2216, %v2408, 0.0
        %v2601 = vsel %vm2217, %v2409, 0.0
        %v2602 = vsel %vm2218, %v2410, 0.0
        %v2603 = vsel %vm2219, %v2411, 0.0
        %v2604 = vsel %vm2220, %v2412, 0.0
        %v2605 = vsel %vm2221, %v2413, 0.0
        %v2606 = vsel %vm2222, %v2414, 0.0
        %v2607 = vsel %vm2223, %v2415, 0.0
        %v2608 = vsel %vm2224, %v2416, 0.0
        %v2609 = vsel %vm2225, %v2417, 0.0
        %v2610 = vsel %vm2226, %v2418, 0.0
        %v2611 = vsel %vm2227, %v2419, 0.0
        %v2612 = vsel %vm2228, %v2420, 0.0
        %v2613 = vsel %vm2229, %v2421, 0.0
        %v2614 = vsel %vm2230, %v2422, 0.0
        %v2615 = vsel %vm2231, %v2423, 0.0
        %v2616 = vsel %vm2232, %v2424, 0.0
        %v2617 = vsel %vm2233, %v2425, 0.0
        %v2618 = vsel %vm2234, %v2426, 0.0
        %v2619 = vsel %vm2235, %v2427, 0.0
        %v2620 = vsel %vm2236, %v2428, 0.0
        %v2621 = vsel %vm2237, %v2429, 0.0
        %v2622 = vsel %vm2238, %v2430, 0.0
        %v2623 = vsel %vm2239, %v2431, 0.0
        %v2624 = vsel %vm2240, %v2432, 0.0
        %v2625 = vsel %vm2241, %v2433, 0.0
        %v2626 = vsel %vm2242, %v2434, 0.0
        %v2627 = vsel %vm2243, %v2435, 0.0
        %v2628 = vsel %vm2244, %v2436, 0.0
        %v2629 = vsel %vm2245, %v2437, 0.0
        %v2630 = vsel %vm2246, %v2438, 0.0
        %v2631 = vsel %vm2247, %v2439, 0.0
        %v2632 = vsel %vm2248, %v2440, 0.0
        %v2633 = vsel %vm2249, %v2441, 0.0
        %v2634 = vsel %vm2250, %v2442, 0.0
        %v2635 = vsel %vm2251, %v2443, 0.0
        %v2636 = vsel %vm2252, %v2444, 0.0
        %v2637 = vsel %vm2253, %v2445, 0.0
        %v2638 = vsel %vm2254, %v2446, 0.0
        %v2639 = vsel %vm2255, %v2447, 0.0
        %v2640 = vsel %vm2256, %v2448, 0.0
        %v2641 = vsel %vm2257, %v2449, 0.0
        %v2642 = vsel %vm2258, %v2450, 0.0
        %v2643 = vsel %vm2259, %v2451, 0.0
        %v2644 = vsel %vm2260, %v2452, 0.0
        %v2645 = vsel %vm2261, %v2453, 0.0
        %v2646 = vsel %vm2262, %v2454, 0.0
        %v2647 = vsel %vm2263, %v2455, 0.0
        %v2648 = vsel %vm2264, %v2456, 0.0
        %v2649 = vsel %vm2265, %v2457, 0.0
        %v2650 = vsel %vm2266, %v2458, 0.0
        %v2651 = vsel %vm2267, %v2459, 0.0
        %v2652 = vsel %vm2268, %v2460, 0.0
        %v2653 = vsel %vm2269, %v2461, 0.0
        %v2654 = vsel %vm2270, %v2462, 0.0
        %v2655 = vsel %vm2271, %v2463, 0.0
        %v2656 = vsel %vm2272, %v2464, 0.0
        %v2657 = vsel %vm2273, %v2465, 0.0
        %v2658 = vsel %vm2274, %v2466, 0.0
        %v2659 = vsel %vm2275, %v2467, 0.0
        %v2660 = vsel %vm2276, %v2468, 0.0
        %v2661 = vsel %vm2277, %v2469, 0.0
        %v2662 = vsel %vm2278, %v2470, 0.0
        %v2663 = vsel %vm2279, %v2471, 0.0
        %v2664 = vsel %vm2280, %v2472, 0.0
        %v2665 = vsel %vm2281, %v2473, 0.0
        %v2666 = vsel %vm2282, %v2474, 0.0
        %v2667 = vsel %vm2283, %v2475, 0.0
        %v2668 = vsel %vm2284, %v2476, 0.0
        %v2669 = vsel %vm2285, %v2477, 0.0
        %v2670 = vsel %vm2286, %v2478, 0.0
        %v2671 = vsel %vm2287, %v2479, 0.0
        %v2672 = vsel %vm2288, %v2480, 0.0
        %v2673 = vsel %vm2289, %v2481, 0.0
        %v2674 = vsel %vm2290, %v2482, 0.0
        %v2675 = vsel %vm2291, %v2483, 0.0
        %v2676 = vsel %vm2292, %v2484, 0.0
        %v2677 = vsel %vm2293, %v2485, 0.0
        %v2678 = vsel %vm2294, %v2486, 0.0
        %v2679 = vsel %vm2295, %v2487, 0.0
        %v2680 = vsel %vm2296, %v2488, 0.0
        %v2681 = vsel %vm2297, %v2489, 0.0
        %v2682 = vsel %vm2298, %v2490, 0.0
        %v2683 = vsel %vm2299, %v2491, 0.0
        %v2684 = vsel %vm2300, %v2492, 0.0
        %v2685 = vsel %vm2301, %v2493, 0.0
        %v2686 = vsel %vm2302, %v2494, 0.0
        %v2687 = vsel %vm2303, %v2495, 0.0
        %v2688 = vsel %vm2304, %v2496, 0.0
        %v2689 = vsel %vm2305, %v2497, 0.0
        %v2690 = vsel %vm2306, %v2498, 0.0
        %v2691 = vsel %vm2307, %v2499, 0.0
        %v2692 = vsel %vm2308, %v2500, 0.0
        %v2693 = vsel %vm2309, %v2501, 0.0
        %v2694 = vsel %vm2310, %v2502, 0.0
        %v2695 = vsel %vm2311, %v2503, 0.0
        %v2696 = vsel %vm2312, %v2504, 0.0
        %v2697 = vsel %vm2313, %v2505, 0.0
        %v2698 = vsel %vm2314, %v2506, 0.0
        %v2699 = vsel %vm2315, %v2507, 0.0
        %v2700 = vsel %vm2316, %v2508, 0.0
        %v2701 = vsel %vm2317, %v2509, 0.0
        %v2702 = vsel %vm2318, %v2510, 0.0
        %v2703 = vpack.c.bf16 %v2514, %v2511
        %v2704 = vpack.c.bf16 %v2515, %v2512
        %v2705 = vpack.c.bf16 %v2516, %v2513
        %v2706 = vpack.c.bf16 %v2520, %v2517
        %v2707 = vpack.c.bf16 %v2521, %v2518
        %v2708 = vpack.c.bf16 %v2522, %v2519
        %v2709 = vpack.c.bf16 %v2526, %v2523
        %v2710 = vpack.c.bf16 %v2527, %v2524
        %v2711 = vpack.c.bf16 %v2528, %v2525
        %v2712 = vpack.c.bf16 %v2532, %v2529
        %v2713 = vpack.c.bf16 %v2533, %v2530
        %v2714 = vpack.c.bf16 %v2534, %v2531
        %v2715 = vpack.c.bf16 %v2538, %v2535
        %v2716 = vpack.c.bf16 %v2539, %v2536
        %v2717 = vpack.c.bf16 %v2540, %v2537
        %v2718 = vpack.c.bf16 %v2544, %v2541
        %v2719 = vpack.c.bf16 %v2545, %v2542
        %v2720 = vpack.c.bf16 %v2546, %v2543
        %v2721 = vpack.c.bf16 %v2550, %v2547
        %v2722 = vpack.c.bf16 %v2551, %v2548
        %v2723 = vpack.c.bf16 %v2552, %v2549
        %v2724 = vpack.c.bf16 %v2556, %v2553
        %v2725 = vpack.c.bf16 %v2557, %v2554
        %v2726 = vpack.c.bf16 %v2558, %v2555
        %v2727 = vpack.c.bf16 %v2562, %v2559
        %v2728 = vpack.c.bf16 %v2563, %v2560
        %v2729 = vpack.c.bf16 %v2564, %v2561
        %v2730 = vpack.c.bf16 %v2568, %v2565
        %v2731 = vpack.c.bf16 %v2569, %v2566
        %v2732 = vpack.c.bf16 %v2570, %v2567
        %v2733 = vpack.c.bf16 %v2574, %v2571
        %v2734 = vpack.c.bf16 %v2575, %v2572
        %v2735 = vpack.c.bf16 %v2576, %v2573
        %v2736 = vpack.c.bf16 %v2580, %v2577
        %v2737 = vpack.c.bf16 %v2581, %v2578
        %v2738 = vpack.c.bf16 %v2582, %v2579
        %v2739 = vpack.c.bf16 %v2586, %v2583
        %v2740 = vpack.c.bf16 %v2587, %v2584
        %v2741 = vpack.c.bf16 %v2588, %v2585
        %v2742 = vpack.c.bf16 %v2592, %v2589
        %v2743 = vpack.c.bf16 %v2593, %v2590
        %v2744 = vpack.c.bf16 %v2594, %v2591
        %v2745 = vpack.c.bf16 %v2598, %v2595
        %v2746 = vpack.c.bf16 %v2599, %v2596
        %v2747 = vpack.c.bf16 %v2600, %v2597
        %v2748 = vpack.c.bf16 %v2604, %v2601
        %v2749 = vpack.c.bf16 %v2605, %v2602
        %v2750 = vpack.c.bf16 %v2606, %v2603
        %v2751 = vpack.c.bf16 %v2610, %v2607
        %v2752 = vpack.c.bf16 %v2611, %v2608
        %v2753 = vpack.c.bf16 %v2612, %v2609
        %v2754 = vpack.c.bf16 %v2616, %v2613
        %v2755 = vpack.c.bf16 %v2617, %v2614
        %v2756 = vpack.c.bf16 %v2618, %v2615
        %v2757 = vpack.c.bf16 %v2622, %v2619
        %v2758 = vpack.c.bf16 %v2623, %v2620
        %v2759 = vpack.c.bf16 %v2624, %v2621
        %v2760 = vpack.c.bf16 %v2628, %v2625
        %v2761 = vpack.c.bf16 %v2629, %v2626
        %v2762 = vpack.c.bf16 %v2630, %v2627
        %v2763 = vpack.c.bf16 %v2634, %v2631
        %v2764 = vpack.c.bf16 %v2635, %v2632
        %v2765 = vpack.c.bf16 %v2636, %v2633
        %v2766 = vpack.c.bf16 %v2640, %v2637
        %v2767 = vpack.c.bf16 %v2641, %v2638
        %v2768 = vpack.c.bf16 %v2642, %v2639
        %v2769 = vpack.c.bf16 %v2646, %v2643
        %v2770 = vpack.c.bf16 %v2647, %v2644
        %v2771 = vpack.c.bf16 %v2648, %v2645
        %v2772 = vpack.c.bf16 %v2652, %v2649
        %v2773 = vpack.c.bf16 %v2653, %v2650
        %v2774 = vpack.c.bf16 %v2654, %v2651
        %v2775 = vpack.c.bf16 %v2658, %v2655
        %v2776 = vpack.c.bf16 %v2659, %v2656
        %v2777 = vpack.c.bf16 %v2660, %v2657
        %v2778 = vpack.c.bf16 %v2664, %v2661
        %v2779 = vpack.c.bf16 %v2665, %v2662
        %v2780 = vpack.c.bf16 %v2666, %v2663
        %v2781 = vpack.c.bf16 %v2670, %v2667
        %v2782 = vpack.c.bf16 %v2671, %v2668
        %v2783 = vpack.c.bf16 %v2672, %v2669
        %v2784 = vpack.c.bf16 %v2676, %v2673
        %v2785 = vpack.c.bf16 %v2677, %v2674
        %v2786 = vpack.c.bf16 %v2678, %v2675
        %v2787 = vpack.c.bf16 %v2682, %v2679
        %v2788 = vpack.c.bf16 %v2683, %v2680
        %v2789 = vpack.c.bf16 %v2684, %v2681
        %v2790 = vpack.c.bf16 %v2688, %v2685
        %v2791 = vpack.c.bf16 %v2689, %v2686
        %v2792 = vpack.c.bf16 %v2690, %v2687
        %v2793 = vpack.c.bf16 %v2694, %v2691
        %v2794 = vpack.c.bf16 %v2695, %v2692
        %v2795 = vpack.c.bf16 %v2696, %v2693
        %v2796 = vpack.c.bf16 %v2700, %v2697
        %v2797 = vpack.c.bf16 %v2701, %v2698
        %v2798 = vpack.c.bf16 %v2702, %v2699
        %v2799 = vld [vmem:[%s2] sm:$0xff]
        %v2800 = vld [vmem:[%s2 + $0x8] sm:$0xff]
        %v2801 = vld [vmem:[%s2 + $0x10] sm:$0xff]
        %v2802 = vld [vmem:[%s2 + $0x18] sm:$0xff]
        %v2803 = vld [vmem:[%s2 + $0x20] sm:$0xff]
        %v2804 = vld [vmem:[%s2 + $0x28] sm:$0xff]
        %v2805 = vld [vmem:[%s2 + $0x30] sm:$0xff]
        %v2806 = vld [vmem:[%s2 + $0x38] sm:$0xff]
        %v2807 = vld [vmem:[%s2 + $0x40] sm:$0xff]
        %v2808 = vld [vmem:[%s2 + $0x48] sm:$0xff]
        %v2809 = vld [vmem:[%s2 + $0x50] sm:$0xff]
        %v2810 = vld [vmem:[%s2 + $0x58] sm:$0xff]
        %v2811 = vld [vmem:[%s2 + $0x60] sm:$0xff]
        %v2812 = vld [vmem:[%s2 + $0x68] sm:$0xff]
        %v2813 = vld [vmem:[%s2 + $0x70] sm:$0xff]
        %v2814 = vld [vmem:[%s2 + $0x78] sm:$0xff]
        %v2815 = vld [vmem:[%s2 + $0x80] sm:$0xff]
        %v2816 = vld [vmem:[%s2 + $0x88] sm:$0xff]
        %v2817 = vld [vmem:[%s2 + $0x90] sm:$0xff]
        %v2818 = vld [vmem:[%s2 + $0x98] sm:$0xff]
        %v2819 = vld [vmem:[%s2 + $0xa0] sm:$0xff]
        %v2820 = vld [vmem:[%s2 + $0xa8] sm:$0xff]
        %v2821 = vld [vmem:[%s2 + $0xb0] sm:$0xff]
        %v2822 = vld [vmem:[%s2 + $0xb8] sm:$0xff]
        %v2823 = vld [vmem:[%s2 + $0xc0] sm:$0xff]
        %v2824 = vld [vmem:[%s2 + $0xc8] sm:$0xff]
        %v2825 = vld [vmem:[%s2 + $0xd0] sm:$0xff]
        %v2826 = vld [vmem:[%s2 + $0xd8] sm:$0xff]
        %v2827 = vld [vmem:[%s2 + $0xe0] sm:$0xff]
        %v2828 = vld [vmem:[%s2 + $0xe8] sm:$0xff]
        %v2829 = vld [vmem:[%s2 + $0xf0] sm:$0xff]
        %v2830 = vld [vmem:[%s2 + $0xf8] sm:$0xff]
        %v2831 = vld [vmem:[%s2 + $0x100] sm:$0xff]
        %v2832 = vld [vmem:[%s2 + $0x108] sm:$0xff]
        %v2833 = vld [vmem:[%s2 + $0x110] sm:$0xff]
        %v2834 = vld [vmem:[%s2 + $0x118] sm:$0xff]
        %v2835 = vld [vmem:[%s2 + $0x120] sm:$0xff]
        %v2836 = vld [vmem:[%s2 + $0x128] sm:$0xff]
        %v2837 = vld [vmem:[%s2 + $0x130] sm:$0xff]
        %v2838 = vld [vmem:[%s2 + $0x138] sm:$0xff]
        %v2839 = vld [vmem:[%s2 + $0x140] sm:$0xff]
        %v2840 = vld [vmem:[%s2 + $0x148] sm:$0xff]
        %v2841 = vld [vmem:[%s2 + $0x150] sm:$0xff]
        %v2842 = vld [vmem:[%s2 + $0x158] sm:$0xff]
        %v2843 = vld [vmem:[%s2 + $0x160] sm:$0xff]
        %v2844 = vld [vmem:[%s2 + $0x168] sm:$0xff]
        %v2845 = vld [vmem:[%s2 + $0x170] sm:$0xff]
        %v2846 = vld [vmem:[%s2 + $0x178] sm:$0xff]
        %v2847 = vld [vmem:[%s2 + $0x180] sm:$0xff]
        %v2848 = vld [vmem:[%s2 + $0x188] sm:$0xff]
        %v2849 = vld [vmem:[%s2 + $0x190] sm:$0xff]
        %v2850 = vld [vmem:[%s2 + $0x198] sm:$0xff]
        %v2851 = vld [vmem:[%s2 + $0x1a0] sm:$0xff]
        %v2852 = vld [vmem:[%s2 + $0x1a8] sm:$0xff]
        %v2853 = vld [vmem:[%s2 + $0x1b0] sm:$0xff]
        %v2854 = vld [vmem:[%s2 + $0x1b8] sm:$0xff]
        %v2855 = vld [vmem:[%s2 + $0x1c0] sm:$0xff]
        %v2856 = vld [vmem:[%s2 + $0x1c8] sm:$0xff]
        %v2857 = vld [vmem:[%s2 + $0x1d0] sm:$0xff]
        %v2858 = vld [vmem:[%s2 + $0x1d8] sm:$0xff]
        %v2859 = vld [vmem:[%s2 + $0x1e0] sm:$0xff]
        %v2860 = vld [vmem:[%s2 + $0x1e8] sm:$0xff]
        %v2861 = vld [vmem:[%s2 + $0x1f0] sm:$0xff]
        %v2862 = vld [vmem:[%s2 + $0x1f8] sm:$0xff]
        %v2863 = vld [vmem:[%s2 + $0x200] sm:$0xff]
        %v2864 = vld [vmem:[%s2 + $0x208] sm:$0xff]
        %v2865 = vld [vmem:[%s2 + $0x210] sm:$0xff]
        %v2866 = vld [vmem:[%s2 + $0x218] sm:$0xff]
        %v2867 = vld [vmem:[%s2 + $0x220] sm:$0xff]
        %v2868 = vld [vmem:[%s2 + $0x228] sm:$0xff]
        %v2869 = vld [vmem:[%s2 + $0x230] sm:$0xff]
        %v2870 = vld [vmem:[%s2 + $0x238] sm:$0xff]
        %v2871 = vld [vmem:[%s2 + $0x240] sm:$0xff]
        %v2872 = vld [vmem:[%s2 + $0x248] sm:$0xff]
        %v2873 = vld [vmem:[%s2 + $0x250] sm:$0xff]
        %v2874 = vld [vmem:[%s2 + $0x258] sm:$0xff]
        %v2875 = vld [vmem:[%s2 + $0x260] sm:$0xff]
        %v2876 = vld [vmem:[%s2 + $0x268] sm:$0xff]
        %v2877 = vld [vmem:[%s2 + $0x270] sm:$0xff]
        %v2878 = vld [vmem:[%s2 + $0x278] sm:$0xff]
        %v2879 = vld [vmem:[%s2 + $0x280] sm:$0xff]
        %v2880 = vld [vmem:[%s2 + $0x288] sm:$0xff]
        %v2881 = vld [vmem:[%s2 + $0x290] sm:$0xff]
        %v2882 = vld [vmem:[%s2 + $0x298] sm:$0xff]
        %v2883 = vld [vmem:[%s2 + $0x2a0] sm:$0xff]
        %v2884 = vld [vmem:[%s2 + $0x2a8] sm:$0xff]
        %v2885 = vld [vmem:[%s2 + $0x2b0] sm:$0xff]
        %v2886 = vld [vmem:[%s2 + $0x2b8] sm:$0xff]
        %v2887 = vld [vmem:[%s2 + $0x2c0] sm:$0xff]
        %v2888 = vld [vmem:[%s2 + $0x2c8] sm:$0xff]
        %v2889 = vld [vmem:[%s2 + $0x2d0] sm:$0xff]
        %v2890 = vld [vmem:[%s2 + $0x2d8] sm:$0xff]
        %v2891 = vld [vmem:[%s2 + $0x2e0] sm:$0xff]
        %v2892 = vld [vmem:[%s2 + $0x2e8] sm:$0xff]
        %v2893 = vld [vmem:[%s2 + $0x2f0] sm:$0xff]
        %v2894 = vld [vmem:[%s2 + $0x2f8] sm:$0xff]
        %v2895 = vld [vmem:[%s2 + $0x300] sm:$0xff]
        %v2896 = vld [vmem:[%s2 + $0x308] sm:$0xff]
        %v2897 = vld [vmem:[%s2 + $0x310] sm:$0xff]
        %v2898 = vld [vmem:[%s2 + $0x318] sm:$0xff]
        %v2899 = vld [vmem:[%s2 + $0x320] sm:$0xff]
        %v2900 = vld [vmem:[%s2 + $0x328] sm:$0xff]
        %v2901 = vld [vmem:[%s2 + $0x330] sm:$0xff]
        %v2902 = vld [vmem:[%s2 + $0x338] sm:$0xff]
        %v2903 = vld [vmem:[%s2 + $0x340] sm:$0xff]
        %v2904 = vld [vmem:[%s2 + $0x348] sm:$0xff]
        %v2905 = vld [vmem:[%s2 + $0x350] sm:$0xff]
        %v2906 = vld [vmem:[%s2 + $0x358] sm:$0xff]
        %v2907 = vld [vmem:[%s2 + $0x360] sm:$0xff]
        %v2908 = vld [vmem:[%s2 + $0x368] sm:$0xff]
        %v2909 = vld [vmem:[%s2 + $0x370] sm:$0xff]
        %v2910 = vld [vmem:[%s2 + $0x378] sm:$0xff]
        %v2911 = vld [vmem:[%s2 + $0x380] sm:$0xff]
        %v2912 = vld [vmem:[%s2 + $0x388] sm:$0xff]
        %v2913 = vld [vmem:[%s2 + $0x390] sm:$0xff]
        %v2914 = vld [vmem:[%s2 + $0x398] sm:$0xff]
        %v2915 = vld [vmem:[%s2 + $0x3a0] sm:$0xff]
        %v2916 = vld [vmem:[%s2 + $0x3a8] sm:$0xff]
        %v2917 = vld [vmem:[%s2 + $0x3b0] sm:$0xff]
        %v2918 = vld [vmem:[%s2 + $0x3b8] sm:$0xff]
        %v2919 = vld [vmem:[%s2 + $0x3c0] sm:$0xff]
        %v2920 = vld [vmem:[%s2 + $0x3c8] sm:$0xff]
        %v2921 = vld [vmem:[%s2 + $0x3d0] sm:$0xff]
        %v2922 = vld [vmem:[%s2 + $0x3d8] sm:$0xff]
        %v2923 = vld [vmem:[%s2 + $0x3e0] sm:$0xff]
        %v2924 = vld [vmem:[%s2 + $0x3e8] sm:$0xff]
        %v2925 = vld [vmem:[%s2 + $0x3f0] sm:$0xff]
        %v2926 = vld [vmem:[%s2 + $0x3f8] sm:$0xff]
        %v2927 = vld [vmem:[%s2 + $0x400] sm:$0xff]
        %v2928 = vld [vmem:[%s2 + $0x408] sm:$0xff]
        %v2929 = vld [vmem:[%s2 + $0x410] sm:$0xff]
        %v2930 = vld [vmem:[%s2 + $0x418] sm:$0xff]
        %v2931 = vld [vmem:[%s2 + $0x420] sm:$0xff]
        %v2932 = vld [vmem:[%s2 + $0x428] sm:$0xff]
        %v2933 = vld [vmem:[%s2 + $0x430] sm:$0xff]
        %v2934 = vld [vmem:[%s2 + $0x438] sm:$0xff]
        %v2935 = vld [vmem:[%s2 + $0x440] sm:$0xff]
        %v2936 = vld [vmem:[%s2 + $0x448] sm:$0xff]
        %v2937 = vld [vmem:[%s2 + $0x450] sm:$0xff]
        %v2938 = vld [vmem:[%s2 + $0x458] sm:$0xff]
        %v2939 = vld [vmem:[%s2 + $0x460] sm:$0xff]
        %v2940 = vld [vmem:[%s2 + $0x468] sm:$0xff]
        %v2941 = vld [vmem:[%s2 + $0x470] sm:$0xff]
        %v2942 = vld [vmem:[%s2 + $0x478] sm:$0xff]
        %v2943 = vld [vmem:[%s2 + $0x480] sm:$0xff]
        %v2944 = vld [vmem:[%s2 + $0x488] sm:$0xff]
        %v2945 = vld [vmem:[%s2 + $0x490] sm:$0xff]
        %v2946 = vld [vmem:[%s2 + $0x498] sm:$0xff]
        %v2947 = vld [vmem:[%s2 + $0x4a0] sm:$0xff]
        %v2948 = vld [vmem:[%s2 + $0x4a8] sm:$0xff]
        %v2949 = vld [vmem:[%s2 + $0x4b0] sm:$0xff]
        %v2950 = vld [vmem:[%s2 + $0x4b8] sm:$0xff]
        %v2951 = vld [vmem:[%s2 + $0x4c0] sm:$0xff]
        %v2952 = vld [vmem:[%s2 + $0x4c8] sm:$0xff]
        %v2953 = vld [vmem:[%s2 + $0x4d0] sm:$0xff]
        %v2954 = vld [vmem:[%s2 + $0x4d8] sm:$0xff]
        %v2955 = vld [vmem:[%s2 + $0x4e0] sm:$0xff]
        %v2956 = vld [vmem:[%s2 + $0x4e8] sm:$0xff]
        %v2957 = vld [vmem:[%s2 + $0x4f0] sm:$0xff]
        %v2958 = vld [vmem:[%s2 + $0x4f8] sm:$0xff]
        %v2959 = vld [vmem:[%s2 + $0x500] sm:$0xff]
        %v2960 = vld [vmem:[%s2 + $0x508] sm:$0xff]
        %v2961 = vld [vmem:[%s2 + $0x510] sm:$0xff]
        %v2962 = vld [vmem:[%s2 + $0x518] sm:$0xff]
        %v2963 = vld [vmem:[%s2 + $0x520] sm:$0xff]
        %v2964 = vld [vmem:[%s2 + $0x528] sm:$0xff]
        %v2965 = vld [vmem:[%s2 + $0x530] sm:$0xff]
        %v2966 = vld [vmem:[%s2 + $0x538] sm:$0xff]
        %v2967 = vld [vmem:[%s2 + $0x540] sm:$0xff]
        %v2968 = vld [vmem:[%s2 + $0x548] sm:$0xff]
        %v2969 = vld [vmem:[%s2 + $0x550] sm:$0xff]
        %v2970 = vld [vmem:[%s2 + $0x558] sm:$0xff]
        %v2971 = vld [vmem:[%s2 + $0x560] sm:$0xff]
        %v2972 = vld [vmem:[%s2 + $0x568] sm:$0xff]
        %v2973 = vld [vmem:[%s2 + $0x570] sm:$0xff]
        %v2974 = vld [vmem:[%s2 + $0x578] sm:$0xff]
        %v2975 = vld [vmem:[%s2 + $0x580] sm:$0xff]
        %v2976 = vld [vmem:[%s2 + $0x588] sm:$0xff]
        %v2977 = vld [vmem:[%s2 + $0x590] sm:$0xff]
        %v2978 = vld [vmem:[%s2 + $0x598] sm:$0xff]
        %v2979 = vld [vmem:[%s2 + $0x5a0] sm:$0xff]
        %v2980 = vld [vmem:[%s2 + $0x5a8] sm:$0xff]
        %v2981 = vld [vmem:[%s2 + $0x5b0] sm:$0xff]
        %v2982 = vld [vmem:[%s2 + $0x5b8] sm:$0xff]
        %v2983 = vld [vmem:[%s2 + $0x5c0] sm:$0xff]
        %v2984 = vld [vmem:[%s2 + $0x5c8] sm:$0xff]
        %v2985 = vld [vmem:[%s2 + $0x5d0] sm:$0xff]
        %v2986 = vld [vmem:[%s2 + $0x5d8] sm:$0xff]
        %v2987 = vld [vmem:[%s2 + $0x5e0] sm:$0xff]
        %v2988 = vld [vmem:[%s2 + $0x5e8] sm:$0xff]
        %v2989 = vld [vmem:[%s2 + $0x5f0] sm:$0xff]
        %v2990 = vld [vmem:[%s2 + $0x5f8] sm:$0xff]
        %v2991 = vpack.c.bf16 %v2800, %v2799
        %v2992 = vpack.c.bf16 %v2802, %v2801
        %v2993 = vpack.c.bf16 %v2804, %v2803
        %v2994 = vpack.c.bf16 %v2806, %v2805
        %v2995 = vpack.c.bf16 %v2808, %v2807
        %v2996 = vpack.c.bf16 %v2810, %v2809
        %v2997 = vpack.c.bf16 %v2812, %v2811
        %v2998 = vpack.c.bf16 %v2814, %v2813
        %v2999 = vpack.c.bf16 %v2816, %v2815
        %v3000 = vpack.c.bf16 %v2818, %v2817
        %v3001 = vpack.c.bf16 %v2820, %v2819
        %v3002 = vpack.c.bf16 %v2822, %v2821
        %v3003 = vpack.c.bf16 %v2824, %v2823
        %v3004 = vpack.c.bf16 %v2826, %v2825
        %v3005 = vpack.c.bf16 %v2828, %v2827
        %v3006 = vpack.c.bf16 %v2830, %v2829
        %v3007 = vpack.c.bf16 %v2832, %v2831
        %v3008 = vpack.c.bf16 %v2834, %v2833
        %v3009 = vpack.c.bf16 %v2836, %v2835
        %v3010 = vpack.c.bf16 %v2838, %v2837
        %v3011 = vpack.c.bf16 %v2840, %v2839
        %v3012 = vpack.c.bf16 %v2842, %v2841
        %v3013 = vpack.c.bf16 %v2844, %v2843
        %v3014 = vpack.c.bf16 %v2846, %v2845
        %v3015 = vpack.c.bf16 %v2848, %v2847
        %v3016 = vpack.c.bf16 %v2850, %v2849
        %v3017 = vpack.c.bf16 %v2852, %v2851
        %v3018 = vpack.c.bf16 %v2854, %v2853
        %v3019 = vpack.c.bf16 %v2856, %v2855
        %v3020 = vpack.c.bf16 %v2858, %v2857
        %v3021 = vpack.c.bf16 %v2860, %v2859
        %v3022 = vpack.c.bf16 %v2862, %v2861
        %v3023 = vpack.c.bf16 %v2864, %v2863
        %v3024 = vpack.c.bf16 %v2866, %v2865
        %v3025 = vpack.c.bf16 %v2868, %v2867
        %v3026 = vpack.c.bf16 %v2870, %v2869
        %v3027 = vpack.c.bf16 %v2872, %v2871
        %v3028 = vpack.c.bf16 %v2874, %v2873
        %v3029 = vpack.c.bf16 %v2876, %v2875
        %v3030 = vpack.c.bf16 %v2878, %v2877
        %v3031 = vpack.c.bf16 %v2880, %v2879
        %v3032 = vpack.c.bf16 %v2882, %v2881
        %v3033 = vpack.c.bf16 %v2884, %v2883
        %v3034 = vpack.c.bf16 %v2886, %v2885
        %v3035 = vpack.c.bf16 %v2888, %v2887
        %v3036 = vpack.c.bf16 %v2890, %v2889
        %v3037 = vpack.c.bf16 %v2892, %v2891
        %v3038 = vpack.c.bf16 %v2894, %v2893
        %v3039 = vpack.c.bf16 %v2896, %v2895
        %v3040 = vpack.c.bf16 %v2898, %v2897
        %v3041 = vpack.c.bf16 %v2900, %v2899
        %v3042 = vpack.c.bf16 %v2902, %v2901
        %v3043 = vpack.c.bf16 %v2904, %v2903
        %v3044 = vpack.c.bf16 %v2906, %v2905
        %v3045 = vpack.c.bf16 %v2908, %v2907
        %v3046 = vpack.c.bf16 %v2910, %v2909
        %v3047 = vpack.c.bf16 %v2912, %v2911
        %v3048 = vpack.c.bf16 %v2914, %v2913
        %v3049 = vpack.c.bf16 %v2916, %v2915
        %v3050 = vpack.c.bf16 %v2918, %v2917
        %v3051 = vpack.c.bf16 %v2920, %v2919
        %v3052 = vpack.c.bf16 %v2922, %v2921
        %v3053 = vpack.c.bf16 %v2924, %v2923
        %v3054 = vpack.c.bf16 %v2926, %v2925
        %v3055 = vpack.c.bf16 %v2928, %v2927
        %v3056 = vpack.c.bf16 %v2930, %v2929
        %v3057 = vpack.c.bf16 %v2932, %v2931
        %v3058 = vpack.c.bf16 %v2934, %v2933
        %v3059 = vpack.c.bf16 %v2936, %v2935
        %v3060 = vpack.c.bf16 %v2938, %v2937
        %v3061 = vpack.c.bf16 %v2940, %v2939
        %v3062 = vpack.c.bf16 %v2942, %v2941
        %v3063 = vpack.c.bf16 %v2944, %v2943
        %v3064 = vpack.c.bf16 %v2946, %v2945
        %v3065 = vpack.c.bf16 %v2948, %v2947
        %v3066 = vpack.c.bf16 %v2950, %v2949
        %v3067 = vpack.c.bf16 %v2952, %v2951
        %v3068 = vpack.c.bf16 %v2954, %v2953
        %v3069 = vpack.c.bf16 %v2956, %v2955
        %v3070 = vpack.c.bf16 %v2958, %v2957
        %v3071 = vpack.c.bf16 %v2960, %v2959
        %v3072 = vpack.c.bf16 %v2962, %v2961
        %v3073 = vpack.c.bf16 %v2964, %v2963
        %v3074 = vpack.c.bf16 %v2966, %v2965
        %v3075 = vpack.c.bf16 %v2968, %v2967
        %v3076 = vpack.c.bf16 %v2970, %v2969
        %v3077 = vpack.c.bf16 %v2972, %v2971
        %v3078 = vpack.c.bf16 %v2974, %v2973
        %v3079 = vpack.c.bf16 %v2976, %v2975
        %v3080 = vpack.c.bf16 %v2978, %v2977
        %v3081 = vpack.c.bf16 %v2980, %v2979
        %v3082 = vpack.c.bf16 %v2982, %v2981
        %v3083 = vpack.c.bf16 %v2984, %v2983
        %v3084 = vpack.c.bf16 %v2986, %v2985
        %v3085 = vpack.c.bf16 %v2988, %v2987
        %v3086 = vpack.c.bf16 %v2990, %v2989
        %3087 = vmatprep.subr.bf16.mxu0 0
        %3088 = vmatpush1.bf16.msra.mxu0 %v2998
        %3089 = vmatprep.subr.bf16.mxu0 0
        %3090 = vmatpush1.bf16.msra.mxu0 %v2997
        %3091 = vmatprep.subr.bf16.mxu0 0
        %3092 = vmatpush1.bf16.msra.mxu0 %v2996
        %3093 = vmatprep.subr.bf16.mxu0 0
        %3094 = vmatpush1.bf16.msra.mxu0 %v2995
        %3095 = vmatprep.subr.bf16.mxu0 0
        %3096 = vmatpush1.bf16.msra.mxu0 %v2994
        %3097 = vmatprep.subr.bf16.mxu0 0
        %3098 = vmatpush1.bf16.msra.mxu0 %v2993
        %3099 = vmatprep.subr.bf16.mxu0 0
        %3100 = vmatpush1.bf16.msra.mxu0 %v2992
        %3101 = vmatprep.subr.bf16.mxu0 0
        %3102 = vmatpush1.bf16.msra.mxu0 %v2991
        %3103 = vmatprep.subr.bf16.mxu0 0
        %3104 = vmatpush2.bf16.msra.mxu0 %v3006
        %3105 = vmatprep.subr.bf16.mxu0 0
        %3106 = vmatpush2.bf16.msra.mxu0 %v3005
        %3107 = vmatprep.subr.bf16.mxu0 0
        %3108 = vmatpush2.bf16.msra.mxu0 %v3004
        %3109 = vmatprep.subr.bf16.mxu0 0
        %3110 = vmatpush2.bf16.msra.mxu0 %v3003
        %3111 = vmatprep.subr.bf16.mxu0 0
        %3112 = vmatpush2.bf16.msra.mxu0 %v3002
        %3113 = vmatprep.subr.bf16.mxu0 0
        %3114 = vmatpush2.bf16.msra.mxu0 %v3001
        %3115 = vmatprep.subr.bf16.mxu0 0
        %3116 = vmatpush2.bf16.msra.mxu0 %v3000
        %3117 = vmatprep.subr.bf16.mxu0 0
        %3118 = vmatpush2.bf16.msra.mxu0 %v2999
        %3119 = vmatprep.mubr.bf16.mxu0 %v2704
        %3120 = vmatmul.mubr.bf16.gmra.mxu0 %v2703
        %v3121 = vpop.f32.mrf.mxu0
        %v3122 = vadd.f32 0.0, %v3121
        %v3123 = vpop.f32.mrf.mxu0
        %v3124 = vpop.f32.mrf.mxu0
        %v3125 = vadd.f32 0.0, %v3124
        %v3126 = vpop.f32.mrf.mxu0
        %3127 = vmatprep.mubr.bf16.mxu0 %v2707
        %3128 = vmatmul.mubr.bf16.gmra.mxu0 %v2706
        %v3129 = vpop.f32.mrf.mxu0
        %v3130 = vadd.f32 0.0, %v3129
        %v3131 = vpop.f32.mrf.mxu0
        %v3132 = vpop.f32.mrf.mxu0
        %v3133 = vadd.f32 0.0, %v3132
        %v3134 = vpop.f32.mrf.mxu0
        %3135 = vmatprep.mubr.bf16.mxu0 %v2710
        %3136 = vmatmul.mubr.bf16.gmra.mxu0 %v2709
        %v3137 = vpop.f32.mrf.mxu0
        %v3138 = vadd.f32 0.0, %v3137
        %v3139 = vpop.f32.mrf.mxu0
        %v3140 = vpop.f32.mrf.mxu0
        %v3141 = vadd.f32 0.0, %v3140
        %v3142 = vpop.f32.mrf.mxu0
        %3143 = vmatprep.mubr.bf16.mxu0 %v2713
        %3144 = vmatmul.mubr.bf16.gmra.mxu0 %v2712
        %v3145 = vpop.f32.mrf.mxu0
        %v3146 = vadd.f32 0.0, %v3145
        %v3147 = vpop.f32.mrf.mxu0
        %v3148 = vpop.f32.mrf.mxu0
        %v3149 = vadd.f32 0.0, %v3148
        %v3150 = vpop.f32.mrf.mxu0
        %3151 = vmatprep.mubr.bf16.mxu0 %v2716
        %3152 = vmatmul.mubr.bf16.gmra.mxu0 %v2715
        %v3153 = vpop.f32.mrf.mxu0
        %v3154 = vadd.f32 0.0, %v3153
        %v3155 = vpop.f32.mrf.mxu0
        %v3156 = vpop.f32.mrf.mxu0
        %v3157 = vadd.f32 0.0, %v3156
        %v3158 = vpop.f32.mrf.mxu0
        %3159 = vmatprep.mubr.bf16.mxu0 %v2719
        %3160 = vmatmul.mubr.bf16.gmra.mxu0 %v2718
        %v3161 = vpop.f32.mrf.mxu0
        %v3162 = vadd.f32 0.0, %v3161
        %v3163 = vpop.f32.mrf.mxu0
        %v3164 = vpop.f32.mrf.mxu0
        %v3165 = vadd.f32 0.0, %v3164
        %v3166 = vpop.f32.mrf.mxu0
        %3167 = vmatprep.mubr.bf16.mxu0 %v2722
        %3168 = vmatmul.mubr.bf16.gmra.mxu0 %v2721
        %v3169 = vpop.f32.mrf.mxu0
        %v3170 = vadd.f32 0.0, %v3169
        %v3171 = vpop.f32.mrf.mxu0
        %v3172 = vpop.f32.mrf.mxu0
        %v3173 = vadd.f32 0.0, %v3172
        %v3174 = vpop.f32.mrf.mxu0
        %3175 = vmatprep.mubr.bf16.mxu0 %v2725
        %3176 = vmatmul.mubr.bf16.gmra.mxu0 %v2724
        %v3177 = vpop.f32.mrf.mxu0
        %v3178 = vadd.f32 0.0, %v3177
        %v3179 = vpop.f32.mrf.mxu0
        %v3180 = vpop.f32.mrf.mxu0
        %v3181 = vadd.f32 0.0, %v3180
        %v3182 = vpop.f32.mrf.mxu0
        %3183 = vdwg.mxu0
        %3184 = vmatprep.subr.bf16.mxu0 0
        %3185 = vmatpush1.bf16.msra.mxu0 %v3014
        %3186 = vmatprep.subr.bf16.mxu0 0
        %3187 = vmatpush1.bf16.msra.mxu0 %v3013
        %3188 = vmatprep.subr.bf16.mxu0 0
        %3189 = vmatpush1.bf16.msra.mxu0 %v3012
        %3190 = vmatprep.subr.bf16.mxu0 0
        %3191 = vmatpush1.bf16.msra.mxu0 %v3011
        %3192 = vmatprep.subr.bf16.mxu0 0
        %3193 = vmatpush1.bf16.msra.mxu0 %v3010
        %3194 = vmatprep.subr.bf16.mxu0 0
        %3195 = vmatpush1.bf16.msra.mxu0 %v3009
        %3196 = vmatprep.subr.bf16.mxu0 0
        %3197 = vmatpush1.bf16.msra.mxu0 %v3008
        %3198 = vmatprep.subr.bf16.mxu0 0
        %3199 = vmatpush1.bf16.msra.mxu0 %v3007
        %3200 = vmatprep.subr.bf16.mxu0 0
        %3201 = vmatpush2.bf16.msra.mxu0 0
        %3202 = vmatprep.subr.bf16.mxu0 0
        %3203 = vmatpush2.bf16.msra.mxu0 0
        %3204 = vmatprep.subr.bf16.mxu0 0
        %3205 = vmatpush2.bf16.msra.mxu0 0
        %3206 = vmatprep.subr.bf16.mxu0 0
        %3207 = vmatpush2.bf16.msra.mxu0 0
        %3208 = vmatprep.subr.bf16.mxu0 0
        %3209 = vmatpush2.bf16.msra.mxu0 0
        %3210 = vmatprep.subr.bf16.mxu0 0
        %3211 = vmatpush2.bf16.msra.mxu0 0
        %3212 = vmatprep.subr.bf16.mxu0 0
        %3213 = vmatpush2.bf16.msra.mxu0 0
        %3214 = vmatprep.subr.bf16.mxu0 0
        %3215 = vmatpush2.bf16.msra.mxu0 0
        %3216 = vmatprep.mubr.bf16.mxu0 0
        %3217 = vmatmul.mubr.bf16.gmra.mxu0 %v2705
        %v3218 = vpop.f32.mrf.mxu0
        %v3219 = vadd.f32 %v3122, %v3218
        %v3220 = vpop.f32.mrf.mxu0
        %v3221 = vpop.f32.mrf.mxu0
        %v3222 = vadd.f32 %v3125, %v3221
        %v3223 = vpop.f32.mrf.mxu0
        %3224 = vmatprep.mubr.bf16.mxu0 0
        %3225 = vmatmul.mubr.bf16.gmra.mxu0 %v2708
        %v3226 = vpop.f32.mrf.mxu0
        %v3227 = vadd.f32 %v3130, %v3226
        %v3228 = vpop.f32.mrf.mxu0
        %v3229 = vpop.f32.mrf.mxu0
        %v3230 = vadd.f32 %v3133, %v3229
        %v3231 = vpop.f32.mrf.mxu0
        %3232 = vmatprep.mubr.bf16.mxu0 0
        %3233 = vmatmul.mubr.bf16.gmra.mxu0 %v2711
        %v3234 = vpop.f32.mrf.mxu0
        %v3235 = vadd.f32 %v3138, %v3234
        %v3236 = vpop.f32.mrf.mxu0
        %v3237 = vpop.f32.mrf.mxu0
        %v3238 = vadd.f32 %v3141, %v3237
        %v3239 = vpop.f32.mrf.mxu0
        %3240 = vmatprep.mubr.bf16.mxu0 0
        %3241 = vmatmul.mubr.bf16.gmra.mxu0 %v2714
        %v3242 = vpop.f32.mrf.mxu0
        %v3243 = vadd.f32 %v3146, %v3242
        %v3244 = vpop.f32.mrf.mxu0
        %v3245 = vpop.f32.mrf.mxu0
        %v3246 = vadd.f32 %v3149, %v3245
        %v3247 = vpop.f32.mrf.mxu0
        %3248 = vmatprep.mubr.bf16.mxu0 0
        %3249 = vmatmul.mubr.bf16.gmra.mxu0 %v2717
        %v3250 = vpop.f32.mrf.mxu0
        %v3251 = vadd.f32 %v3154, %v3250
        %v3252 = vpop.f32.mrf.mxu0
        %v3253 = vpop.f32.mrf.mxu0
        %v3254 = vadd.f32 %v3157, %v3253
        %v3255 = vpop.f32.mrf.mxu0
        %3256 = vmatprep.mubr.bf16.mxu0 0
        %3257 = vmatmul.mubr.bf16.gmra.mxu0 %v2720
        %v3258 = vpop.f32.mrf.mxu0
        %v3259 = vadd.f32 %v3162, %v3258
        %v3260 = vpop.f32.mrf.mxu0
        %v3261 = vpop.f32.mrf.mxu0
        %v3262 = vadd.f32 %v3165, %v3261
        %v3263 = vpop.f32.mrf.mxu0
        %3264 = vmatprep.mubr.bf16.mxu0 0
        %3265 = vmatmul.mubr.bf16.gmra.mxu0 %v2723
        %v3266 = vpop.f32.mrf.mxu0
        %v3267 = vadd.f32 %v3170, %v3266
        %v3268 = vpop.f32.mrf.mxu0
        %v3269 = vpop.f32.mrf.mxu0
        %v3270 = vadd.f32 %v3173, %v3269
        %v3271 = vpop.f32.mrf.mxu0
        %3272 = vmatprep.mubr.bf16.mxu0 0
        %3273 = vmatmul.mubr.bf16.gmra.mxu0 %v2726
        %v3274 = vpop.f32.mrf.mxu0
        %v3275 = vadd.f32 %v3178, %v3274
        %v3276 = vpop.f32.mrf.mxu0
        %v3277 = vpop.f32.mrf.mxu0
        %v3278 = vadd.f32 %v3181, %v3277
        %v3279 = vpop.f32.mrf.mxu0
        %3280 = vdwg.mxu0
        %3281 = vmatprep.subr.bf16.mxu0 0
        %3282 = vmatpush1.bf16.msra.mxu0 %v3022
        %3283 = vmatprep.subr.bf16.mxu0 0
        %3284 = vmatpush1.bf16.msra.mxu0 %v3021
        %3285 = vmatprep.subr.bf16.mxu0 0
        %3286 = vmatpush1.bf16.msra.mxu0 %v3020
        %3287 = vmatprep.subr.bf16.mxu0 0
        %3288 = vmatpush1.bf16.msra.mxu0 %v3019
        %3289 = vmatprep.subr.bf16.mxu0 0
        %3290 = vmatpush1.bf16.msra.mxu0 %v3018
        %3291 = vmatprep.subr.bf16.mxu0 0
        %3292 = vmatpush1.bf16.msra.mxu0 %v3017
        %3293 = vmatprep.subr.bf16.mxu0 0
        %3294 = vmatpush1.bf16.msra.mxu0 %v3016
        %3295 = vmatprep.subr.bf16.mxu0 0
        %3296 = vmatpush1.bf16.msra.mxu0 %v3015
        %3297 = vmatprep.subr.bf16.mxu0 0
        %3298 = vmatpush2.bf16.msra.mxu0 %v3030
        %3299 = vmatprep.subr.bf16.mxu0 0
        %3300 = vmatpush2.bf16.msra.mxu0 %v3029
        %3301 = vmatprep.subr.bf16.mxu0 0
        %3302 = vmatpush2.bf16.msra.mxu0 %v3028
        %3303 = vmatprep.subr.bf16.mxu0 0
        %3304 = vmatpush2.bf16.msra.mxu0 %v3027
        %3305 = vmatprep.subr.bf16.mxu0 0
        %3306 = vmatpush2.bf16.msra.mxu0 %v3026
        %3307 = vmatprep.subr.bf16.mxu0 0
        %3308 = vmatpush2.bf16.msra.mxu0 %v3025
        %3309 = vmatprep.subr.bf16.mxu0 0
        %3310 = vmatpush2.bf16.msra.mxu0 %v3024
        %3311 = vmatprep.subr.bf16.mxu0 0
        %3312 = vmatpush2.bf16.msra.mxu0 %v3023
        %3313 = vmatprep.mubr.bf16.mxu0 %v2728
        %3314 = vmatmul.mubr.bf16.gmra.mxu0 %v2727
        %v3315 = vpop.f32.mrf.mxu0
        %v3316 = vadd.f32 0.0, %v3315
        %v3317 = vpop.f32.mrf.mxu0
        %v3318 = vpop.f32.mrf.mxu0
        %v3319 = vadd.f32 0.0, %v3318
        %v3320 = vpop.f32.mrf.mxu0
        %3321 = vmatprep.mubr.bf16.mxu0 %v2731
        %3322 = vmatmul.mubr.bf16.gmra.mxu0 %v2730
        %v3323 = vpop.f32.mrf.mxu0
        %v3324 = vadd.f32 0.0, %v3323
        %v3325 = vpop.f32.mrf.mxu0
        %v3326 = vpop.f32.mrf.mxu0
        %v3327 = vadd.f32 0.0, %v3326
        %v3328 = vpop.f32.mrf.mxu0
        %3329 = vmatprep.mubr.bf16.mxu0 %v2734
        %3330 = vmatmul.mubr.bf16.gmra.mxu0 %v2733
        %v3331 = vpop.f32.mrf.mxu0
        %v3332 = vadd.f32 0.0, %v3331
        %v3333 = vpop.f32.mrf.mxu0
        %v3334 = vpop.f32.mrf.mxu0
        %v3335 = vadd.f32 0.0, %v3334
        %v3336 = vpop.f32.mrf.mxu0
        %3337 = vmatprep.mubr.bf16.mxu0 %v2737
        %3338 = vmatmul.mubr.bf16.gmra.mxu0 %v2736
        %v3339 = vpop.f32.mrf.mxu0
        %v3340 = vadd.f32 0.0, %v3339
        %v3341 = vpop.f32.mrf.mxu0
        %v3342 = vpop.f32.mrf.mxu0
        %v3343 = vadd.f32 0.0, %v3342
        %v3344 = vpop.f32.mrf.mxu0
        %3345 = vmatprep.mubr.bf16.mxu0 %v2740
        %3346 = vmatmul.mubr.bf16.gmra.mxu0 %v2739
        %v3347 = vpop.f32.mrf.mxu0
        %v3348 = vadd.f32 0.0, %v3347
        %v3349 = vpop.f32.mrf.mxu0
        %v3350 = vpop.f32.mrf.mxu0
        %v3351 = vadd.f32 0.0, %v3350
        %v3352 = vpop.f32.mrf.mxu0
        %3353 = vmatprep.mubr.bf16.mxu0 %v2743
        %3354 = vmatmul.mubr.bf16.gmra.mxu0 %v2742
        %v3355 = vpop.f32.mrf.mxu0
        %v3356 = vadd.f32 0.0, %v3355
        %v3357 = vpop.f32.mrf.mxu0
        %v3358 = vpop.f32.mrf.mxu0
        %v3359 = vadd.f32 0.0, %v3358
        %v3360 = vpop.f32.mrf.mxu0
        %3361 = vmatprep.mubr.bf16.mxu0 %v2746
        %3362 = vmatmul.mubr.bf16.gmra.mxu0 %v2745
        %v3363 = vpop.f32.mrf.mxu0
        %v3364 = vadd.f32 0.0, %v3363
        %v3365 = vpop.f32.mrf.mxu0
        %v3366 = vpop.f32.mrf.mxu0
        %v3367 = vadd.f32 0.0, %v3366
        %v3368 = vpop.f32.mrf.mxu0
        %3369 = vmatprep.mubr.bf16.mxu0 %v2749
        %3370 = vmatmul.mubr.bf16.gmra.mxu0 %v2748
        %v3371 = vpop.f32.mrf.mxu0
        %v3372 = vadd.f32 0.0, %v3371
        %v3373 = vpop.f32.mrf.mxu0
        %v3374 = vpop.f32.mrf.mxu0
        %v3375 = vadd.f32 0.0, %v3374
        %v3376 = vpop.f32.mrf.mxu0
        %3377 = vdwg.mxu0
        %3378 = vmatprep.subr.bf16.mxu0 0
        %3379 = vmatpush1.bf16.msra.mxu0 %v3038
        %3380 = vmatprep.subr.bf16.mxu0 0
        %3381 = vmatpush1.bf16.msra.mxu0 %v3037
        %3382 = vmatprep.subr.bf16.mxu0 0
        %3383 = vmatpush1.bf16.msra.mxu0 %v3036
        %3384 = vmatprep.subr.bf16.mxu0 0
        %3385 = vmatpush1.bf16.msra.mxu0 %v3035
        %3386 = vmatprep.subr.bf16.mxu0 0
        %3387 = vmatpush1.bf16.msra.mxu0 %v3034
        %3388 = vmatprep.subr.bf16.mxu0 0
        %3389 = vmatpush1.bf16.msra.mxu0 %v3033
        %3390 = vmatprep.subr.bf16.mxu0 0
        %3391 = vmatpush1.bf16.msra.mxu0 %v3032
        %3392 = vmatprep.subr.bf16.mxu0 0
        %3393 = vmatpush1.bf16.msra.mxu0 %v3031
        %3394 = vmatprep.subr.bf16.mxu0 0
        %3395 = vmatpush2.bf16.msra.mxu0 0
        %3396 = vmatprep.subr.bf16.mxu0 0
        %3397 = vmatpush2.bf16.msra.mxu0 0
        %3398 = vmatprep.subr.bf16.mxu0 0
        %3399 = vmatpush2.bf16.msra.mxu0 0
        %3400 = vmatprep.subr.bf16.mxu0 0
        %3401 = vmatpush2.bf16.msra.mxu0 0
        %3402 = vmatprep.subr.bf16.mxu0 0
        %3403 = vmatpush2.bf16.msra.mxu0 0
        %3404 = vmatprep.subr.bf16.mxu0 0
        %3405 = vmatpush2.bf16.msra.mxu0 0
        %3406 = vmatprep.subr.bf16.mxu0 0
        %3407 = vmatpush2.bf16.msra.mxu0 0
        %3408 = vmatprep.subr.bf16.mxu0 0
        %3409 = vmatpush2.bf16.msra.mxu0 0
        %3410 = vmatprep.mubr.bf16.mxu0 0
        %3411 = vmatmul.mubr.bf16.gmra.mxu0 %v2729
        %v3412 = vpop.f32.mrf.mxu0
        %v3413 = vadd.f32 %v3316, %v3412
        %v3414 = vpop.f32.mrf.mxu0
        %v3415 = vpop.f32.mrf.mxu0
        %v3416 = vadd.f32 %v3319, %v3415
        %v3417 = vpop.f32.mrf.mxu0
        %3418 = vmatprep.mubr.bf16.mxu0 0
        %3419 = vmatmul.mubr.bf16.gmra.mxu0 %v2732
        %v3420 = vpop.f32.mrf.mxu0
        %v3421 = vadd.f32 %v3324, %v3420
        %v3422 = vpop.f32.mrf.mxu0
        %v3423 = vpop.f32.mrf.mxu0
        %v3424 = vadd.f32 %v3327, %v3423
        %v3425 = vpop.f32.mrf.mxu0
        %3426 = vmatprep.mubr.bf16.mxu0 0
        %3427 = vmatmul.mubr.bf16.gmra.mxu0 %v2735
        %v3428 = vpop.f32.mrf.mxu0
        %v3429 = vadd.f32 %v3332, %v3428
        %v3430 = vpop.f32.mrf.mxu0
        %v3431 = vpop.f32.mrf.mxu0
        %v3432 = vadd.f32 %v3335, %v3431
        %v3433 = vpop.f32.mrf.mxu0
        %3434 = vmatprep.mubr.bf16.mxu0 0
        %3435 = vmatmul.mubr.bf16.gmra.mxu0 %v2738
        %v3436 = vpop.f32.mrf.mxu0
        %v3437 = vadd.f32 %v3340, %v3436
        %v3438 = vpop.f32.mrf.mxu0
        %v3439 = vpop.f32.mrf.mxu0
        %v3440 = vadd.f32 %v3343, %v3439
        %v3441 = vpop.f32.mrf.mxu0
        %3442 = vmatprep.mubr.bf16.mxu0 0
        %3443 = vmatmul.mubr.bf16.gmra.mxu0 %v2741
        %v3444 = vpop.f32.mrf.mxu0
        %v3445 = vadd.f32 %v3348, %v3444
        %v3446 = vpop.f32.mrf.mxu0
        %v3447 = vpop.f32.mrf.mxu0
        %v3448 = vadd.f32 %v3351, %v3447
        %v3449 = vpop.f32.mrf.mxu0
        %3450 = vmatprep.mubr.bf16.mxu0 0
        %3451 = vmatmul.mubr.bf16.gmra.mxu0 %v2744
        %v3452 = vpop.f32.mrf.mxu0
        %v3453 = vadd.f32 %v3356, %v3452
        %v3454 = vpop.f32.mrf.mxu0
        %v3455 = vpop.f32.mrf.mxu0
        %v3456 = vadd.f32 %v3359, %v3455
        %v3457 = vpop.f32.mrf.mxu0
        %3458 = vmatprep.mubr.bf16.mxu0 0
        %3459 = vmatmul.mubr.bf16.gmra.mxu0 %v2747
        %v3460 = vpop.f32.mrf.mxu0
        %v3461 = vadd.f32 %v3364, %v3460
        %v3462 = vpop.f32.mrf.mxu0
        %v3463 = vpop.f32.mrf.mxu0
        %v3464 = vadd.f32 %v3367, %v3463
        %v3465 = vpop.f32.mrf.mxu0
        %3466 = vmatprep.mubr.bf16.mxu0 0
        %3467 = vmatmul.mubr.bf16.gmra.mxu0 %v2750
        %v3468 = vpop.f32.mrf.mxu0
        %v3469 = vadd.f32 %v3372, %v3468
        %v3470 = vpop.f32.mrf.mxu0
        %v3471 = vpop.f32.mrf.mxu0
        %v3472 = vadd.f32 %v3375, %v3471
        %v3473 = vpop.f32.mrf.mxu0
        %3474 = vdwg.mxu0
        %3475 = vmatprep.subr.bf16.mxu0 0
        %3476 = vmatpush1.bf16.msra.mxu0 %v3046
        %3477 = vmatprep.subr.bf16.mxu0 0
        %3478 = vmatpush1.bf16.msra.mxu0 %v3045
        %3479 = vmatprep.subr.bf16.mxu0 0
        %3480 = vmatpush1.bf16.msra.mxu0 %v3044
        %3481 = vmatprep.subr.bf16.mxu0 0
        %3482 = vmatpush1.bf16.msra.mxu0 %v3043
        %3483 = vmatprep.subr.bf16.mxu0 0
        %3484 = vmatpush1.bf16.msra.mxu0 %v3042
        %3485 = vmatprep.subr.bf16.mxu0 0
        %3486 = vmatpush1.bf16.msra.mxu0 %v3041
        %3487 = vmatprep.subr.bf16.mxu0 0
        %3488 = vmatpush1.bf16.msra.mxu0 %v3040
        %3489 = vmatprep.subr.bf16.mxu0 0
        %3490 = vmatpush1.bf16.msra.mxu0 %v3039
        %3491 = vmatprep.subr.bf16.mxu0 0
        %3492 = vmatpush2.bf16.msra.mxu0 %v3054
        %3493 = vmatprep.subr.bf16.mxu0 0
        %3494 = vmatpush2.bf16.msra.mxu0 %v3053
        %3495 = vmatprep.subr.bf16.mxu0 0
        %3496 = vmatpush2.bf16.msra.mxu0 %v3052
        %3497 = vmatprep.subr.bf16.mxu0 0
        %3498 = vmatpush2.bf16.msra.mxu0 %v3051
        %3499 = vmatprep.subr.bf16.mxu0 0
        %3500 = vmatpush2.bf16.msra.mxu0 %v3050
        %3501 = vmatprep.subr.bf16.mxu0 0
        %3502 = vmatpush2.bf16.msra.mxu0 %v3049
        %3503 = vmatprep.subr.bf16.mxu0 0
        %3504 = vmatpush2.bf16.msra.mxu0 %v3048
        %3505 = vmatprep.subr.bf16.mxu0 0
        %3506 = vmatpush2.bf16.msra.mxu0 %v3047
        %3507 = vmatprep.mubr.bf16.mxu0 %v2752
        %3508 = vmatmul.mubr.bf16.gmra.mxu0 %v2751
        %v3509 = vpop.f32.mrf.mxu0
        %v3510 = vadd.f32 0.0, %v3509
        %v3511 = vpop.f32.mrf.mxu0
        %v3512 = vpop.f32.mrf.mxu0
        %v3513 = vadd.f32 0.0, %v3512
        %v3514 = vpop.f32.mrf.mxu0
        %3515 = vmatprep.mubr.bf16.mxu0 %v2755
        %3516 = vmatmul.mubr.bf16.gmra.mxu0 %v2754
        %v3517 = vpop.f32.mrf.mxu0
        %v3518 = vadd.f32 0.0, %v3517
        %v3519 = vpop.f32.mrf.mxu0
        %v3520 = vpop.f32.mrf.mxu0
        %v3521 = vadd.f32 0.0, %v3520
        %v3522 = vpop.f32.mrf.mxu0
        %3523 = vmatprep.mubr.bf16.mxu0 %v2758
        %3524 = vmatmul.mubr.bf16.gmra.mxu0 %v2757
        %v3525 = vpop.f32.mrf.mxu0
        %v3526 = vadd.f32 0.0, %v3525
        %v3527 = vpop.f32.mrf.mxu0
        %v3528 = vpop.f32.mrf.mxu0
        %v3529 = vadd.f32 0.0, %v3528
        %v3530 = vpop.f32.mrf.mxu0
        %3531 = vmatprep.mubr.bf16.mxu0 %v2761
        %3532 = vmatmul.mubr.bf16.gmra.mxu0 %v2760
        %v3533 = vpop.f32.mrf.mxu0
        %v3534 = vadd.f32 0.0, %v3533
        %v3535 = vpop.f32.mrf.mxu0
        %v3536 = vpop.f32.mrf.mxu0
        %v3537 = vadd.f32 0.0, %v3536
        %v3538 = vpop.f32.mrf.mxu0
        %3539 = vmatprep.mubr.bf16.mxu0 %v2764
        %3540 = vmatmul.mubr.bf16.gmra.mxu0 %v2763
        %v3541 = vpop.f32.mrf.mxu0
        %v3542 = vadd.f32 0.0, %v3541
        %v3543 = vpop.f32.mrf.mxu0
        %v3544 = vpop.f32.mrf.mxu0
        %v3545 = vadd.f32 0.0, %v3544
        %v3546 = vpop.f32.mrf.mxu0
        %3547 = vmatprep.mubr.bf16.mxu0 %v2767
        %3548 = vmatmul.mubr.bf16.gmra.mxu0 %v2766
        %v3549 = vpop.f32.mrf.mxu0
        %v3550 = vadd.f32 0.0, %v3549
        %v3551 = vpop.f32.mrf.mxu0
        %v3552 = vpop.f32.mrf.mxu0
        %v3553 = vadd.f32 0.0, %v3552
        %v3554 = vpop.f32.mrf.mxu0
        %3555 = vmatprep.mubr.bf16.mxu0 %v2770
        %3556 = vmatmul.mubr.bf16.gmra.mxu0 %v2769
        %v3557 = vpop.f32.mrf.mxu0
        %v3558 = vadd.f32 0.0, %v3557
        %v3559 = vpop.f32.mrf.mxu0
        %v3560 = vpop.f32.mrf.mxu0
        %v3561 = vadd.f32 0.0, %v3560
        %v3562 = vpop.f32.mrf.mxu0
        %3563 = vmatprep.mubr.bf16.mxu0 %v2773
        %3564 = vmatmul.mubr.bf16.gmra.mxu0 %v2772
        %v3565 = vpop.f32.mrf.mxu0
        %v3566 = vadd.f32 0.0, %v3565
        %v3567 = vpop.f32.mrf.mxu0
        %v3568 = vpop.f32.mrf.mxu0
        %v3569 = vadd.f32 0.0, %v3568
        %v3570 = vpop.f32.mrf.mxu0
        %3571 = vdwg.mxu0
        %3572 = vmatprep.subr.bf16.mxu0 0
        %3573 = vmatpush1.bf16.msra.mxu0 %v3062
        %3574 = vmatprep.subr.bf16.mxu0 0
        %3575 = vmatpush1.bf16.msra.mxu0 %v3061
        %3576 = vmatprep.subr.bf16.mxu0 0
        %3577 = vmatpush1.bf16.msra.mxu0 %v3060
        %3578 = vmatprep.subr.bf16.mxu0 0
        %3579 = vmatpush1.bf16.msra.mxu0 %v3059
        %3580 = vmatprep.subr.bf16.mxu0 0
        %3581 = vmatpush1.bf16.msra.mxu0 %v3058
        %3582 = vmatprep.subr.bf16.mxu0 0
        %3583 = vmatpush1.bf16.msra.mxu0 %v3057
        %3584 = vmatprep.subr.bf16.mxu0 0
        %3585 = vmatpush1.bf16.msra.mxu0 %v3056
        %3586 = vmatprep.subr.bf16.mxu0 0
        %3587 = vmatpush1.bf16.msra.mxu0 %v3055
        %3588 = vmatprep.subr.bf16.mxu0 0
        %3589 = vmatpush2.bf16.msra.mxu0 0
        %3590 = vmatprep.subr.bf16.mxu0 0
        %3591 = vmatpush2.bf16.msra.mxu0 0
        %3592 = vmatprep.subr.bf16.mxu0 0
        %3593 = vmatpush2.bf16.msra.mxu0 0
        %3594 = vmatprep.subr.bf16.mxu0 0
        %3595 = vmatpush2.bf16.msra.mxu0 0
        %3596 = vmatprep.subr.bf16.mxu0 0
        %3597 = vmatpush2.bf16.msra.mxu0 0
        %3598 = vmatprep.subr.bf16.mxu0 0
        %3599 = vmatpush2.bf16.msra.mxu0 0
        %3600 = vmatprep.subr.bf16.mxu0 0
        %3601 = vmatpush2.bf16.msra.mxu0 0
        %3602 = vmatprep.subr.bf16.mxu0 0
        %3603 = vmatpush2.bf16.msra.mxu0 0
        %3604 = vmatprep.mubr.bf16.mxu0 0
        %3605 = vmatmul.mubr.bf16.gmra.mxu0 %v2753
        %v3606 = vpop.f32.mrf.mxu0
        %v3607 = vadd.f32 %v3510, %v3606
        %v3608 = vpop.f32.mrf.mxu0
        %v3609 = vpop.f32.mrf.mxu0
        %v3610 = vadd.f32 %v3513, %v3609
        %v3611 = vpop.f32.mrf.mxu0
        %3612 = vmatprep.mubr.bf16.mxu0 0
        %3613 = vmatmul.mubr.bf16.gmra.mxu0 %v2756
        %v3614 = vpop.f32.mrf.mxu0
        %v3615 = vadd.f32 %v3518, %v3614
        %v3616 = vpop.f32.mrf.mxu0
        %v3617 = vpop.f32.mrf.mxu0
        %v3618 = vadd.f32 %v3521, %v3617
        %v3619 = vpop.f32.mrf.mxu0
        %3620 = vmatprep.mubr.bf16.mxu0 0
        %3621 = vmatmul.mubr.bf16.gmra.mxu0 %v2759
        %v3622 = vpop.f32.mrf.mxu0
        %v3623 = vadd.f32 %v3526, %v3622
        %v3624 = vpop.f32.mrf.mxu0
        %v3625 = vpop.f32.mrf.mxu0
        %v3626 = vadd.f32 %v3529, %v3625
        %v3627 = vpop.f32.mrf.mxu0
        %3628 = vmatprep.mubr.bf16.mxu0 0
        %3629 = vmatmul.mubr.bf16.gmra.mxu0 %v2762
        %v3630 = vpop.f32.mrf.mxu0
        %v3631 = vadd.f32 %v3534, %v3630
        %v3632 = vpop.f32.mrf.mxu0
        %v3633 = vpop.f32.mrf.mxu0
        %v3634 = vadd.f32 %v3537, %v3633
        %v3635 = vpop.f32.mrf.mxu0
        %3636 = vmatprep.mubr.bf16.mxu0 0
        %3637 = vmatmul.mubr.bf16.gmra.mxu0 %v2765
        %v3638 = vpop.f32.mrf.mxu0
        %v3639 = vadd.f32 %v3542, %v3638
        %v3640 = vpop.f32.mrf.mxu0
        %v3641 = vpop.f32.mrf.mxu0
        %v3642 = vadd.f32 %v3545, %v3641
        %v3643 = vpop.f32.mrf.mxu0
        %3644 = vmatprep.mubr.bf16.mxu0 0
        %3645 = vmatmul.mubr.bf16.gmra.mxu0 %v2768
        %v3646 = vpop.f32.mrf.mxu0
        %v3647 = vadd.f32 %v3550, %v3646
        %v3648 = vpop.f32.mrf.mxu0
        %v3649 = vpop.f32.mrf.mxu0
        %v3650 = vadd.f32 %v3553, %v3649
        %v3651 = vpop.f32.mrf.mxu0
        %3652 = vmatprep.mubr.bf16.mxu0 0
        %3653 = vmatmul.mubr.bf16.gmra.mxu0 %v2771
        %v3654 = vpop.f32.mrf.mxu0
        %v3655 = vadd.f32 %v3558, %v3654
        %v3656 = vpop.f32.mrf.mxu0
        %v3657 = vpop.f32.mrf.mxu0
        %v3658 = vadd.f32 %v3561, %v3657
        %v3659 = vpop.f32.mrf.mxu0
        %3660 = vmatprep.mubr.bf16.mxu0 0
        %3661 = vmatmul.mubr.bf16.gmra.mxu0 %v2774
        %v3662 = vpop.f32.mrf.mxu0
        %v3663 = vadd.f32 %v3566, %v3662
        %v3664 = vpop.f32.mrf.mxu0
        %v3665 = vpop.f32.mrf.mxu0
        %v3666 = vadd.f32 %v3569, %v3665
        %v3667 = vpop.f32.mrf.mxu0
        %3668 = vdwg.mxu0
        %3669 = vmatprep.subr.bf16.mxu0 0
        %3670 = vmatpush1.bf16.msra.mxu0 %v3070
        %3671 = vmatprep.subr.bf16.mxu0 0
        %3672 = vmatpush1.bf16.msra.mxu0 %v3069
        %3673 = vmatprep.subr.bf16.mxu0 0
        %3674 = vmatpush1.bf16.msra.mxu0 %v3068
        %3675 = vmatprep.subr.bf16.mxu0 0
        %3676 = vmatpush1.bf16.msra.mxu0 %v3067
        %3677 = vmatprep.subr.bf16.mxu0 0
        %3678 = vmatpush1.bf16.msra.mxu0 %v3066
        %3679 = vmatprep.subr.bf16.mxu0 0
        %3680 = vmatpush1.bf16.msra.mxu0 %v3065
        %3681 = vmatprep.subr.bf16.mxu0 0
        %3682 = vmatpush1.bf16.msra.mxu0 %v3064
        %3683 = vmatprep.subr.bf16.mxu0 0
        %3684 = vmatpush1.bf16.msra.mxu0 %v3063
        %3685 = vmatprep.subr.bf16.mxu0 0
        %3686 = vmatpush2.bf16.msra.mxu0 %v3078
        %3687 = vmatprep.subr.bf16.mxu0 0
        %3688 = vmatpush2.bf16.msra.mxu0 %v3077
        %3689 = vmatprep.subr.bf16.mxu0 0
        %3690 = vmatpush2.bf16.msra.mxu0 %v3076
        %3691 = vmatprep.subr.bf16.mxu0 0
        %3692 = vmatpush2.bf16.msra.mxu0 %v3075
        %3693 = vmatprep.subr.bf16.mxu0 0
        %3694 = vmatpush2.bf16.msra.mxu0 %v3074
        %3695 = vmatprep.subr.bf16.mxu0 0
        %3696 = vmatpush2.bf16.msra.mxu0 %v3073
        %3697 = vmatprep.subr.bf16.mxu0 0
        %3698 = vmatpush2.bf16.msra.mxu0 %v3072
        %3699 = vmatprep.subr.bf16.mxu0 0
        %3700 = vmatpush2.bf16.msra.mxu0 %v3071
        %3701 = vmatprep.mubr.bf16.mxu0 %v2776
        %3702 = vmatmul.mubr.bf16.gmra.mxu0 %v2775
        %v3703 = vpop.f32.mrf.mxu0
        %v3704 = vadd.f32 0.0, %v3703
        %v3705 = vpop.f32.mrf.mxu0
        %v3706 = vpop.f32.mrf.mxu0
        %v3707 = vadd.f32 0.0, %v3706
        %v3708 = vpop.f32.mrf.mxu0
        %3709 = vmatprep.mubr.bf16.mxu0 %v2779
        %3710 = vmatmul.mubr.bf16.gmra.mxu0 %v2778
        %v3711 = vpop.f32.mrf.mxu0
        %v3712 = vadd.f32 0.0, %v3711
        %v3713 = vpop.f32.mrf.mxu0
        %v3714 = vpop.f32.mrf.mxu0
        %v3715 = vadd.f32 0.0, %v3714
        %v3716 = vpop.f32.mrf.mxu0
        %3717 = vmatprep.mubr.bf16.mxu0 %v2782
        %3718 = vmatmul.mubr.bf16.gmra.mxu0 %v2781
        %v3719 = vpop.f32.mrf.mxu0
        %v3720 = vadd.f32 0.0, %v3719
        %v3721 = vpop.f32.mrf.mxu0
        %v3722 = vpop.f32.mrf.mxu0
        %v3723 = vadd.f32 0.0, %v3722
        %v3724 = vpop.f32.mrf.mxu0
        %3725 = vmatprep.mubr.bf16.mxu0 %v2785
        %3726 = vmatmul.mubr.bf16.gmra.mxu0 %v2784
        %v3727 = vpop.f32.mrf.mxu0
        %v3728 = vadd.f32 0.0, %v3727
        %v3729 = vpop.f32.mrf.mxu0
        %v3730 = vpop.f32.mrf.mxu0
        %v3731 = vadd.f32 0.0, %v3730
        %v3732 = vpop.f32.mrf.mxu0
        %3733 = vmatprep.mubr.bf16.mxu0 %v2788
        %3734 = vmatmul.mubr.bf16.gmra.mxu0 %v2787
        %v3735 = vpop.f32.mrf.mxu0
        %v3736 = vadd.f32 0.0, %v3735
        %v3737 = vpop.f32.mrf.mxu0
        %v3738 = vpop.f32.mrf.mxu0
        %v3739 = vadd.f32 0.0, %v3738
        %v3740 = vpop.f32.mrf.mxu0
        %3741 = vmatprep.mubr.bf16.mxu0 %v2791
        %3742 = vmatmul.mubr.bf16.gmra.mxu0 %v2790
        %v3743 = vpop.f32.mrf.mxu0
        %v3744 = vadd.f32 0.0, %v3743
        %v3745 = vpop.f32.mrf.mxu0
        %v3746 = vpop.f32.mrf.mxu0
        %v3747 = vadd.f32 0.0, %v3746
        %v3748 = vpop.f32.mrf.mxu0
        %3749 = vmatprep.mubr.bf16.mxu0 %v2794
        %3750 = vmatmul.mubr.bf16.gmra.mxu0 %v2793
        %v3751 = vpop.f32.mrf.mxu0
        %v3752 = vadd.f32 0.0, %v3751
        %v3753 = vpop.f32.mrf.mxu0
        %v3754 = vpop.f32.mrf.mxu0
        %v3755 = vadd.f32 0.0, %v3754
        %v3756 = vpop.f32.mrf.mxu0
        %3757 = vmatprep.mubr.bf16.mxu0 %v2797
        %3758 = vmatmul.mubr.bf16.gmra.mxu0 %v2796
        %v3759 = vpop.f32.mrf.mxu0
        %v3760 = vadd.f32 0.0, %v3759
        %v3761 = vpop.f32.mrf.mxu0
        %v3762 = vpop.f32.mrf.mxu0
        %v3763 = vadd.f32 0.0, %v3762
        %v3764 = vpop.f32.mrf.mxu0
        %3765 = vdwg.mxu0
        %3766 = vmatprep.subr.bf16.mxu0 0
        %3767 = vmatpush1.bf16.msra.mxu0 %v3086
        %3768 = vmatprep.subr.bf16.mxu0 0
        %3769 = vmatpush1.bf16.msra.mxu0 %v3085
        %3770 = vmatprep.subr.bf16.mxu0 0
        %3771 = vmatpush1.bf16.msra.mxu0 %v3084
        %3772 = vmatprep.subr.bf16.mxu0 0
        %3773 = vmatpush1.bf16.msra.mxu0 %v3083
        %3774 = vmatprep.subr.bf16.mxu0 0
        %3775 = vmatpush1.bf16.msra.mxu0 %v3082
        %3776 = vmatprep.subr.bf16.mxu0 0
        %3777 = vmatpush1.bf16.msra.mxu0 %v3081
        %3778 = vmatprep.subr.bf16.mxu0 0
        %3779 = vmatpush1.bf16.msra.mxu0 %v3080
        %3780 = vmatprep.subr.bf16.mxu0 0
        %3781 = vmatpush1.bf16.msra.mxu0 %v3079
        %3782 = vmatprep.subr.bf16.mxu0 0
        %3783 = vmatpush2.bf16.msra.mxu0 0
        %3784 = vmatprep.subr.bf16.mxu0 0
        %3785 = vmatpush2.bf16.msra.mxu0 0
        %3786 = vmatprep.subr.bf16.mxu0 0
        %3787 = vmatpush2.bf16.msra.mxu0 0
        %3788 = vmatprep.subr.bf16.mxu0 0
        %3789 = vmatpush2.bf16.msra.mxu0 0
        %3790 = vmatprep.subr.bf16.mxu0 0
        %3791 = vmatpush2.bf16.msra.mxu0 0
        %3792 = vmatprep.subr.bf16.mxu0 0
        %3793 = vmatpush2.bf16.msra.mxu0 0
        %3794 = vmatprep.subr.bf16.mxu0 0
        %3795 = vmatpush2.bf16.msra.mxu0 0
        %3796 = vmatprep.subr.bf16.mxu0 0
        %3797 = vmatpush2.bf16.msra.mxu0 0
        %3798 = vmatprep.mubr.bf16.mxu0 0
        %3799 = vmatmul.mubr.bf16.gmra.mxu0 %v2777
        %v3800 = vpop.f32.mrf.mxu0
        %v3801 = vadd.f32 %v3704, %v3800
        %v3802 = vpop.f32.mrf.mxu0
        %v3803 = vpop.f32.mrf.mxu0
        %v3804 = vadd.f32 %v3707, %v3803
        %v3805 = vpop.f32.mrf.mxu0
        %3806 = vmatprep.mubr.bf16.mxu0 0
        %3807 = vmatmul.mubr.bf16.gmra.mxu0 %v2780
        %v3808 = vpop.f32.mrf.mxu0
        %v3809 = vadd.f32 %v3712, %v3808
        %v3810 = vpop.f32.mrf.mxu0
        %v3811 = vpop.f32.mrf.mxu0
        %v3812 = vadd.f32 %v3715, %v3811
        %v3813 = vpop.f32.mrf.mxu0
        %3814 = vmatprep.mubr.bf16.mxu0 0
        %3815 = vmatmul.mubr.bf16.gmra.mxu0 %v2783
        %v3816 = vpop.f32.mrf.mxu0
        %v3817 = vadd.f32 %v3720, %v3816
        %v3818 = vpop.f32.mrf.mxu0
        %v3819 = vpop.f32.mrf.mxu0
        %v3820 = vadd.f32 %v3723, %v3819
        %v3821 = vpop.f32.mrf.mxu0
        %3822 = vmatprep.mubr.bf16.mxu0 0
        %3823 = vmatmul.mubr.bf16.gmra.mxu0 %v2786
        %v3824 = vpop.f32.mrf.mxu0
        %v3825 = vadd.f32 %v3728, %v3824
        %v3826 = vpop.f32.mrf.mxu0
        %v3827 = vpop.f32.mrf.mxu0
        %v3828 = vadd.f32 %v3731, %v3827
        %v3829 = vpop.f32.mrf.mxu0
        %3830 = vmatprep.mubr.bf16.mxu0 0
        %3831 = vmatmul.mubr.bf16.gmra.mxu0 %v2789
        %v3832 = vpop.f32.mrf.mxu0
        %v3833 = vadd.f32 %v3736, %v3832
        %v3834 = vpop.f32.mrf.mxu0
        %v3835 = vpop.f32.mrf.mxu0
        %v3836 = vadd.f32 %v3739, %v3835
        %v3837 = vpop.f32.mrf.mxu0
        %3838 = vmatprep.mubr.bf16.mxu0 0
        %3839 = vmatmul.mubr.bf16.gmra.mxu0 %v2792
        %v3840 = vpop.f32.mrf.mxu0
        %v3841 = vadd.f32 %v3744, %v3840
        %v3842 = vpop.f32.mrf.mxu0
        %v3843 = vpop.f32.mrf.mxu0
        %v3844 = vadd.f32 %v3747, %v3843
        %v3845 = vpop.f32.mrf.mxu0
        %3846 = vmatprep.mubr.bf16.mxu0 0
        %3847 = vmatmul.mubr.bf16.gmra.mxu0 %v2795
        %v3848 = vpop.f32.mrf.mxu0
        %v3849 = vadd.f32 %v3752, %v3848
        %v3850 = vpop.f32.mrf.mxu0
        %v3851 = vpop.f32.mrf.mxu0
        %v3852 = vadd.f32 %v3755, %v3851
        %v3853 = vpop.f32.mrf.mxu0
        %3854 = vmatprep.mubr.bf16.mxu0 0
        %3855 = vmatmul.mubr.bf16.gmra.mxu0 %v2798
        %v3856 = vpop.f32.mrf.mxu0
        %v3857 = vadd.f32 %v3760, %v3856
        %v3858 = vpop.f32.mrf.mxu0
        %v3859 = vpop.f32.mrf.mxu0
        %v3860 = vadd.f32 %v3763, %v3859
        %v3861 = vpop.f32.mrf.mxu0
        %3862 = vdwg.mxu0
        %vm3863 = vcmask 523264
        %3864 = vst.msk [vmem:[%s313] sm:$0xff] %vm3863, %v3219
        %3865 = vst.msk [vmem:[%s313 + $0x8] sm:$0xff] %vm3863, %v3222
        %3866 = vst.msk [vmem:[%s313 + $0x10] sm:$0xff] %vm3863, %v3227
        %3867 = vst.msk [vmem:[%s313 + $0x18] sm:$0xff] %vm3863, %v3230
        %3868 = vst.msk [vmem:[%s313 + $0x20] sm:$0xff] %vm3863, %v3235
        %3869 = vst.msk [vmem:[%s313 + $0x28] sm:$0xff] %vm3863, %v3238
        %3870 = vst.msk [vmem:[%s313 + $0x30] sm:$0xff] %vm3863, %v3243
        %3871 = vst.msk [vmem:[%s313 + $0x38] sm:$0xff] %vm3863, %v3246
        %3872 = vst.msk [vmem:[%s313 + $0x40] sm:$0xff] %vm3863, %v3251
        %3873 = vst.msk [vmem:[%s313 + $0x48] sm:$0xff] %vm3863, %v3254
        %3874 = vst.msk [vmem:[%s313 + $0x50] sm:$0xff] %vm3863, %v3259
        %3875 = vst.msk [vmem:[%s313 + $0x58] sm:$0xff] %vm3863, %v3262
        %3876 = vst.msk [vmem:[%s313 + $0x60] sm:$0xff] %vm3863, %v3267
        %3877 = vst.msk [vmem:[%s313 + $0x68] sm:$0xff] %vm3863, %v3270
        %3878 = vst.msk [vmem:[%s313 + $0x70] sm:$0xff] %vm3863, %v3275
        %3879 = vst.msk [vmem:[%s313 + $0x78] sm:$0xff] %vm3863, %v3278
        %3880 = vst.msk [vmem:[%s313 + $0x80] sm:$0xff] %vm3863, %v3413
        %3881 = vst.msk [vmem:[%s313 + $0x88] sm:$0xff] %vm3863, %v3416
        %3882 = vst.msk [vmem:[%s313 + $0x90] sm:$0xff] %vm3863, %v3421
        %3883 = vst.msk [vmem:[%s313 + $0x98] sm:$0xff] %vm3863, %v3424
        %3884 = vst.msk [vmem:[%s313 + $0xa0] sm:$0xff] %vm3863, %v3429
        %3885 = vst.msk [vmem:[%s313 + $0xa8] sm:$0xff] %vm3863, %v3432
        %3886 = vst.msk [vmem:[%s313 + $0xb0] sm:$0xff] %vm3863, %v3437
        %3887 = vst.msk [vmem:[%s313 + $0xb8] sm:$0xff] %vm3863, %v3440
        %3888 = vst.msk [vmem:[%s313 + $0xc0] sm:$0xff] %vm3863, %v3445
        %3889 = vst.msk [vmem:[%s313 + $0xc8] sm:$0xff] %vm3863, %v3448
        %3890 = vst.msk [vmem:[%s313 + $0xd0] sm:$0xff] %vm3863, %v3453
        %3891 = vst.msk [vmem:[%s313 + $0xd8] sm:$0xff] %vm3863, %v3456
        %3892 = vst.msk [vmem:[%s313 + $0xe0] sm:$0xff] %vm3863, %v3461
        %3893 = vst.msk [vmem:[%s313 + $0xe8] sm:$0xff] %vm3863, %v3464
        %3894 = vst.msk [vmem:[%s313 + $0xf0] sm:$0xff] %vm3863, %v3469
        %3895 = vst.msk [vmem:[%s313 + $0xf8] sm:$0xff] %vm3863, %v3472
        %3896 = vst.msk [vmem:[%s313 + $0x100] sm:$0xff] %vm3863, %v3607
        %3897 = vst.msk [vmem:[%s313 + $0x108] sm:$0xff] %vm3863, %v3610
        %3898 = vst.msk [vmem:[%s313 + $0x110] sm:$0xff] %vm3863, %v3615
        %3899 = vst.msk [vmem:[%s313 + $0x118] sm:$0xff] %vm3863, %v3618
        %3900 = vst.msk [vmem:[%s313 + $0x120] sm:$0xff] %vm3863, %v3623
        %3901 = vst.msk [vmem:[%s313 + $0x128] sm:$0xff] %vm3863, %v3626
        %3902 = vst.msk [vmem:[%s313 + $0x130] sm:$0xff] %vm3863, %v3631
        %3903 = vst.msk [vmem:[%s313 + $0x138] sm:$0xff] %vm3863, %v3634
        %3904 = vst.msk [vmem:[%s313 + $0x140] sm:$0xff] %vm3863, %v3639
        %3905 = vst.msk [vmem:[%s313 + $0x148] sm:$0xff] %vm3863, %v3642
        %3906 = vst.msk [vmem:[%s313 + $0x150] sm:$0xff] %vm3863, %v3647
        %3907 = vst.msk [vmem:[%s313 + $0x158] sm:$0xff] %vm3863, %v3650
        %3908 = vst.msk [vmem:[%s313 + $0x160] sm:$0xff] %vm3863, %v3655
        %3909 = vst.msk [vmem:[%s313 + $0x168] sm:$0xff] %vm3863, %v3658
        %3910 = vst.msk [vmem:[%s313 + $0x170] sm:$0xff] %vm3863, %v3663
        %3911 = vst.msk [vmem:[%s313 + $0x178] sm:$0xff] %vm3863, %v3666
        %3912 = vst.msk [vmem:[%s313 + $0x180] sm:$0xff] %vm3863, %v3801
        %3913 = vst.msk [vmem:[%s313 + $0x188] sm:$0xff] %vm3863, %v3804
        %3914 = vst.msk [vmem:[%s313 + $0x190] sm:$0xff] %vm3863, %v3809
        %3915 = vst.msk [vmem:[%s313 + $0x198] sm:$0xff] %vm3863, %v3812
        %3916 = vst.msk [vmem:[%s313 + $0x1a0] sm:$0xff] %vm3863, %v3817
        %3917 = vst.msk [vmem:[%s313 + $0x1a8] sm:$0xff] %vm3863, %v3820
        %3918 = vst.msk [vmem:[%s313 + $0x1b0] sm:$0xff] %vm3863, %v3825
        %3919 = vst.msk [vmem:[%s313 + $0x1b8] sm:$0xff] %vm3863, %v3828
        %3920 = vst.msk [vmem:[%s313 + $0x1c0] sm:$0xff] %vm3863, %v3833
        %3921 = vst.msk [vmem:[%s313 + $0x1c8] sm:$0xff] %vm3863, %v3836
        %3922 = vst.msk [vmem:[%s313 + $0x1d0] sm:$0xff] %vm3863, %v3841
        %3923 = vst.msk [vmem:[%s313 + $0x1d8] sm:$0xff] %vm3863, %v3844
        %3924 = vst.msk [vmem:[%s313 + $0x1e0] sm:$0xff] %vm3863, %v3849
        %3925 = vst.msk [vmem:[%s313 + $0x1e8] sm:$0xff] %vm3863, %v3852
        %3926 = vst.msk [vmem:[%s313 + $0x1f0] sm:$0xff] %vm3863, %v3857
        %3927 = vst.msk [vmem:[%s313 + $0x1f8] sm:$0xff] %vm3863, %v3860
        %s3928 = sand.u32 %s121, 1
        %s3929 = sand.u32 %s121, 1
        %s3930 = smul.addr %s3929, 512
        %s3931 = scalar_lea.vmem [#allocation7], %s3930
        // Predicated region
        $region49: #{tpu_custom_call.1} parent=35 // pred_check
          %p3932 = pneg %p131
        $region50: #{tpu_custom_call.1} parent=35 // pred_check_branch
          %3934 = sbr.rel (%p3932) target = $region52
        $region51: #{tpu_custom_call.1} parent=35 // pred_region
          %s3935 = smul.u32 16, %s19
          %s3936 = smul.addr %s3935, 8
          %s3937 = scalar_lea.vmem %s4, %s3936
          // Predicated region
          $region53: #{tpu_custom_call.1} parent=51 // pred_check
            _
          $region54: #{tpu_custom_call.1} parent=51 // pred_check_branch
            %3939 = sbr.rel (0) target = $region56
          $region55: #{tpu_custom_call.1} parent=51 // pred_region
            // Predicated region
            $region57: #{tpu_custom_call.1} parent=55 // pred_check
              _
            $region58: #{tpu_custom_call.1} parent=55 // pred_check_branch
              %3941 = sbr.rel (0) target = $region60
            $region59: #{tpu_custom_call.1} parent=55 // pred_region
              // Predicated region
              $region72: #{tpu_custom_call.1} parent=59 // pred_check
                _
              $region73: #{tpu_custom_call.1} parent=59 // pred_check_branch
                %4083 = sbr.rel (0) target = $region75
              $region74: #{tpu_custom_call.1} parent=59 // pred_region
                loop: start=0, step=1, limit=1
                $region76: #{tpu_custom_call.1} parent=74 // loop_pre_header
                  _
                $region77: #{tpu_custom_call.1} parent=74 // loop_header
                  %s4085 = sphi 0, %s4089
                  %p4086 = scmp.ge.s32.totalorder %s4085, 1
                  %s4090 = sphi %s3931, %s3931
                  %s4091 = sphi %s3937, %s3937
                $region78: #{tpu_custom_call.1} parent=74 // loop_header_branch
                  %4088 = sbr.rel (%p4086) target = $region82
                $region79: #{tpu_custom_call.1} parent=74 // loop_body
                  %v4092 = vld [vmem:[%s4090] sm:$0xff]
                  %4093 = vst [vmem:[%s4091] sm:$0xff] %v4092
                  %v4094 = vld [vmem:[%s4090 + $0x8] sm:$0xff]
                  %4095 = vst [vmem:[%s4091 + $0x8] sm:$0xff] %v4094
                  %v4096 = vld [vmem:[%s4090 + $0x10] sm:$0xff]
                  %4097 = vst [vmem:[%s4091 + $0x10] sm:$0xff] %v4096
                  %v4098 = vld [vmem:[%s4090 + $0x18] sm:$0xff]
                  %4099 = vst [vmem:[%s4091 + $0x18] sm:$0xff] %v4098
                  %v4100 = vld [vmem:[%s4090 + $0x20] sm:$0xff]
                  %4101 = vst [vmem:[%s4091 + $0x20] sm:$0xff] %v4100
                  %v4102 = vld [vmem:[%s4090 + $0x28] sm:$0xff]
                  %4103 = vst [vmem:[%s4091 + $0x28] sm:$0xff] %v4102
                  %v4104 = vld [vmem:[%s4090 + $0x30] sm:$0xff]
                  %4105 = vst [vmem:[%s4091 + $0x30] sm:$0xff] %v4104
                  %v4106 = vld [vmem:[%s4090 + $0x38] sm:$0xff]
                  %4107 = vst [vmem:[%s4091 + $0x38] sm:$0xff] %v4106
                  %v4108 = vld [vmem:[%s4090 + $0x40] sm:$0xff]
                  %4109 = vst [vmem:[%s4091 + $0x40] sm:$0xff] %v4108
                  %v4110 = vld [vmem:[%s4090 + $0x48] sm:$0xff]
                  %4111 = vst [vmem:[%s4091 + $0x48] sm:$0xff] %v4110
                  %v4112 = vld [vmem:[%s4090 + $0x50] sm:$0xff]
                  %4113 = vst [vmem:[%s4091 + $0x50] sm:$0xff] %v4112
                  %v4114 = vld [vmem:[%s4090 + $0x58] sm:$0xff]
                  %4115 = vst [vmem:[%s4091 + $0x58] sm:$0xff] %v4114
                  %v4116 = vld [vmem:[%s4090 + $0x60] sm:$0xff]
                  %4117 = vst [vmem:[%s4091 + $0x60] sm:$0xff] %v4116
                  %v4118 = vld [vmem:[%s4090 + $0x68] sm:$0xff]
                  %4119 = vst [vmem:[%s4091 + $0x68] sm:$0xff] %v4118
                  %v4120 = vld [vmem:[%s4090 + $0x70] sm:$0xff]
                  %4121 = vst [vmem:[%s4091 + $0x70] sm:$0xff] %v4120
                  %v4122 = vld [vmem:[%s4090 + $0x78] sm:$0xff]
                  %4123 = vst [vmem:[%s4091 + $0x78] sm:$0xff] %v4122
                  %v4124 = vld [vmem:[%s4090 + $0x80] sm:$0xff]
                  %4125 = vst [vmem:[%s4091 + $0x180] sm:$0xff] %v4124
                  %v4126 = vld [vmem:[%s4090 + $0x88] sm:$0xff]
                  %4127 = vst [vmem:[%s4091 + $0x188] sm:$0xff] %v4126
                  %v4128 = vld [vmem:[%s4090 + $0x90] sm:$0xff]
                  %4129 = vst [vmem:[%s4091 + $0x190] sm:$0xff] %v4128
                  %v4130 = vld [vmem:[%s4090 + $0x98] sm:$0xff]
                  %4131 = vst [vmem:[%s4091 + $0x198] sm:$0xff] %v4130
                  %v4132 = vld [vmem:[%s4090 + $0xa0] sm:$0xff]
                  %4133 = vst [vmem:[%s4091 + $0x1a0] sm:$0xff] %v4132
                  %v4134 = vld [vmem:[%s4090 + $0xa8] sm:$0xff]
                  %4135 = vst [vmem:[%s4091 + $0x1a8] sm:$0xff] %v4134
                  %v4136 = vld [vmem:[%s4090 + $0xb0] sm:$0xff]
                  %4137 = vst [vmem:[%s4091 + $0x1b0] sm:$0xff] %v4136
                  %v4138 = vld [vmem:[%s4090 + $0xb8] sm:$0xff]
                  %4139 = vst [vmem:[%s4091 + $0x1b8] sm:$0xff] %v4138
                  %v4140 = vld [vmem:[%s4090 + $0xc0] sm:$0xff]
                  %4141 = vst [vmem:[%s4091 + $0x1c0] sm:$0xff] %v4140
                  %v4142 = vld [vmem:[%s4090 + $0xc8] sm:$0xff]
                  %4143 = vst [vmem:[%s4091 + $0x1c8] sm:$0xff] %v4142
                  %v4144 = vld [vmem:[%s4090 + $0xd0] sm:$0xff]
                  %4145 = vst [vmem:[%s4091 + $0x1d0] sm:$0xff] %v4144
                  %v4146 = vld [vmem:[%s4090 + $0xd8] sm:$0xff]
                  %4147 = vst [vmem:[%s4091 + $0x1d8] sm:$0xff] %v4146
                  %v4148 = vld [vmem:[%s4090 + $0xe0] sm:$0xff]
                  %4149 = vst [vmem:[%s4091 + $0x1e0] sm:$0xff] %v4148
                  %v4150 = vld [vmem:[%s4090 + $0xe8] sm:$0xff]
                  %4151 = vst [vmem:[%s4091 + $0x1e8] sm:$0xff] %v4150
                  %v4152 = vld [vmem:[%s4090 + $0xf0] sm:$0xff]
                  %4153 = vst [vmem:[%s4091 + $0x1f0] sm:$0xff] %v4152
                  %v4154 = vld [vmem:[%s4090 + $0xf8] sm:$0xff]
                  %4155 = vst [vmem:[%s4091 + $0x1f8] sm:$0xff] %v4154
                  %v4156 = vld [vmem:[%s4090 + $0x100] sm:$0xff]
                  %4157 = vst [vmem:[%s4091 + $0x300] sm:$0xff] %v4156
                  %v4158 = vld [vmem:[%s4090 + $0x108] sm:$0xff]
                  %4159 = vst [vmem:[%s4091 + $0x308] sm:$0xff] %v4158
                  %v4160 = vld [vmem:[%s4090 + $0x110] sm:$0xff]
                  %4161 = vst [vmem:[%s4091 + $0x310] sm:$0xff] %v4160
                  %v4162 = vld [vmem:[%s4090 + $0x118] sm:$0xff]
                  %4163 = vst [vmem:[%s4091 + $0x318] sm:$0xff] %v4162
                  %v4164 = vld [vmem:[%s4090 + $0x120] sm:$0xff]
                  %4165 = vst [vmem:[%s4091 + $0x320] sm:$0xff] %v4164
                  %v4166 = vld [vmem:[%s4090 + $0x128] sm:$0xff]
                  %4167 = vst [vmem:[%s4091 + $0x328] sm:$0xff] %v4166
                  %v4168 = vld [vmem:[%s4090 + $0x130] sm:$0xff]
                  %4169 = vst [vmem:[%s4091 + $0x330] sm:$0xff] %v4168
                  %v4170 = vld [vmem:[%s4090 + $0x138] sm:$0xff]
                  %4171 = vst [vmem:[%s4091 + $0x338] sm:$0xff] %v4170
                  %v4172 = vld [vmem:[%s4090 + $0x140] sm:$0xff]
                  %4173 = vst [vmem:[%s4091 + $0x340] sm:$0xff] %v4172
                  %v4174 = vld [vmem:[%s4090 + $0x148] sm:$0xff]
                  %4175 = vst [vmem:[%s4091 + $0x348] sm:$0xff] %v4174
                  %v4176 = vld [vmem:[%s4090 + $0x150] sm:$0xff]
                  %4177 = vst [vmem:[%s4091 + $0x350] sm:$0xff] %v4176
                  %v4178 = vld [vmem:[%s4090 + $0x158] sm:$0xff]
                  %4179 = vst [vmem:[%s4091 + $0x358] sm:$0xff] %v4178
                  %v4180 = vld [vmem:[%s4090 + $0x160] sm:$0xff]
                  %4181 = vst [vmem:[%s4091 + $0x360] sm:$0xff] %v4180
                  %v4182 = vld [vmem:[%s4090 + $0x168] sm:$0xff]
                  %4183 = vst [vmem:[%s4091 + $0x368] sm:$0xff] %v4182
                  %v4184 = vld [vmem:[%s4090 + $0x170] sm:$0xff]
                  %4185 = vst [vmem:[%s4091 + $0x370] sm:$0xff] %v4184
                  %v4186 = vld [vmem:[%s4090 + $0x178] sm:$0xff]
                  %4187 = vst [vmem:[%s4091 + $0x378] sm:$0xff] %v4186
                  %v4188 = vld [vmem:[%s4090 + $0x180] sm:$0xff]
                  %4189 = vst [vmem:[%s4091 + $0x480] sm:$0xff] %v4188
                  %v4190 = vld [vmem:[%s4090 + $0x188] sm:$0xff]
                  %4191 = vst [vmem:[%s4091 + $0x488] sm:$0xff] %v4190
                  %v4192 = vld [vmem:[%s4090 + $0x190] sm:$0xff]
                  %4193 = vst [vmem:[%s4091 + $0x490] sm:$0xff] %v4192
                  %v4194 = vld [vmem:[%s4090 + $0x198] sm:$0xff]
                  %4195 = vst [vmem:[%s4091 + $0x498] sm:$0xff] %v4194
                  %v4196 = vld [vmem:[%s4090 + $0x1a0] sm:$0xff]
                  %4197 = vst [vmem:[%s4091 + $0x4a0] sm:$0xff] %v4196
                  %v4198 = vld [vmem:[%s4090 + $0x1a8] sm:$0xff]
                  %4199 = vst [vmem:[%s4091 + $0x4a8] sm:$0xff] %v4198
                  %v4200 = vld [vmem:[%s4090 + $0x1b0] sm:$0xff]
                  %4201 = vst [vmem:[%s4091 + $0x4b0] sm:$0xff] %v4200
                  %v4202 = vld [vmem:[%s4090 + $0x1b8] sm:$0xff]
                  %4203 = vst [vmem:[%s4091 + $0x4b8] sm:$0xff] %v4202
                  %v4204 = vld [vmem:[%s4090 + $0x1c0] sm:$0xff]
                  %4205 = vst [vmem:[%s4091 + $0x4c0] sm:$0xff] %v4204
                  %v4206 = vld [vmem:[%s4090 + $0x1c8] sm:$0xff]
                  %4207 = vst [vmem:[%s4091 + $0x4c8] sm:$0xff] %v4206
                  %v4208 = vld [vmem:[%s4090 + $0x1d0] sm:$0xff]
                  %4209 = vst [vmem:[%s4091 + $0x4d0] sm:$0xff] %v4208
                  %v4210 = vld [vmem:[%s4090 + $0x1d8] sm:$0xff]
                  %4211 = vst [vmem:[%s4091 + $0x4d8] sm:$0xff] %v4210
                  %v4212 = vld [vmem:[%s4090 + $0x1e0] sm:$0xff]
                  %4213 = vst [vmem:[%s4091 + $0x4e0] sm:$0xff] %v4212
                  %v4214 = vld [vmem:[%s4090 + $0x1e8] sm:$0xff]
                  %4215 = vst [vmem:[%s4091 + $0x4e8] sm:$0xff] %v4214
                  %v4216 = vld [vmem:[%s4090 + $0x1f0] sm:$0xff]
                  %4217 = vst [vmem:[%s4091 + $0x4f0] sm:$0xff] %v4216
                  %v4218 = vld [vmem:[%s4090 + $0x1f8] sm:$0xff]
                  %4219 = vst [vmem:[%s4091 + $0x4f8] sm:$0xff] %v4218
                $region80: #{tpu_custom_call.1} parent=74 // loop_footer
                  %s4089 = sadd.s32 1, %s4085
                $region81: #{tpu_custom_call.1} parent=74 // loop_footer_branch
                  %4084 = sbr.rel target = $region77
                $region82: #{tpu_custom_call.1} parent=74 // loop_exit
                  _
              $region75: #{tpu_custom_call.1} parent=59 // pred_fallthru
                _
              // Predicated region
              $region83: #{tpu_custom_call.1} parent=59 // pred_check
                _
              $region84: #{tpu_custom_call.1} parent=59 // pred_check_branch
                %4221 = sbr.rel target = $region86
              $region85: #{tpu_custom_call.1} parent=59 // pred_region
                _
              $region86: #{tpu_custom_call.1} parent=59 // pred_fallthru
                _
            $region60: #{tpu_custom_call.1} parent=55 // pred_fallthru
              _
            // Predicated region
            $region61: #{tpu_custom_call.1} parent=55 // pred_check
              _
            $region62: #{tpu_custom_call.1} parent=55 // pred_check_branch
              %3943 = sbr.rel target = $region64
            $region63: #{tpu_custom_call.1} parent=55 // pred_region
              %s3945 = ssub.s32 256, 1
              loop: start=0, step=1, limit=1
              $region65: #{tpu_custom_call.1} parent=63 // loop_pre_header
                _
              $region66: #{tpu_custom_call.1} parent=63 // loop_header
                %s3947 = sphi 0, %s3951
                %p3948 = scmp.ge.s32.totalorder %s3947, 1
                %s3952 = sphi %s3931, %s3931
                %s3953 = sphi %s3937, %s3937
              $region67: #{tpu_custom_call.1} parent=63 // loop_header_branch
                %3950 = sbr.rel (%p3948) target = $region71
              $region68: #{tpu_custom_call.1} parent=63 // loop_body
                %v3954 = vld [vmem:[%s3952] sm:%s3945]
                %3955 = vst [vmem:[%s3953] sm:%s3945] %v3954
                %v3956 = vld [vmem:[%s3952 + $0x8] sm:%s3945]
                %3957 = vst [vmem:[%s3953 + $0x8] sm:%s3945] %v3956
                %v3958 = vld [vmem:[%s3952 + $0x10] sm:%s3945]
                %3959 = vst [vmem:[%s3953 + $0x10] sm:%s3945] %v3958
                %v3960 = vld [vmem:[%s3952 + $0x18] sm:%s3945]
                %3961 = vst [vmem:[%s3953 + $0x18] sm:%s3945] %v3960
                %v3962 = vld [vmem:[%s3952 + $0x20] sm:%s3945]
                %3963 = vst [vmem:[%s3953 + $0x20] sm:%s3945] %v3962
                %v3964 = vld [vmem:[%s3952 + $0x28] sm:%s3945]
                %3965 = vst [vmem:[%s3953 + $0x28] sm:%s3945] %v3964
                %v3966 = vld [vmem:[%s3952 + $0x30] sm:%s3945]
                %3967 = vst [vmem:[%s3953 + $0x30] sm:%s3945] %v3966
                %v3968 = vld [vmem:[%s3952 + $0x38] sm:%s3945]
                %3969 = vst [vmem:[%s3953 + $0x38] sm:%s3945] %v3968
                %v3970 = vld [vmem:[%s3952 + $0x40] sm:%s3945]
                %3971 = vst [vmem:[%s3953 + $0x40] sm:%s3945] %v3970
                %v3972 = vld [vmem:[%s3952 + $0x48] sm:%s3945]
                %3973 = vst [vmem:[%s3953 + $0x48] sm:%s3945] %v3972
                %v3974 = vld [vmem:[%s3952 + $0x50] sm:%s3945]
                %3975 = vst [vmem:[%s3953 + $0x50] sm:%s3945] %v3974
                %v3976 = vld [vmem:[%s3952 + $0x58] sm:%s3945]
                %3977 = vst [vmem:[%s3953 + $0x58] sm:%s3945] %v3976
                %v3978 = vld [vmem:[%s3952 + $0x60] sm:%s3945]
                %3979 = vst [vmem:[%s3953 + $0x60] sm:%s3945] %v3978
                %v3980 = vld [vmem:[%s3952 + $0x68] sm:%s3945]
                %3981 = vst [vmem:[%s3953 + $0x68] sm:%s3945] %v3980
                %v3982 = vld [vmem:[%s3952 + $0x70] sm:%s3945]
                %3983 = vst [vmem:[%s3953 + $0x70] sm:%s3945] %v3982
                %v3984 = vld [vmem:[%s3952 + $0x78] sm:%s3945]
                %3985 = vst [vmem:[%s3953 + $0x78] sm:%s3945] %v3984
                %v3986 = vld [vmem:[%s3952 + $0x80] sm:%s3945]
                %3987 = vst [vmem:[%s3953 + $0x180] sm:%s3945] %v3986
                %v3988 = vld [vmem:[%s3952 + $0x88] sm:%s3945]
                %3989 = vst [vmem:[%s3953 + $0x188] sm:%s3945] %v3988
                %v3990 = vld [vmem:[%s3952 + $0x90] sm:%s3945]
                %3991 = vst [vmem:[%s3953 + $0x190] sm:%s3945] %v3990
                %v3992 = vld [vmem:[%s3952 + $0x98] sm:%s3945]
                %3993 = vst [vmem:[%s3953 + $0x198] sm:%s3945] %v3992
                %v3994 = vld [vmem:[%s3952 + $0xa0] sm:%s3945]
                %3995 = vst [vmem:[%s3953 + $0x1a0] sm:%s3945] %v3994
                %v3996 = vld [vmem:[%s3952 + $0xa8] sm:%s3945]
                %3997 = vst [vmem:[%s3953 + $0x1a8] sm:%s3945] %v3996
                %v3998 = vld [vmem:[%s3952 + $0xb0] sm:%s3945]
                %3999 = vst [vmem:[%s3953 + $0x1b0] sm:%s3945] %v3998
                %v4000 = vld [vmem:[%s3952 + $0xb8] sm:%s3945]
                %4001 = vst [vmem:[%s3953 + $0x1b8] sm:%s3945] %v4000
                %v4002 = vld [vmem:[%s3952 + $0xc0] sm:%s3945]
                %4003 = vst [vmem:[%s3953 + $0x1c0] sm:%s3945] %v4002
                %v4004 = vld [vmem:[%s3952 + $0xc8] sm:%s3945]
                %4005 = vst [vmem:[%s3953 + $0x1c8] sm:%s3945] %v4004
                %v4006 = vld [vmem:[%s3952 + $0xd0] sm:%s3945]
                %4007 = vst [vmem:[%s3953 + $0x1d0] sm:%s3945] %v4006
                %v4008 = vld [vmem:[%s3952 + $0xd8] sm:%s3945]
                %4009 = vst [vmem:[%s3953 + $0x1d8] sm:%s3945] %v4008
                %v4010 = vld [vmem:[%s3952 + $0xe0] sm:%s3945]
                %4011 = vst [vmem:[%s3953 + $0x1e0] sm:%s3945] %v4010
                %v4012 = vld [vmem:[%s3952 + $0xe8] sm:%s3945]
                %4013 = vst [vmem:[%s3953 + $0x1e8] sm:%s3945] %v4012
                %v4014 = vld [vmem:[%s3952 + $0xf0] sm:%s3945]
                %4015 = vst [vmem:[%s3953 + $0x1f0] sm:%s3945] %v4014
                %v4016 = vld [vmem:[%s3952 + $0xf8] sm:%s3945]
                %4017 = vst [vmem:[%s3953 + $0x1f8] sm:%s3945] %v4016
                %v4018 = vld [vmem:[%s3952 + $0x100] sm:%s3945]
                %4019 = vst [vmem:[%s3953 + $0x300] sm:%s3945] %v4018
                %v4020 = vld [vmem:[%s3952 + $0x108] sm:%s3945]
                %4021 = vst [vmem:[%s3953 + $0x308] sm:%s3945] %v4020
                %v4022 = vld [vmem:[%s3952 + $0x110] sm:%s3945]
                %4023 = vst [vmem:[%s3953 + $0x310] sm:%s3945] %v4022
                %v4024 = vld [vmem:[%s3952 + $0x118] sm:%s3945]
                %4025 = vst [vmem:[%s3953 + $0x318] sm:%s3945] %v4024
                %v4026 = vld [vmem:[%s3952 + $0x120] sm:%s3945]
                %4027 = vst [vmem:[%s3953 + $0x320] sm:%s3945] %v4026
                %v4028 = vld [vmem:[%s3952 + $0x128] sm:%s3945]
                %4029 = vst [vmem:[%s3953 + $0x328] sm:%s3945] %v4028
                %v4030 = vld [vmem:[%s3952 + $0x130] sm:%s3945]
                %4031 = vst [vmem:[%s3953 + $0x330] sm:%s3945] %v4030
                %v4032 = vld [vmem:[%s3952 + $0x138] sm:%s3945]
                %4033 = vst [vmem:[%s3953 + $0x338] sm:%s3945] %v4032
                %v4034 = vld [vmem:[%s3952 + $0x140] sm:%s3945]
                %4035 = vst [vmem:[%s3953 + $0x340] sm:%s3945] %v4034
                %v4036 = vld [vmem:[%s3952 + $0x148] sm:%s3945]
                %4037 = vst [vmem:[%s3953 + $0x348] sm:%s3945] %v4036
                %v4038 = vld [vmem:[%s3952 + $0x150] sm:%s3945]
                %4039 = vst [vmem:[%s3953 + $0x350] sm:%s3945] %v4038
                %v4040 = vld [vmem:[%s3952 + $0x158] sm:%s3945]
                %4041 = vst [vmem:[%s3953 + $0x358] sm:%s3945] %v4040
                %v4042 = vld [vmem:[%s3952 + $0x160] sm:%s3945]
                %4043 = vst [vmem:[%s3953 + $0x360] sm:%s3945] %v4042
                %v4044 = vld [vmem:[%s3952 + $0x168] sm:%s3945]
                %4045 = vst [vmem:[%s3953 + $0x368] sm:%s3945] %v4044
                %v4046 = vld [vmem:[%s3952 + $0x170] sm:%s3945]
                %4047 = vst [vmem:[%s3953 + $0x370] sm:%s3945] %v4046
                %v4048 = vld [vmem:[%s3952 + $0x178] sm:%s3945]
                %4049 = vst [vmem:[%s3953 + $0x378] sm:%s3945] %v4048
                %v4050 = vld [vmem:[%s3952 + $0x180] sm:%s3945]
                %4051 = vst [vmem:[%s3953 + $0x480] sm:%s3945] %v4050
                %v4052 = vld [vmem:[%s3952 + $0x188] sm:%s3945]
                %4053 = vst [vmem:[%s3953 + $0x488] sm:%s3945] %v4052
                %v4054 = vld [vmem:[%s3952 + $0x190] sm:%s3945]
                %4055 = vst [vmem:[%s3953 + $0x490] sm:%s3945] %v4054
                %v4056 = vld [vmem:[%s3952 + $0x198] sm:%s3945]
                %4057 = vst [vmem:[%s3953 + $0x498] sm:%s3945] %v4056
                %v4058 = vld [vmem:[%s3952 + $0x1a0] sm:%s3945]
                %4059 = vst [vmem:[%s3953 + $0x4a0] sm:%s3945] %v4058
                %v4060 = vld [vmem:[%s3952 + $0x1a8] sm:%s3945]
                %4061 = vst [vmem:[%s3953 + $0x4a8] sm:%s3945] %v4060
                %v4062 = vld [vmem:[%s3952 + $0x1b0] sm:%s3945]
                %4063 = vst [vmem:[%s3953 + $0x4b0] sm:%s3945] %v4062
                %v4064 = vld [vmem:[%s3952 + $0x1b8] sm:%s3945]
                %4065 = vst [vmem:[%s3953 + $0x4b8] sm:%s3945] %v4064
                %v4066 = vld [vmem:[%s3952 + $0x1c0] sm:%s3945]
                %4067 = vst [vmem:[%s3953 + $0x4c0] sm:%s3945] %v4066
                %v4068 = vld [vmem:[%s3952 + $0x1c8] sm:%s3945]
                %4069 = vst [vmem:[%s3953 + $0x4c8] sm:%s3945] %v4068
                %v4070 = vld [vmem:[%s3952 + $0x1d0] sm:%s3945]
                %4071 = vst [vmem:[%s3953 + $0x4d0] sm:%s3945] %v4070
                %v4072 = vld [vmem:[%s3952 + $0x1d8] sm:%s3945]
                %4073 = vst [vmem:[%s3953 + $0x4d8] sm:%s3945] %v4072
                %v4074 = vld [vmem:[%s3952 + $0x1e0] sm:%s3945]
                %4075 = vst [vmem:[%s3953 + $0x4e0] sm:%s3945] %v4074
                %v4076 = vld [vmem:[%s3952 + $0x1e8] sm:%s3945]
                %4077 = vst [vmem:[%s3953 + $0x4e8] sm:%s3945] %v4076
                %v4078 = vld [vmem:[%s3952 + $0x1f0] sm:%s3945]
                %4079 = vst [vmem:[%s3953 + $0x4f0] sm:%s3945] %v4078
                %v4080 = vld [vmem:[%s3952 + $0x1f8] sm:%s3945]
                %4081 = vst [vmem:[%s3953 + $0x4f8] sm:%s3945] %v4080
              $region69: #{tpu_custom_call.1} parent=63 // loop_footer
                %s3951 = sadd.s32 1, %s3947
              $region70: #{tpu_custom_call.1} parent=63 // loop_footer_branch
                %3946 = sbr.rel target = $region66
              $region71: #{tpu_custom_call.1} parent=63 // loop_exit
                _
            $region64: #{tpu_custom_call.1} parent=55 // pred_fallthru
              _
          $region56: #{tpu_custom_call.1} parent=51 // pred_fallthru
            _
          %4222 = vnop
        $region52: #{tpu_custom_call.1} parent=35 // pred_fallthru
          _
      $region36: #{tpu_custom_call.1} parent=5 // pred_fallthru
        _
      %p4223 = scmp.le.s32.totalorder 2, %s14
      // Predicated region
      $region87: #{tpu_custom_call.1} parent=5 // pred_check
        %p4224 = pneg %p4223
      $region88: #{tpu_custom_call.1} parent=5 // pred_check_branch
        %4226 = sbr.rel (%p4224) target = $region90
      $region89: #{tpu_custom_call.1} parent=5 // pred_region
        %s4227 = ssub.s32 %s14, 2
        // Predicated region
        $region91: #{tpu_custom_call.1} parent=89 // pred_check
          %p4228 = pneg %p137
        $region92: #{tpu_custom_call.1} parent=89 // pred_check_branch
          %4230 = sbr.rel (%p4228) target = $region94
        $region93: #{tpu_custom_call.1} parent=89 // pred_region
          %s4231 = sand.u32 %s122, 1
          %s4232 = sand.u32 %s122, 1
          %s4233 = smul.addr %s4232, 512
          %s4234 = scalar_lea.vmem [#allocation7], %s4233
        $region94: #{tpu_custom_call.1} parent=89 // pred_fallthru
          _
      $region90: #{tpu_custom_call.1} parent=5 // pred_fallthru
        _
    $region6: #{tpu_custom_call.1} parent=1 // loop_footer
      %s18 = sadd.s32 1, %s14
    $region7: #{tpu_custom_call.1} parent=1 // loop_footer_branch
      %13 = sbr.rel target = $region3
    $region8: #{tpu_custom_call.1} parent=1 // loop_exit
      _
    %4235 = vsyncpa [#allocation3], 1
    %s4236 = scalar_lea.sflag [#allocation3], 1
    %4237 = vsyncpa %s4236, 1
    %4238 = vsyncpa [#allocation5], 1

</llo_original>
